<compile_context>
chip_gen: v6e
topology: v6e:2x2x1
jax: 0.10.0
libtpu: 0.0.40
codegen_flags: <defaults>
</compile_context>

<pallas_src>
import functools

import jax
import jax.numpy as jnp
from jax.experimental import pallas as pl
from jax.experimental.pallas import tpu as pltpu

_LANES = 128  # lane-padded patch dimension; requires C*p*p + 1 <= 128


def _round_up(n, m):
    return ((n + m - 1) // m) * m


# --------------------------------------------------------------------------- #
# Pallas kernel: fused GMM classification + per-patch linear estimate.        #
# --------------------------------------------------------------------------- #
def _gmm_patch_kernel(x_ref, cls_ref, estT_ref, out_ref, *, K, Dp):
    """One tile of patches against all K GMM components.

    x_ref   : (TILE, Dp) f32.  Lanes [0, d) hold the patch, lane d holds 1.0
              (augmentation lane carrying the linear + constant score terms),
              lanes > d are zero.
    cls_ref : (Dp, K*Dp) bf16.  Column block k is the augmented matrix M_k with
              x_aug^T M_k x_aug = 0.5 x^T Sinv_k x - (Sinv_k mu_k).x - const_k,
              so argmax_k score_k == argmin_k of this reduce.
    estT_ref: (Dp, K*Dp) bf16.  Column block k is E_k^T (E_k = Sinv_reg_k @ S_k),
              zero-padded, so e[:, kDp:(k+1)Dp] = (E_k @ x)^T.
    out_ref : (TILE, Dp) f32.  Estimate of the argmax component (lane-dense store).
    """
    x = x_ref[...]                                                    # (T, Dp) f32
    xb = x.astype(jnp.bfloat16)

    # Two bf16 MXU passes cover all K components; everything else is cheap VPU work.
    z = jnp.dot(xb, cls_ref[...], preferred_element_type=jnp.float32)   # (T, K*Dp)
    e = jnp.dot(xb, estT_ref[...], preferred_element_type=jnp.float32)  # (T, K*Dp)

    # Running argmin of the (negated) score; strict '<' keeps "first max wins"
    # tie-breaking, matching torch.argmax.
    best_quad = jnp.sum(z[:, 0:Dp] * x, axis=-1, keepdims=True)         # (T, 1)
    best_k = jnp.zeros_like(best_quad, dtype=jnp.int32)
    for k in range(1, K):                                     # K static -> unrolled
        quad = jnp.sum(z[:, k * Dp:(k + 1) * Dp] * x, axis=-1, keepdims=True)
        better = quad < best_quad
        best_quad = jnp.where(better, quad, best_quad)
        best_k = jnp.where(better, k, best_k)

    # Select the estimate of the winning component (per-row one-hot select).
    est = e[:, 0:Dp]
    for k in range(1, K):
        est = jnp.where(best_k == k, e[:, k * Dp:(k + 1) * Dp], est)
    out_ref[...] = est                                         # one lane-dense store


def gmm_patch_estimate(patches_aug, cls_mat, estT_mat, *, tile=1024):
    """patches_aug: (P, Dp) f32 augmented patches.  Returns (P, Dp) estimates."""
    P, Dp = patches_aug.shape
    K = cls_mat.shape[1] // Dp

    P128 = _round_up(P, 128)
    # Megacore (v7x has 2 TensorCores): once there is enough work, force >= 2 grid
    # steps so dimension_semantics=("parallel",) can shard them; tiny problems keep
    # a single step (per-step overhead would dominate).
    if P128 >= 1024:
        tile = min(tile, max(128, (P128 // 2) // 128 * 128))
    tile = max(128, min(tile, P128))
    P_pad = _round_up(P, tile)
    if P_pad != P:
        patches_aug = jnp.pad(patches_aug, ((0, P_pad - P), (0, 0)))

    # Explicit VMEM budget: double-buffered in/out tiles + resident bf16 params
    # + the two (tile, K*Dp) f32 matmul results.  (NOTE: assumes small/moderate K;
    # TODO(synk): chunk the component axis for very large GMMs, e.g. K=200.)
    vmem_bytes = (4 * tile * Dp * 4
                  + 4 * Dp * (K * Dp) * 2
                  + 2 * tile * (K * Dp) * 4
                  + (4 << 20))
    vmem_limit = int(min(max(vmem_bytes, 32 << 20), 56 << 20))

    kernel = functools.partial(_gmm_patch_kernel, K=K, Dp=Dp)
    out = pl.pallas_call(
        kernel,
        out_shape=jax.ShapeDtypeStruct((P_pad, Dp), jnp.float32),
        grid=(P_pad // tile,),
        in_specs=[
            pl.BlockSpec((tile, Dp), lambda i: (i, 0)),        # patch tile
            pl.BlockSpec((Dp, K * Dp), lambda i: (0, 0)),      # stacked classify mats (resident)
            pl.BlockSpec((Dp, K * Dp), lambda i: (0, 0)),      # stacked estimate mats (resident)
        ],
        out_specs=pl.BlockSpec((tile, Dp), lambda i: (i, 0)),
        compiler_params=pltpu.CompilerParams(
            dimension_semantics=("parallel",),
            vmem_limit_bytes=vmem_limit),
    )(patches_aug, cls_mat.astype(jnp.bfloat16), estT_mat.astype(jnp.bfloat16))
    return out[:P]


# ------------------------------- JAX glue ------------------------------------ #
@functools.partial(jax.jit, static_argnames=("patch_size",))
def _reconstruction_step(Aty, x, sigma_sq, beta, weights, means, cov, patch_size):
    B, C, H, W = x.shape
    p = patch_size
    d = C * p * p
    K = means.shape[0]
    Dp = _LANES
    assert d + 1 <= Dp, "patch dimension + augmentation lane must fit in 128 lanes"

    # ---- GMM.set_cov_reg(1/beta) and derived per-component quantities (tiny, f32).
    reg = 1.0 / beta
    eye = jnp.eye(d, dtype=jnp.float32)
    cov_reg = cov + reg * eye
    cov_inv_reg = jnp.linalg.inv(cov_reg)
    logdet = jnp.linalg.slogdet(cov_reg)[1]
    lin = jnp.einsum('kij,kj->ki', cov_inv_reg, means)            # Sinv_k mu_k
    const = (jnp.log(weights) - 0.5 * logdet
             - 0.5 * jnp.einsum('ki,ki->k', means, lin))
    const = const - jnp.max(const)        # shared offset is argmax-irrelevant; keeps bf16 folding tight
    estmat = jnp.einsum('kij,kjl->kil', cov_inv_reg, cov)         # E_k = Sinv_reg_k @ S_k

    # ---- augmented classification matrices (0.5, linear term, const all folded in).
    M = jnp.zeros((K, Dp, Dp), jnp.float32)
    M = M.at[:, :d, :d].set(0.5 * cov_inv_reg)
    M = M.at[:, d, :d].set(-lin)
    M = M.at[:, d, d].set(-const)
    cls_mat = jnp.transpose(M, (1, 0, 2)).reshape(Dp, K * Dp)

    ET = jnp.zeros((K, Dp, Dp), jnp.float32)
    ET = ET.at[:, :d, :d].set(jnp.transpose(estmat, (0, 2, 1)))   # E_k^T, zero-padded
    estT_mat = jnp.transpose(ET, (1, 0, 2)).reshape(Dp, K * Dp)

    # ---- patch extraction as ONE fused op; feature order is (C, p, p) row-major.
    def extract(im):
        return jax.lax.conv_general_dilated_patches(
            im, filter_shape=(p, p), window_strides=(1, 1), padding='VALID',
            precision=jax.lax.Precision.HIGHEST)

    pat, vjp_fn = jax.vjp(extract, x)                             # (B, d, nH, nW)
    nH, nW = pat.shape[2], pat.shape[3]
    P = B * nH * nW
    flat = jnp.transpose(pat, (0, 2, 3, 1)).reshape(P, d)

    # lane-pad + augmentation lane (1.0 at index d) in one buffer.
    x_aug = jnp.zeros((P, Dp), jnp.float32)
    x_aug = x_aug.at[:, :d].set(flat).at[:, d].set(1.0)

    est = gmm_patch_estimate(x_aug, cls_mat, estT_mat)            # (P, Dp)
    est = jnp.transpose(est[:, :d].reshape(B, nH, nW, d), (0, 3, 1, 2))

    # ---- overlap-add aggregation = exact adjoint of the linear extraction.
    x_tilde, = vjp_fn(est)
    mult, = vjp_fn(jnp.ones_like(pat))                            # patch multiplicities
    x_tilde = x_tilde / mult

    rhs = Aty + beta * sigma_sq * x_tilde
    # physics = identity (denoising): (A^T A + beta*sigma^2 I) x = rhs has the
    # closed-form solution below (replaces the 100-iteration CG loop).
    # TODO(synk): a general LinearPhysics operator would need a conjugate-gradient solve here.
    return rhs / (1.0 + beta * sigma_sq)


def epll_forward(y, sigma, weights, means, cov, patch_size):
    """EPLL.forward with identity physics (denoising) and default betas
    [1, 4, 8, 16, 32] / sigma^2.  A scalar sigma broadcasts over the batch, so the
    joint batch processing matches the per-sample loop of the PyTorch reference.
    The outer loop is intentionally NOT jitted: the jitted _reconstruction_step is
    compiled once (beta is traced) and reused for all five betas."""
    sigma_sq = jnp.float32(sigma) ** 2
    x = y                    # x_init = A_adjoint(y) = y
    Aty = y
    for b in (1.0, 4.0, 8.0, 16.0, 32.0):
        beta = b / sigma_sq
        x = _reconstruction_step(Aty, x, sigma_sq, beta, weights, means, cov,
                                 patch_size)
    return x


if __name__ == "__main__":
    key = jax.random.PRNGKey(0)
    k_img, k_mu, k_cov = jax.random.split(key, 3)

    B, C, H, W = 2, 1, 16, 16
    patch_size = 6
    n_components = 4
    d = patch_size ** 2 * C

    # deterministic synthetic inputs / GMM parameters
    y = 0.5 + 0.1 * jax.random.normal(k_img, (B, C, H, W), jnp.float32)
    sigma = jnp.float32(0.1)

    means = 0.1 * jax.random.normal(k_mu, (n_components, d), jnp.float32)
    L = 0.05 * jax.random.normal(k_cov, (n_components, d, d), jnp.float32)
    cov = jnp.einsum('kij,klj->kil', L, L) + 0.2 * jnp.eye(d, dtype=jnp.float32)
    weights = jnp.full((n_components,), 1.0 / n_components, jnp.float32)

    out = epll_forward(y, sigma, weights, means, cov, patch_size)
    out = jax.block_until_ready(out)

    assert out.shape == (B, C, H, W)
    assert bool(jnp.all(jnp.isfinite(out)))
    print("KERNEL_OK")
</pallas_src>

<mosaic_0001>
module attributes {stable_mosaic.version = 11 : i64} {
  func.func @_gmm_patch_kernel(%arg0: i32, %arg1: memref<256x128xf32, #tpu.memory_space<vmem>>, %arg2: memref<128x512xbf16, #tpu.memory_space<vmem>>, %arg3: memref<128x512xbf16, #tpu.memory_space<vmem>>, %arg4: memref<256x128xf32, #tpu.memory_space<vmem>>) attributes {dimension_semantics = [#tpu.dimension_semantics<parallel>], iteration_bounds = array<i64: 1>, scalar_prefetch = 0 : i64, scratch_operands = 0 : i64, tpu.core_type = #tpu.core_type<tc>, window_params = [{transform_indices = @transform_0, window_bounds = array<i64: 256, 128>}, {pipeline_mode = #tpu.pipeline_mode<synchronous>, transform_indices = @transform_1, window_bounds = array<i64: 128, 512>}, {pipeline_mode = #tpu.pipeline_mode<synchronous>, transform_indices = @transform_2, window_bounds = array<i64: 128, 512>}, {transform_indices = @transform_3, window_bounds = array<i64: 256, 128>}]} {
    %c0 = arith.constant 0 : index
    %c0_0 = arith.constant 0 : index
    %0 = vector.load %arg1[%c0, %c0_0] : memref<256x128xf32, #tpu.memory_space<vmem>>, vector<256x128xf32>
    %1 = arith.truncf %0 : vector<256x128xf32> to vector<256x128xbf16>
    %c0_1 = arith.constant 0 : index
    %c0_2 = arith.constant 0 : index
    %2 = vector.load %arg2[%c0_1, %c0_2] : memref<128x512xbf16, #tpu.memory_space<vmem>>, vector<128x512xbf16>
    %cst = arith.constant dense<0.000000e+00> : vector<256x512xf32>
    %3 = tpu.matmul %1, %2, %cst {dimension_numbers = #tpu.dot_dimension_numbers<[1], [0], [0], [1], [0, 0, 1, 1], [], []>} : vector<256x128xbf16>, vector<128x512xbf16>, vector<256x512xf32> -> vector<256x512xf32>
    %c0_3 = arith.constant 0 : index
    %c0_4 = arith.constant 0 : index
    %4 = vector.load %arg3[%c0_3, %c0_4] : memref<128x512xbf16, #tpu.memory_space<vmem>>, vector<128x512xbf16>
    %cst_5 = arith.constant dense<0.000000e+00> : vector<256x512xf32>
    %5 = tpu.matmul %1, %4, %cst_5 {dimension_numbers = #tpu.dot_dimension_numbers<[1], [0], [0], [1], [0, 0, 1, 1], [], []>} : vector<256x128xbf16>, vector<128x512xbf16>, vector<256x512xf32> -> vector<256x512xf32>
    %6 = vector.extract_strided_slice %3 {offsets = [0, 0], sizes = [256, 128], strides = [1, 1]} : vector<256x512xf32> to vector<256x128xf32>
    %7 = arith.mulf %6, %0 : vector<256x128xf32>
    %cst_6 = arith.constant dense<0.000000e+00> : vector<256xf32>
    %8 = vector.multi_reduction <add>, %7, %cst_6 [1] : vector<256x128xf32> to vector<256xf32>
    %9 = vector.shape_cast %8 : vector<256xf32> to vector<256x1xf32>
    %c0_i32 = arith.constant 0 : i32
    %10 = vector.broadcast %c0_i32 : i32 to vector<256x1xi32>
    %11 = vector.extract_strided_slice %3 {offsets = [0, 128], sizes = [256, 128], strides = [1, 1]} : vector<256x512xf32> to vector<256x128xf32>
    %12 = arith.mulf %11, %0 : vector<256x128xf32>
    %cst_7 = arith.constant dense<0.000000e+00> : vector<256xf32>
    %13 = vector.multi_reduction <add>, %12, %cst_7 [1] : vector<256x128xf32> to vector<256xf32>
    %14 = vector.shape_cast %13 : vector<256xf32> to vector<256x1xf32>
    %15 = arith.cmpf olt, %14, %9 : vector<256x1xf32>
    %16 = arith.select %15, %14, %9 : vector<256x1xi1>, vector<256x1xf32>
    %c1_i32 = arith.constant 1 : i32
    %17 = vector.broadcast %c1_i32 : i32 to vector<256x1xi32>
    %18 = arith.select %15, %17, %10 : vector<256x1xi1>, vector<256x1xi32>
    %19 = vector.extract_strided_slice %3 {offsets = [0, 256], sizes = [256, 128], strides = [1, 1]} : vector<256x512xf32> to vector<256x128xf32>
    %20 = arith.mulf %19, %0 : vector<256x128xf32>
    %cst_8 = arith.constant dense<0.000000e+00> : vector<256xf32>
    %21 = vector.multi_reduction <add>, %20, %cst_8 [1] : vector<256x128xf32> to vector<256xf32>
    %22 = vector.shape_cast %21 : vector<256xf32> to vector<256x1xf32>
    %23 = arith.cmpf olt, %22, %16 : vector<256x1xf32>
    %24 = arith.select %23, %22, %16 : vector<256x1xi1>, vector<256x1xf32>
    %c2_i32 = arith.constant 2 : i32
    %25 = vector.broadcast %c2_i32 : i32 to vector<256x1xi32>
    %26 = arith.select %23, %25, %18 : vector<256x1xi1>, vector<256x1xi32>
    %27 = vector.extract_strided_slice %3 {offsets = [0, 384], sizes = [256, 128], strides = [1, 1]} : vector<256x512xf32> to vector<256x128xf32>
    %28 = arith.mulf %27, %0 : vector<256x128xf32>
    %cst_9 = arith.constant dense<0.000000e+00> : vector<256xf32>
    %29 = vector.multi_reduction <add>, %28, %cst_9 [1] : vector<256x128xf32> to vector<256xf32>
    %30 = vector.shape_cast %29 : vector<256xf32> to vector<256x1xf32>
    %31 = arith.cmpf olt, %30, %24 : vector<256x1xf32>
    %c3_i32 = arith.constant 3 : i32
    %32 = vector.broadcast %c3_i32 : i32 to vector<256x1xi32>
    %33 = arith.select %31, %32, %26 : vector<256x1xi1>, vector<256x1xi32>
    %34 = vector.extract_strided_slice %5 {offsets = [0, 0], sizes = [256, 128], strides = [1, 1]} : vector<256x512xf32> to vector<256x128xf32>
    %c1_i32_10 = arith.constant 1 : i32
    %35 = vector.broadcast %c1_i32_10 : i32 to vector<256x1xi32>
    %36 = arith.cmpi eq, %33, %35 : vector<256x1xi32>
    %37 = vector.extract_strided_slice %5 {offsets = [0, 128], sizes = [256, 128], strides = [1, 1]} : vector<256x512xf32> to vector<256x128xf32>
    %38 = vector.shape_cast %36 : vector<256x1xi1> to vector<256x1xi1>
    %39 = vector.broadcast %38 : vector<256x1xi1> to vector<256x128xi1>
    %40 = arith.select %39, %37, %34 : vector<256x128xi1>, vector<256x128xf32>
    %c2_i32_11 = arith.constant 2 : i32
    %41 = vector.broadcast %c2_i32_11 : i32 to vector<256x1xi32>
    %42 = arith.cmpi eq, %33, %41 : vector<256x1xi32>
    %43 = vector.extract_strided_slice %5 {offsets = [0, 256], sizes = [256, 128], strides = [1, 1]} : vector<256x512xf32> to vector<256x128xf32>
    %44 = vector.shape_cast %42 : vector<256x1xi1> to vector<256x1xi1>
    %45 = vector.broadcast %44 : vector<256x1xi1> to vector<256x128xi1>
    %46 = arith.select %45, %43, %40 : vector<256x128xi1>, vector<256x128xf32>
    %c3_i32_12 = arith.constant 3 : i32
    %47 = vector.broadcast %c3_i32_12 : i32 to vector<256x1xi32>
    %48 = arith.cmpi eq, %33, %47 : vector<256x1xi32>
    %49 = vector.extract_strided_slice %5 {offsets = [0, 384], sizes = [256, 128], strides = [1, 1]} : vector<256x512xf32> to vector<256x128xf32>
    %50 = vector.shape_cast %48 : vector<256x1xi1> to vector<256x1xi1>
    %51 = vector.broadcast %50 : vector<256x1xi1> to vector<256x128xi1>
    %52 = arith.select %51, %49, %46 : vector<256x128xi1>, vector<256x128xf32>
    %c0_13 = arith.constant 0 : index
    %c0_14 = arith.constant 0 : index
    %53 = vector.load %arg4[%c0_13, %c0_14] : memref<256x128xf32, #tpu.memory_space<vmem>>, vector<256x128xf32>
    tpu.vector_store %arg4[%c0_13, %c0_14], %52 {strides = array<i32>} : memref<256x128xf32, #tpu.memory_space<vmem>>, vector<256x128xf32>,
    return
  }
  func.func @transform_0(%arg0: i32) -> (i32, i32) {
    %c0_i32 = arith.constant 0 : i32
    %c0_i32_0 = arith.constant 0 : i32
    return %arg0, %c0_i32 : i32, i32
  }
  func.func @transform_1(%arg0: i32) -> (i32, i32) {
    %c0_i32 = arith.constant 0 : i32
    %c0_i32_0 = arith.constant 0 : i32
    %c0_i32_1 = arith.constant 0 : i32
    return %c0_i32, %c0_i32_0 : i32, i32
  }
  func.func @transform_2(%arg0: i32) -> (i32, i32) {
    %c0_i32 = arith.constant 0 : i32
    %c0_i32_0 = arith.constant 0 : i32
    %c0_i32_1 = arith.constant 0 : i32
    return %c0_i32, %c0_i32_0 : i32, i32
  }
  func.func @transform_3(%arg0: i32) -> (i32, i32) {
    %c0_i32 = arith.constant 0 : i32
    %c0_i32_0 = arith.constant 0 : i32
    return %arg0, %c0_i32 : i32, i32
  }
}

</mosaic_0001>

<llo_original>
// kernel: custom-call.17
$region0: #{custom-call.17}
  %s0 = inlined_call_operand.vmem [shape: f32[4,36,36], index: 0, kind: input, shape index: {}]
  %s1 = inlined_call_operand.vmem [shape: f32[4,36,36], index: 1, kind: output, shape index: {0}]
  %s2 = inlined_call_operand.hbm [shape: s32[4,36], index: 2, kind: output, shape index: {1}]
  %s3 = inlined_call_operand.vmem [shape: s32[4,36], index: 3, kind: output, shape index: {2}]
  %4 = xla_tuple %s1, %s2, %s3
  $region1: #{custom-call.17} parent=0
    #allocation0 [shape = 'u8[40960]{0}', space=vmem, size = 0xa000, scoped, tag = 'operand span for operand 0']
    #allocation1 [shape = 'u8[40960]{0}', space=vmem, size = 0xa000, scoped, tag = 'operand span for operand 1']
    #allocation2 [shape = 'u8[4096]{0}', space=vmem, size = 0x1000, scoped, tag = 'operand span for operand 2']
    #allocation3 [shape = 'u8[4096]{0}', space=vmem, size = 0x1000, scoped, tag = 'packed  for operand 2']
    #allocation4 [shape = 's32[2]{0}', space=sflag, size = 0x8, scoped, tag = 'scoped memory for custom-call.17']
    #allocation5 [shape = 'u8[4096]{0}', space=vmem, size = 0x1000, scoped, tag = 'operand span for operand 3']
    #allocation6 [shape = 'u8[4096]{0}', space=vmem, size = 0x1000, scoped, tag = 'packed  for operand 3']
    %5 = vsyncpa [#allocation4], 0
    %s6 = scalar_lea.sflag [#allocation4], 1
    %7 = vsyncpa %s6, 0
    loop: start=0, step=1, limit=6
    $region2: #{custom-call.17} parent=1 // loop_pre_header
      _
    $region3: #{custom-call.17} parent=1 // loop_header
      %s9 = sphi 0, %s13
      %p10 = scmp.ge.s32.totalorder %s9, 6
      %s21 = sphi 0, %s23
      %s24 = sphi 0, %s21
      %s25 = sphi 0, %s24
      %s41 = sphi 0, %s25
      %s49 = sphi 0, %s51
      %s52 = sphi 0, %s49
      %s53 = sphi 0, %s52
      %s69 = sphi 0, %s53
    $region4: #{custom-call.17} parent=1 // loop_header_branch
      %12 = sbr.rel (%p10) target = $region8
    $region5: #{custom-call.17} parent=1 // loop_body
      %s14 = ssub.s32 %s9, 1
      %s15 = ssub.s32 %s9, 2
      %s16 = sadd.s32 %s9, 1
      %s17 = sshrl.u32 %s9, 3
      %s18 = sshrl.u32 %s16, 3
      %s19 = ssub.s32 %s17, %s18
      %p20 = scmp.eq.s32.totalorder %s19, 0
      %s22 = sadd.s32 %s21, 1
      %s23 = scalar_select %p20, %s21, %s22
      %p26 = pneg %p20
      %p27 = scmp.eq.s32.totalorder %s9, 3
      %p28 = por %p26, %p27
      %p29 = scmp.ne.s32.totalorder %s21, %s24
      %p30 = scmp.eq.s32.totalorder %s9, 0
      %p31 = por %p29, %p30
      %p32 = scmp.ne.s32.totalorder %s21, %s24
      %p33 = scmp.eq.s32.totalorder %s14, 3
      %p34 = por %p32, %p33
      %p35 = scmp.ne.s32.totalorder %s24, %s25
      %p36 = scmp.eq.s32.totalorder %s14, 0
      %p37 = por %p35, %p36
      %p38 = scmp.ne.s32.totalorder %s24, %s25
      %p39 = scmp.eq.s32.totalorder %s15, 3
      %p40 = por %p38, %p39
      %p42 = scmp.ne.s32.totalorder %s25, %s41
      %p43 = scmp.eq.s32.totalorder %s15, 0
      %p44 = por %p42, %p43
      %s45 = sshrl.u32 %s9, 3
      %s46 = sshrl.u32 %s16, 3
      %s47 = ssub.s32 %s45, %s46
      %p48 = scmp.eq.s32.totalorder %s47, 0
      %s50 = sadd.s32 %s49, 1
      %s51 = scalar_select %p48, %s49, %s50
      %p54 = pneg %p48
      %p55 = scmp.eq.s32.totalorder %s9, 3
      %p56 = por %p54, %p55
      %p57 = scmp.ne.s32.totalorder %s49, %s52
      %p58 = scmp.eq.s32.totalorder %s9, 0
      %p59 = por %p57, %p58
      %p60 = scmp.ne.s32.totalorder %s49, %s52
      %p61 = scmp.eq.s32.totalorder %s14, 3
      %p62 = por %p60, %p61
      %p63 = scmp.ne.s32.totalorder %s52, %s53
      %p64 = scmp.eq.s32.totalorder %s14, 0
      %p65 = por %p63, %p64
      %p66 = scmp.ne.s32.totalorder %s52, %s53
      %p67 = scmp.eq.s32.totalorder %s15, 3
      %p68 = por %p66, %p67
      %p70 = scmp.ne.s32.totalorder %s53, %s69
      %p71 = scmp.eq.s32.totalorder %s15, 0
      %p72 = por %p70, %p71
      %p73 = scmp.le.s32.totalorder 1, %s9
      %p74 = scmp.lt.s32.totalorder %s9, 5
      %p75 = pnand %p73, %p74
      %p76 = pneg %p75
      // Predicated region
      $region9: #{custom-call.17} parent=5 // pred_check
        _
      $region10: #{custom-call.17} parent=5 // pred_check_branch
        %78 = sbr.rel (%p75) target = $region12
      $region11: #{custom-call.17} parent=5 // pred_region
        %s79 = ssub.s32 %s9, 1
      $region12: #{custom-call.17} parent=5 // pred_fallthru
        _
      %p80 = scmp.lt.s32.totalorder %s9, 4
      // Predicated region
      $region13: #{custom-call.17} parent=5 // pred_check
        %p81 = pneg %p80
      $region14: #{custom-call.17} parent=5 // pred_check_branch
        %83 = sbr.rel (%p81) target = $region16
      $region15: #{custom-call.17} parent=5 // pred_region
        %s84 = sand.u32 %s9, 1
        %s85 = sand.u32 %s9, 1
        %s86 = smul.addr %s85, 40
        %s87 = scalar_lea.vmem [#allocation0], %s86
        %s88 = smul.addr %s9, 40
        %s89 = scalar_lea.vmem %s0, %s88
        // Predicated region
        $region17: #{custom-call.17} parent=15 // pred_check
          _
        $region18: #{custom-call.17} parent=15 // pred_check_branch
          %91 = sbr.rel (0) target = $region20
        $region19: #{custom-call.17} parent=15 // pred_region
          // Predicated region
          $region21: #{custom-call.17} parent=19 // pred_check
            _
          $region22: #{custom-call.17} parent=19 // pred_check_branch
            %93 = sbr.rel (0) target = $region24
          $region23: #{custom-call.17} parent=19 // pred_region
            loop: start=0, step=1, limit=1
            $region25: #{custom-call.17} parent=23 // loop_pre_header
              _
            $region26: #{custom-call.17} parent=23 // loop_header
              %s95 = sphi 0, %s99
              %p96 = scmp.ge.s32.totalorder %s95, 1
              %s100 = sphi %s89, %s89
              %s101 = sphi %s87, %s87
            $region27: #{custom-call.17} parent=23 // loop_header_branch
              %98 = sbr.rel (%p96) target = $region31
            $region28: #{custom-call.17} parent=23 // loop_body
              %v102 = vld [vmem:[%s100] sm:$0xff]
              %103 = vst [vmem:[%s101] sm:$0xff] %v102
              %v104 = vld [vmem:[%s100 + $0x8] sm:$0xff]
              %105 = vst [vmem:[%s101 + $0x8] sm:$0xff] %v104
              %v106 = vld [vmem:[%s100 + $0x10] sm:$0xff]
              %107 = vst [vmem:[%s101 + $0x10] sm:$0xff] %v106
              %v108 = vld [vmem:[%s100 + $0x18] sm:$0xff]
              %109 = vst [vmem:[%s101 + $0x18] sm:$0xff] %v108
              %v110 = vld [vmem:[%s100 + $0x20] sm:$0xff]
              %111 = vst [vmem:[%s101 + $0x20] sm:$0xff] %v110
            $region29: #{custom-call.17} parent=23 // loop_footer
              %s99 = sadd.s32 1, %s95
            $region30: #{custom-call.17} parent=23 // loop_footer_branch
              %94 = sbr.rel target = $region26
            $region31: #{custom-call.17} parent=23 // loop_exit
              _
          $region24: #{custom-call.17} parent=19 // pred_fallthru
            _
          // Predicated region
          $region32: #{custom-call.17} parent=19 // pred_check
            _
          $region33: #{custom-call.17} parent=19 // pred_check_branch
            %113 = sbr.rel target = $region35
          $region34: #{custom-call.17} parent=19 // pred_region
            _
          $region35: #{custom-call.17} parent=19 // pred_fallthru
            _
        $region20: #{custom-call.17} parent=15 // pred_fallthru
          _
        %114 = vnop
      $region16: #{custom-call.17} parent=5 // pred_fallthru
        _
      %p115 = scmp.le.s32.totalorder 1, %s9
      %p116 = scmp.lt.s32.totalorder %s9, 5
      %p117 = pnand %p115, %p116
      %p118 = pneg %p117
      // Predicated region
      $region36: #{custom-call.17} parent=5 // pred_check
        _
      $region37: #{custom-call.17} parent=5 // pred_check_branch
        %120 = sbr.rel (%p117) target = $region39
      $region38: #{custom-call.17} parent=5 // pred_region
        #allocation7 [shape = 's32[36,128]{1,0}', space=vmem, size = 0x5000, scoped, tag = 'scratch for permutations']
        %s121 = ssub.s32 %s9, 1
        %s122 = sand.u32 %s14, 1
        %s123 = sand.u32 %s14, 1
        %s124 = smul.addr %s123, 40
        %s125 = scalar_lea.vmem [#allocation0], %s124
        %s126 = sand.u32 %s14, 1
        %s127 = sand.u32 %s14, 1
        %s128 = smul.addr %s127, 40
        %s129 = scalar_lea.vmem [#allocation0], %s128
        %s130 = sand.u32 %s14, 1
        %s131 = sand.u32 %s14, 1
        %s132 = smul.addr %s131, 40
        %s133 = scalar_lea.vmem [#allocation1], %s132
        %p134 = pneg %p37
        %p135 = pneg %p34
        %s136 = sand.u32 %s24, 1
        %s137 = scalar_lea.sflag [#allocation4], %s136
        %s138 = sand.u32 %s24, 1
        %s139 = smul.addr %s138, 4
        %s140 = scalar_lea.vmem [#allocation3], %s139
        %p141 = pneg %p65
        %p142 = pneg %p62
        %s143 = sand.u32 %s52, 1
        %s144 = sand.u32 %s52, 1
        %s145 = smul.addr %s144, 4
        %s146 = scalar_lea.vmem [#allocation6], %s145
        %s147 = sshrl.u32 %s14, 3
        %s148 = sshrl.u32 %s14, 3
        %v149 = vld [vmem:[%s125] sm:$0xff]
        %150 = vst [vmem:[%s133] sm:$0xff] %v149
        %s151 = scalar_lea.vmem %s133, 8 [#allocation1]
        %s152 = scalar_lea.vmem %s125, 8 [#allocation0]
        %v153 = vld [vmem:[%s152] sm:$0xff]
        %154 = vst [vmem:[%s151] sm:$0xff] %v153
        %s155 = scalar_lea.vmem %s133, 16 [#allocation1]
        %s156 = scalar_lea.vmem %s125, 16 [#allocation0]
        %v157 = vld [vmem:[%s156] sm:$0xff]
        %158 = vst [vmem:[%s155] sm:$0xff] %v157
        %s159 = scalar_lea.vmem %s133, 24 [#allocation1]
        %s160 = scalar_lea.vmem %s125, 24 [#allocation0]
        %v161 = vld [vmem:[%s160] sm:$0xff]
        %162 = vst [vmem:[%s159] sm:$0xff] %v161
        %s163 = scalar_lea.vmem %s133, 32 [#allocation1]
        %s164 = scalar_lea.vmem %s125, 32 [#allocation0]
        %v165 = vld [vmem:[%s164] sm:$0xff]
        %166 = vst [vmem:[%s163] sm:$0xff] %v165
        %s167 = sand.u32 %s14, 7
        %s168 = scalar_lea.vmem [#allocation2], %s167
        %s169 = sand.u32 %s14, 7
        %s170 = scalar_lea.vmem [#allocation5], %s169
        %171 = vst [vmem:[%s168] sm:$0x1] 0
        %v172 = vlaneseq
        %v173 = vshrl.u32 %v172, 7
        %v174 = vmov %v173
        loop: start=0, step=1, limit=5
        $region40: #{custom-call.17} parent=38 // loop_pre_header
          _
        $region41: #{custom-call.17} parent=38 // loop_header
          %s176 = sphi 0, %s180
          %p177 = scmp.ge.s32.totalorder %s176, 5
        $region42: #{custom-call.17} parent=38 // loop_header_branch
          %179 = sbr.rel (%p177) target = $region46
        $region43: #{custom-call.17} parent=38 // loop_body
          %s181 = smul.addr %s176, 8
          %s182 = scalar_lea.vmem [#allocation7], %s181
          %s183 = smul.u32 %s176, 8
          %v184 = vstv %s183
          %v185 = vadd.s32 %v174, %v184
          %186 = vst [vmem:[%s182] sm:$0xff] %v185
        $region44: #{custom-call.17} parent=38 // loop_footer
          %s180 = sadd.s32 1, %s176
        $region45: #{custom-call.17} parent=38 // loop_footer_branch
          %175 = sbr.rel target = $region41
        $region46: #{custom-call.17} parent=38 // loop_exit
          _
        loop: start=0, step=1, limit=36
        $region47: #{custom-call.17} parent=38 // loop_pre_header
          _
        $region48: #{custom-call.17} parent=38 // loop_header
          %s188 = sphi 0, %s192
          %p189 = scmp.ge.s32.totalorder %s188, 36
        $region49: #{custom-call.17} parent=38 // loop_header_branch
          %191 = sbr.rel (%p189) target = $region53
        $region50: #{custom-call.17} parent=38 // loop_body
          %v193 = vstv %s188
          %v194 = vlaneseq
          %v195 = vshrl.u32 %v194, 7
          %v196 = vmov %v195
          %v197 = vld [vmem:[%s133] sm:$0xff]
          %v198 = vand.u32 2147483647, %v197
          %v200 = vstv %s188
          %vm201 = vcmp.ge.s32.totalorder %v196, %v200
          %vm202 = vcmp.lt.s32.totalorder %v196, 36
          %vm203 = vmand %vm201, %vm202
          %vm204 = vcmp.lt.f32.partialorder -inf, %v198
          %vm205 = vmand %vm203, %vm204
          %v206 = vsel %vm205, %v196, %v193
          %v207 = vsel %vm205, %v198, -inf
          %s208 = scalar_lea.vmem %s133, 8 [#allocation1]
          %v209 = vld [vmem:[%s208] sm:$0xff]
          %v210 = vand.u32 2147483647, %v209
          %v211 = vadd.s32 %v196, 8
          %v212 = vstv %s188
          %vm213 = vcmp.ge.s32.totalorder %v211, %v212
          %vm214 = vcmp.lt.s32.totalorder %v211, 36
          %vm215 = vmand %vm213, %vm214
          %vm216 = vcmp.lt.f32.partialorder %v207, %v210
          %vm217 = vmand %vm215, %vm216
          %v218 = vsel %vm217, %v211, %v206
          %v219 = vsel %vm217, %v210, %v207
          %s220 = scalar_lea.vmem %s133, 16 [#allocation1]
          %v221 = vld [vmem:[%s220] sm:$0xff]
          %v222 = vand.u32 2147483647, %v221
          %v223 = vadd.s32 %v196, 16
          %v224 = vstv %s188
          %vm225 = vcmp.ge.s32.totalorder %v223, %v224
          %vm226 = vcmp.lt.s32.totalorder %v223, 36
          %vm227 = vmand %vm225, %vm226
          %vm228 = vcmp.lt.f32.partialorder %v219, %v222
          %vm229 = vmand %vm227, %vm228
          %v230 = vsel %vm229, %v223, %v218
          %v231 = vsel %vm229, %v222, %v219
          %s232 = scalar_lea.vmem %s133, 24 [#allocation1]
          %v233 = vld [vmem:[%s232] sm:$0xff]
          %v234 = vand.u32 2147483647, %v233
          %v235 = vadd.s32 %v196, 24
          %v236 = vstv %s188
          %vm237 = vcmp.ge.s32.totalorder %v235, %v236
          %vm238 = vcmp.lt.s32.totalorder %v235, 36
          %vm239 = vmand %vm237, %vm238
          %vm240 = vcmp.lt.f32.partialorder %v231, %v234
          %vm241 = vmand %vm239, %vm240
          %v242 = vsel %vm241, %v235, %v230
          %v243 = vsel %vm241, %v234, %v231
          %s244 = scalar_lea.vmem %s133, 32 [#allocation1]
          %v245 = vld [vmem:[%s244] sm:$0xff]
          %v246 = vand.u32 2147483647, %v245
          %v247 = vadd.s32 %v196, 32
          %v248 = vstv %s188
          %vm249 = vcmp.ge.s32.totalorder %v247, %v248
          %vm250 = vcmp.lt.s32.totalorder %v247, 36
          %vm251 = vmand %vm249, %vm250
          %vm252 = vcmp.lt.f32.partialorder %v243, %v246
          %vm253 = vmand %vm251, %vm252
          %v254 = vsel %vm253, %v247, %v242
          %v255 = vsel %vm253, %v246, %v243
          %v256 = vrot.slane %v255, 1
          %v257 = vrot.slane %v254, 1
          %vm258 = vcmp.ge.f32.partialorder %v256, %v255
          %v259 = vsel %vm258, %v256, %v255
          %v260 = vsel %vm258, %v257, %v254
          %v261 = vrot.slane %v256, 1
          %v262 = vrot.slane %v257, 1
          %vm263 = vcmp.ge.f32.partialorder %v261, %v259
          %v264 = vsel %vm263, %v261, %v259
          %v265 = vsel %vm263, %v262, %v260
          %v266 = vrot.slane %v261, 1
          %v267 = vrot.slane %v262, 1
          %vm268 = vcmp.ge.f32.partialorder %v266, %v264
          %v269 = vsel %vm268, %v266, %v264
          %v270 = vsel %vm268, %v267, %v265
          %v271 = vrot.slane %v266, 1
          %v272 = vrot.slane %v267, 1
          %vm273 = vcmp.ge.f32.partialorder %v271, %v269
          %v274 = vsel %vm273, %v271, %v269
          %v275 = vsel %vm273, %v272, %v270
          %v276 = vrot.slane %v271, 1
          %v277 = vrot.slane %v272, 1
          %vm278 = vcmp.ge.f32.partialorder %v276, %v274
          %v279 = vsel %vm278, %v276, %v274
          %v280 = vsel %vm278, %v277, %v275
          %v281 = vrot.slane %v276, 1
          %v282 = vrot.slane %v277, 1
          %vm283 = vcmp.ge.f32.partialorder %v281, %v279
          %v284 = vsel %vm283, %v281, %v279
          %v285 = vsel %vm283, %v282, %v280
          %v286 = vrot.slane %v281, 1
          %v287 = vrot.slane %v282, 1
          %vm288 = vcmp.ge.f32.partialorder %v286, %v284
          %v289 = vsel %vm288, %v286, %v284
          %v290 = vsel %vm288, %v287, %v285
          %s291 = ssub.s32 128, %s188
          %292 = vrot.lane.b32.xlu0 %v290, %s291
          %v293 = vpop.permute.xlu0 %292
          %s294 = vtos %v293
          %v295 = vstv %s188
          %v296 = vlaneseq
          %v297 = vand.u32 %v296, 127
          %vm298 = vcmp.eq.s32.totalorder %v297, %v295
          %v299 = vstv %s294
          %v300 = vld [vmem:[%s168] ss:$0 sm:$0xff]
          %v301 = vsel %vm298, %v299, %v300
          %302 = vst [vmem:[%s168] sm:$0x1] %v301
          %s303 = scalar_lea.vmem %s133, %s188 [#allocation1]
          %s304 = scalar_lea.vmem %s133, %s294 [#allocation1]
          %v305 = vld [vmem:[%s303] ss:$0 sm:$0xff]
          %v306 = vld [vmem:[%s304] ss:$0 sm:$0xff]
          %307 = vst [vmem:[%s304] sm:$0x1] %v305
          %308 = vst [vmem:[%s303] sm:$0x1] %v306
          %s309 = scalar_lea.vmem [#allocation7], %s188
          %s310 = scalar_lea.vmem [#allocation7], %s294
          %v311 = vld [vmem:[%s309] ss:$0 sm:$0xff]
          %v312 = vld [vmem:[%s310] ss:$0 sm:$0xff]
          %313 = vst [vmem:[%s310] sm:$0x1] %v311
          %314 = vst [vmem:[%s309] sm:$0x1] %v312
          %vm315 = vcmp.ne.f32.partialorder %v306, 0.0
          %vm316 = vmand %vm298, %vm315
          %v317 = vsel %vm316, %v306, 1.0
          %v318 = vlaneseq
          %v319 = vand.u32 %v318, 127
          %v320 = vstv %s188
          %vm321 = vcmp.gt.s32.totalorder %v319, %v320
          %v322 = vsel %vm321, %v306, 0.0
          %v323 = vlaneseq
          %v324 = vshrl.u32 %v323, 7
          %v325 = vmov %v324
          %v326 = vld [vmem:[%s133] sm:$0xff]
          %v328 = vstv %s188
          %vm329 = vcmp.gt.s32.totalorder %v325, %v328
          %v330 = vsel %vm329, %v317, 1.0
          %v331 = vrcp.pop %v330
          %v332 = vmul.f32 %v326, %v331
          %vm333 = vmand %vm329, %vm298
          %v334 = vsel %vm333, %v332, 0.0
          %335 = vadd.xlane.f32.xlu0 %v334
          %v336 = vpop.xlane.xlu0 %335
          %v337 = vmul.f32 %v336, %v322
          %v338 = vsub.f32 %v332, %v337
          %339 = vst [vmem:[%s133] sm:$0xff] %v338
          %s340 = scalar_lea.vmem %s133, 8 [#allocation1]
          %v341 = vld [vmem:[%s340] sm:$0xff]
          %v342 = vadd.s32 %v325, 8
          %v343 = vstv %s188
          %vm344 = vcmp.gt.s32.totalorder %v342, %v343
          %v345 = vsel %vm344, %v317, 1.0
          %v346 = vrcp.pop %v345
          %v347 = vmul.f32 %v341, %v346
          %vm348 = vmand %vm344, %vm298
          %v349 = vsel %vm348, %v347, 0.0
          %350 = vadd.xlane.f32.xlu0 %v349
          %v351 = vpop.xlane.xlu0 %350
          %v352 = vmul.f32 %v351, %v322
          %v353 = vsub.f32 %v347, %v352
          %354 = vst [vmem:[%s340] sm:$0xff] %v353
          %s355 = scalar_lea.vmem %s133, 16 [#allocation1]
          %v356 = vld [vmem:[%s355] sm:$0xff]
          %v357 = vadd.s32 %v325, 16
          %v358 = vstv %s188
          %vm359 = vcmp.gt.s32.totalorder %v357, %v358
          %v360 = vsel %vm359, %v317, 1.0
          %v361 = vrcp.pop %v360
          %v362 = vmul.f32 %v356, %v361
          %vm363 = vmand %vm359, %vm298
          %v364 = vsel %vm363, %v362, 0.0
          %365 = vadd.xlane.f32.xlu0 %v364
          %v366 = vpop.xlane.xlu0 %365
          %v367 = vmul.f32 %v366, %v322
          %v368 = vsub.f32 %v362, %v367
          %369 = vst [vmem:[%s355] sm:$0xff] %v368
          %s370 = scalar_lea.vmem %s133, 24 [#allocation1]
          %v371 = vld [vmem:[%s370] sm:$0xff]
          %v372 = vadd.s32 %v325, 24
          %v373 = vstv %s188
          %vm374 = vcmp.gt.s32.totalorder %v372, %v373
          %v375 = vsel %vm374, %v317, 1.0
          %v376 = vrcp.pop %v375
          %v377 = vmul.f32 %v371, %v376
          %vm378 = vmand %vm374, %vm298
          %v379 = vsel %vm378, %v377, 0.0
          %380 = vadd.xlane.f32.xlu0 %v379
          %v381 = vpop.xlane.xlu0 %380
          %v382 = vmul.f32 %v381, %v322
          %v383 = vsub.f32 %v377, %v382
          %384 = vst [vmem:[%s370] sm:$0xff] %v383
          %s385 = scalar_lea.vmem %s133, 32 [#allocation1]
          %v386 = vld [vmem:[%s385] sm:$0xff]
          %v387 = vadd.s32 %v325, 32
          %v388 = vstv %s188
          %vm389 = vcmp.gt.s32.totalorder %v387, %v388
          %v390 = vsel %vm389, %v317, 1.0
          %v391 = vrcp.pop %v390
          %v392 = vmul.f32 %v386, %v391
          %vm393 = vmand %vm389, %vm298
          %v394 = vsel %vm393, %v392, 0.0
          %395 = vadd.xlane.f32.xlu0 %v394
          %v396 = vpop.xlane.xlu0 %395
          %v397 = vmul.f32 %v396, %v322
          %v398 = vsub.f32 %v392, %v397
          %399 = vst [vmem:[%s385] sm:$0xff] %v398
        $region51: #{custom-call.17} parent=38 // loop_footer
          %s192 = sadd.s32 1, %s188
        $region52: #{custom-call.17} parent=38 // loop_footer_branch
          %187 = sbr.rel target = $region48
        $region53: #{custom-call.17} parent=38 // loop_exit
          _
        %v400 = vld [vmem:[#allocation7] sm:$0xff]
        %s401 = scalar_lea.vmem [#allocation7], 8
        %v402 = vld [vmem:[%s401] sm:$0xff]
        %s403 = scalar_lea.vmem [#allocation7], 16
        %v404 = vld [vmem:[%s403] sm:$0xff]
        %s405 = scalar_lea.vmem [#allocation7], 24
        %v406 = vld [vmem:[%s405] sm:$0xff]
        %s407 = scalar_lea.vmem [#allocation7], 32
        %v408 = vld [vmem:[%s407] sm:$0xff]
        %s409 = scalar_lea.vmem [#allocation7], 40
        %s410 = scalar_lea.vmem [#allocation7], 48
        %s411 = scalar_lea.vmem [#allocation7], 56
        %s412 = scalar_lea.vmem [#allocation7], 64
        %s413 = scalar_lea.vmem [#allocation7], 72
        %s414 = scalar_lea.vmem [#allocation7], 80
        %s415 = scalar_lea.vmem [#allocation7], 88
        %s416 = scalar_lea.vmem [#allocation7], 96
        %s417 = scalar_lea.vmem [#allocation7], 104
        %s418 = scalar_lea.vmem [#allocation7], 112
        %s419 = scalar_lea.vmem [#allocation7], 120
        %420 = vxpose.xlu0.b32.start [1/16] %v400, 128
        %421 = vxpose.xlu0.b32.cont [2/16] %v402, 128
        %422 = vxpose.xlu0.b32.cont [3/16] %v404, 128
        %423 = vxpose.xlu0.b32.cont [4/16] %v406, 128
        %424 = vxpose.xlu0.b32.cont [5/16] %v408, 128
        %425 = vxpose.xlu0.b32.cont [6/16] 0, 128
        %426 = vxpose.xlu0.b32.cont [7/16] 0, 128
        %427 = vxpose.xlu0.b32.cont [8/16] 0, 128
        %428 = vxpose.xlu0.b32.cont [9/16] 0, 128
        %429 = vxpose.xlu0.b32.cont [10/16] 0, 128
        %430 = vxpose.xlu0.b32.cont [11/16] 0, 128
        %431 = vxpose.xlu0.b32.cont [12/16] 0, 128
        %432 = vxpose.xlu0.b32.cont [13/16] 0, 128
        %433 = vxpose.xlu0.b32.cont [14/16] 0, 128
        %434 = vxpose.xlu0.b32.cont [15/16] 0, 128
        %435 = vxpose.xlu0.b32.end [16/16] 0, 128
        %v436 = vpop.trf.xlu0
        %v437 = vpop.trf.xlu0
        %v438 = vpop.trf.xlu0
        %v439 = vpop.trf.xlu0
        %v440 = vpop.trf.xlu0
        %v441 = vpop.trf.xlu0
        %v442 = vpop.trf.xlu0
        %v443 = vpop.trf.xlu0
        %v444 = vpop.trf.xlu0
        %v445 = vpop.trf.xlu0
        %v446 = vpop.trf.xlu0
        %v447 = vpop.trf.xlu0
        %v448 = vpop.trf.xlu0
        %v449 = vpop.trf.xlu0
        %v450 = vpop.trf.xlu0
        %v451 = vpop.trf.xlu0
        %452 = vst [vmem:[%s170] sm:$0x1] %v436
        %s454 = sshll.u32 1, 4
        %s455 = ssub.s32 %s454, 1
        %v457 = vld [vmem:[#allocation2] sm:%s455]
        %s458 = sshll.u32 1, 4
        %s459 = ssub.s32 %s458, 1
        %460 = vst [vmem:[%s140] sm:%s459] %v457
        %s462 = sshll.u32 1, 4
        %s463 = ssub.s32 %s462, 1
        %v465 = vld [vmem:[#allocation5] sm:%s463]
        %s466 = sshll.u32 1, 4
        %s467 = ssub.s32 %s466, 1
        %468 = vst [vmem:[%s146] sm:%s467] %v465
        %s469 = sand.u32 %s14, 1
        %s470 = sand.u32 %s14, 1
        %s471 = smul.addr %s470, 40
        %s472 = scalar_lea.vmem [#allocation1], %s471
        %s473 = sand.u32 %s24, 1
        %s474 = scalar_lea.sflag [#allocation4], %s473
        %s475 = sand.u32 %s24, 1
        %s476 = smul.addr %s475, 4
        %s477 = scalar_lea.vmem [#allocation3], %s476
        %s478 = sand.u32 %s52, 1
        %s479 = sand.u32 %s52, 1
        %s480 = smul.addr %s479, 4
        %s481 = scalar_lea.vmem [#allocation6], %s480
        %s482 = smul.addr %s14, 40
        %s483 = scalar_lea.vmem %s1, %s482
        // Predicated region
        $region54: #{custom-call.17} parent=38 // pred_check
          _
        $region55: #{custom-call.17} parent=38 // pred_check_branch
          %485 = sbr.rel (0) target = $region57
        $region56: #{custom-call.17} parent=38 // pred_region
          // Predicated region
          $region58: #{custom-call.17} parent=56 // pred_check
            _
          $region59: #{custom-call.17} parent=56 // pred_check_branch
            %487 = sbr.rel (0) target = $region61
          $region60: #{custom-call.17} parent=56 // pred_region
            loop: start=0, step=1, limit=1
            $region62: #{custom-call.17} parent=60 // loop_pre_header
              _
            $region63: #{custom-call.17} parent=60 // loop_header
              %s489 = sphi 0, %s493
              %p490 = scmp.ge.s32.totalorder %s489, 1
              %s494 = sphi %s472, %s472
              %s495 = sphi %s483, %s483
            $region64: #{custom-call.17} parent=60 // loop_header_branch
              %492 = sbr.rel (%p490) target = $region68
            $region65: #{custom-call.17} parent=60 // loop_body
              %v496 = vld [vmem:[%s494] sm:$0xff]
              %497 = vst [vmem:[%s495] sm:$0xff] %v496
              %v498 = vld [vmem:[%s494 + $0x8] sm:$0xff]
              %499 = vst [vmem:[%s495 + $0x8] sm:$0xff] %v498
              %v500 = vld [vmem:[%s494 + $0x10] sm:$0xff]
              %501 = vst [vmem:[%s495 + $0x10] sm:$0xff] %v500
              %v502 = vld [vmem:[%s494 + $0x18] sm:$0xff]
              %503 = vst [vmem:[%s495 + $0x18] sm:$0xff] %v502
              %v504 = vld [vmem:[%s494 + $0x20] sm:$0xff]
              %505 = vst [vmem:[%s495 + $0x20] sm:$0xff] %v504
            $region66: #{custom-call.17} parent=60 // loop_footer
              %s493 = sadd.s32 1, %s489
            $region67: #{custom-call.17} parent=60 // loop_footer_branch
              %488 = sbr.rel target = $region63
            $region68: #{custom-call.17} parent=60 // loop_exit
              _
          $region61: #{custom-call.17} parent=56 // pred_fallthru
            _
          // Predicated region
          $region69: #{custom-call.17} parent=56 // pred_check
            _
          $region70: #{custom-call.17} parent=56 // pred_check_branch
            %507 = sbr.rel target = $region72
          $region71: #{custom-call.17} parent=56 // pred_region
            _
          $region72: #{custom-call.17} parent=56 // pred_fallthru
            _
        $region57: #{custom-call.17} parent=38 // pred_fallthru
          _
        %508 = vnop
        // Predicated region
        $region73: #{custom-call.17} parent=38 // pred_check
          %p509 = pneg %p34
        $region74: #{custom-call.17} parent=38 // pred_check_branch
          %511 = sbr.rel (%p509) target = $region76
        $region75: #{custom-call.17} parent=38 // pred_region
          %s512 = sshrl.u32 %s14, 3
          %s514 = ssub.s32 64, 64
          %515 = vsyncadd %s474, %s514
          %s516 = smul.addr %s512, 64
          %s517 = scalar_lea.hbm %s2, %s516
          %s519 = sshll.u32 %s477, 4
          %s520 = int_to_ptr.vmem [resolvable:$true] %s519
          %522 = dma.vmem_to_hbm [thread:$0]  %s520, 64, %s517, %s474
        $region76: #{custom-call.17} parent=38 // pred_fallthru
          _
        // Predicated region
        $region77: #{custom-call.17} parent=38 // pred_check
          %p523 = pneg %p62
        $region78: #{custom-call.17} parent=38 // pred_check_branch
          %525 = sbr.rel (%p523) target = $region80
        $region79: #{custom-call.17} parent=38 // pred_region
          %s526 = sshrl.u32 %s14, 3
          %s527 = smul.addr %s526, 4
          %s528 = scalar_lea.vmem %s3, %s527
          // Predicated region
          $region81: #{custom-call.17} parent=79 // pred_check
            _
          $region82: #{custom-call.17} parent=79 // pred_check_branch
            %530 = sbr.rel (0) target = $region84
          $region83: #{custom-call.17} parent=79 // pred_region
            // Predicated region
            $region85: #{custom-call.17} parent=83 // pred_check
              _
            $region86: #{custom-call.17} parent=83 // pred_check_branch
              %532 = sbr.rel target = $region88
            $region87: #{custom-call.17} parent=83 // pred_region
              // Predicated region
              $region100: #{custom-call.17} parent=87 // pred_check
                _
              $region101: #{custom-call.17} parent=87 // pred_check_branch
                %548 = sbr.rel (0) target = $region103
              $region102: #{custom-call.17} parent=87 // pred_region
                %s550 = ssub.s32 16, 1
                loop: start=0, step=1, limit=1
                $region104: #{custom-call.17} parent=102 // loop_pre_header
                  _
                $region105: #{custom-call.17} parent=102 // loop_header
                  %s552 = sphi 0, %s556
                  %p553 = scmp.ge.s32.totalorder %s552, 1
                  %s557 = sphi %s481, %s481
                  %s558 = sphi %s528, %s528
                $region106: #{custom-call.17} parent=102 // loop_header_branch
                  %555 = sbr.rel (%p553) target = $region110
                $region107: #{custom-call.17} parent=102 // loop_body
                  %v559 = vld [vmem:[%s557] sm:%s550]
                  %560 = vst [vmem:[%s558] sm:%s550] %v559
                $region108: #{custom-call.17} parent=102 // loop_footer
                  %s556 = sadd.s32 1, %s552
                $region109: #{custom-call.17} parent=102 // loop_footer_branch
                  %551 = sbr.rel target = $region105
                $region110: #{custom-call.17} parent=102 // loop_exit
                  _
              $region103: #{custom-call.17} parent=87 // pred_fallthru
                _
            $region88: #{custom-call.17} parent=83 // pred_fallthru
              _
            // Predicated region
            $region89: #{custom-call.17} parent=83 // pred_check
              _
            $region90: #{custom-call.17} parent=83 // pred_check_branch
              %534 = sbr.rel (0) target = $region92
            $region91: #{custom-call.17} parent=83 // pred_region
              %s536 = ssub.s32 16, 1
              loop: start=0, step=1, limit=1
              $region93: #{custom-call.17} parent=91 // loop_pre_header
                _
              $region94: #{custom-call.17} parent=91 // loop_header
                %s538 = sphi 0, %s542
                %p539 = scmp.ge.s32.totalorder %s538, 1
                %s543 = sphi %s481, %s481
                %s544 = sphi %s528, %s528
              $region95: #{custom-call.17} parent=91 // loop_header_branch
                %541 = sbr.rel (%p539) target = $region99
              $region96: #{custom-call.17} parent=91 // loop_body
                %v545 = vld [vmem:[%s543] sm:%s536]
                %546 = vst [vmem:[%s544] sm:%s536] %v545
              $region97: #{custom-call.17} parent=91 // loop_footer
                %s542 = sadd.s32 1, %s538
              $region98: #{custom-call.17} parent=91 // loop_footer_branch
                %537 = sbr.rel target = $region94
              $region99: #{custom-call.17} parent=91 // loop_exit
                _
            $region92: #{custom-call.17} parent=83 // pred_fallthru
              _
          $region84: #{custom-call.17} parent=79 // pred_fallthru
            _
          %561 = vnop
        $region80: #{custom-call.17} parent=38 // pred_fallthru
          _
      $region39: #{custom-call.17} parent=5 // pred_fallthru
        _
      %p562 = scmp.le.s32.totalorder 2, %s9
      // Predicated region
      $region111: #{custom-call.17} parent=5 // pred_check
        %p563 = pneg %p562
      $region112: #{custom-call.17} parent=5 // pred_check_branch
        %565 = sbr.rel (%p563) target = $region114
      $region113: #{custom-call.17} parent=5 // pred_region
        %s566 = ssub.s32 %s9, 2
        %s567 = sand.u32 %s15, 1
        %s568 = sand.u32 %s15, 1
        %s569 = smul.addr %s568, 40
        %s570 = scalar_lea.vmem [#allocation1], %s569
        // Predicated region
        $region115: #{custom-call.17} parent=113 // pred_check
          %p571 = pneg %p40
        $region116: #{custom-call.17} parent=113 // pred_check_branch
          %573 = sbr.rel (%p571) target = $region118
        $region117: #{custom-call.17} parent=113 // pred_region
          %s574 = sand.u32 %s25, 1
          %s575 = scalar_lea.sflag [#allocation4], %s574
          %s576 = sand.u32 %s25, 1
          %s577 = smul.addr %s576, 4
          %s578 = scalar_lea.vmem [#allocation3], %s577
          %579 = dma.done %s575, 64
        $region118: #{custom-call.17} parent=113 // pred_fallthru
          _
        // Predicated region
        $region119: #{custom-call.17} parent=113 // pred_check
          %p580 = pneg %p68
        $region120: #{custom-call.17} parent=113 // pred_check_branch
          %582 = sbr.rel (%p580) target = $region122
        $region121: #{custom-call.17} parent=113 // pred_region
          %s583 = sand.u32 %s53, 1
          %s584 = sand.u32 %s53, 1
          %s585 = smul.addr %s584, 4
          %s586 = scalar_lea.vmem [#allocation6], %s585
        $region122: #{custom-call.17} parent=113 // pred_fallthru
          _
      $region114: #{custom-call.17} parent=5 // pred_fallthru
        _
    $region6: #{custom-call.17} parent=1 // loop_footer
      %s13 = sadd.s32 1, %s9
    $region7: #{custom-call.17} parent=1 // loop_footer_branch
      %8 = sbr.rel target = $region3
    $region8: #{custom-call.17} parent=1 // loop_exit
      _
    %587 = vsyncpa [#allocation4], 1
    %s588 = scalar_lea.sflag [#allocation4], 1
    %589 = vsyncpa %s588, 1

// kernel: custom-call.10
$region0: #{custom-call.10}
  %s0 = inlined_call_operand.vmem [shape: f32[4,1,36,36], index: 0, kind: input, shape index: {}]
  %s1 = inlined_call_operand.vmem [shape: f32[4,1,36,36], index: 1, kind: output, shape index: {}]
  $region1: #{custom-call.10} parent=0
    #allocation0 [shape = 'u8[40960]{0}', space=vmem, size = 0xa000, scoped, tag = 'operand span for operand 0']
    #allocation1 [shape = 'u8[40960]{0}', space=vmem, size = 0xa000, scoped, tag = 'operand span for operand 1']
    loop: start=0, step=1, limit=6
    $region2: #{custom-call.10} parent=1 // loop_pre_header
      _
    $region3: #{custom-call.10} parent=1 // loop_header
      %s3 = sphi 0, %s7
      %p4 = scmp.ge.s32.totalorder %s3, 6
      %s10 = sphi 0, %s36
      %s11 = sphi 0, %s32
      %s12 = sphi 0, %s28
      %s13 = sphi 0, %s24
      %s14 = sphi 0, %s10
      %s15 = sphi 0, %s11
      %s16 = sphi 0, %s12
      %s17 = sphi 0, %s13
      %s18 = sphi 0, %s14
      %s19 = sphi 0, %s15
      %s20 = sphi 0, %s16
      %s21 = sphi 0, %s17
    $region4: #{custom-call.10} parent=1 // loop_header_branch
      %6 = sbr.rel (%p4) target = $region8
    $region5: #{custom-call.10} parent=1 // loop_body
      %s8 = ssub.s32 %s3, 1
      %s9 = ssub.s32 %s3, 2
      %s22 = sadd.s32 1, %s13
      %p23 = scmp.ge.s32.totalorder %s22, 1
      %s24 = scalar_select %p23, 0, %s22
      %s25 = sadd.s32 1, %s12
      %s26 = scalar_select %p23, %s25, %s12
      %p27 = scmp.ge.s32.totalorder %s26, 1
      %s28 = scalar_select %p27, 0, %s26
      %s29 = sadd.s32 1, %s11
      %s30 = scalar_select %p27, %s29, %s11
      %p31 = scmp.ge.s32.totalorder %s30, 1
      %s32 = scalar_select %p31, 0, %s30
      %s33 = sadd.s32 1, %s10
      %s34 = scalar_select %p31, %s33, %s10
      %p35 = scmp.ge.s32.totalorder %s34, 4
      %s36 = scalar_select %p35, 0, %s34
      %p37 = scmp.le.s32.totalorder 1, %s3
      %p38 = scmp.lt.s32.totalorder %s3, 5
      %p39 = pnand %p37, %p38
      %p40 = pneg %p39
      // Predicated region
      $region9: #{custom-call.10} parent=5 // pred_check
        _
      $region10: #{custom-call.10} parent=5 // pred_check_branch
        %42 = sbr.rel (%p39) target = $region12
      $region11: #{custom-call.10} parent=5 // pred_region
        %s43 = ssub.s32 %s3, 1
      $region12: #{custom-call.10} parent=5 // pred_fallthru
        _
      %p44 = scmp.lt.s32.totalorder %s3, 4
      // Predicated region
      $region13: #{custom-call.10} parent=5 // pred_check
        %p45 = pneg %p44
      $region14: #{custom-call.10} parent=5 // pred_check_branch
        %47 = sbr.rel (%p45) target = $region16
      $region15: #{custom-call.10} parent=5 // pred_region
        %s48 = sand.u32 %s3, 1
        %s49 = sand.u32 %s3, 1
        %s50 = smul.addr %s49, 40
        %s51 = scalar_lea.vmem [#allocation0], %s50
        %s52 = sadd.s32 %s13, %s12
        %s53 = smul.addr %s11, 5
        %s54 = sadd.s32 %s52, %s53
        %s55 = smul.addr %s10, 5
        %s56 = sadd.s32 %s54, %s55
        %s57 = smul.addr %s56, 8
        %s58 = scalar_lea.vmem %s0, %s57
        // Predicated region
        $region17: #{custom-call.10} parent=15 // pred_check
          _
        $region18: #{custom-call.10} parent=15 // pred_check_branch
          %60 = sbr.rel (0) target = $region20
        $region19: #{custom-call.10} parent=15 // pred_region
          // Predicated region
          $region21: #{custom-call.10} parent=19 // pred_check
            _
          $region22: #{custom-call.10} parent=19 // pred_check_branch
            %62 = sbr.rel (0) target = $region24
          $region23: #{custom-call.10} parent=19 // pred_region
            // Predicated region
            $region36: #{custom-call.10} parent=23 // pred_check
              _
            $region37: #{custom-call.10} parent=23 // pred_check_branch
              %86 = sbr.rel (0) target = $region39
            $region38: #{custom-call.10} parent=23 // pred_region
              loop: start=0, step=1, limit=1
              $region40: #{custom-call.10} parent=38 // loop_pre_header
                _
              $region41: #{custom-call.10} parent=38 // loop_header
                %s88 = sphi 0, %s92
                %p89 = scmp.ge.s32.totalorder %s88, 1
                %s93 = sphi %s58, %s58
                %s94 = sphi %s51, %s51
              $region42: #{custom-call.10} parent=38 // loop_header_branch
                %91 = sbr.rel (%p89) target = $region46
              $region43: #{custom-call.10} parent=38 // loop_body
                %v95 = vld [vmem:[%s93] sm:$0xff]
                %96 = vst [vmem:[%s94] sm:$0xff] %v95
                %v97 = vld [vmem:[%s93 + $0x8] sm:$0xff]
                %98 = vst [vmem:[%s94 + $0x8] sm:$0xff] %v97
                %v99 = vld [vmem:[%s93 + $0x10] sm:$0xff]
                %100 = vst [vmem:[%s94 + $0x10] sm:$0xff] %v99
                %v101 = vld [vmem:[%s93 + $0x18] sm:$0xff]
                %102 = vst [vmem:[%s94 + $0x18] sm:$0xff] %v101
                %v103 = vld [vmem:[%s93 + $0x20] sm:$0xff]
                %104 = vst [vmem:[%s94 + $0x20] sm:$0xff] %v103
              $region44: #{custom-call.10} parent=38 // loop_footer
                %s92 = sadd.s32 1, %s88
              $region45: #{custom-call.10} parent=38 // loop_footer_branch
                %87 = sbr.rel target = $region41
              $region46: #{custom-call.10} parent=38 // loop_exit
                _
            $region39: #{custom-call.10} parent=23 // pred_fallthru
              _
            // Predicated region
            $region47: #{custom-call.10} parent=23 // pred_check
              _
            $region48: #{custom-call.10} parent=23 // pred_check_branch
              %106 = sbr.rel target = $region50
            $region49: #{custom-call.10} parent=23 // pred_region
              _
            $region50: #{custom-call.10} parent=23 // pred_fallthru
              _
          $region24: #{custom-call.10} parent=19 // pred_fallthru
            _
          // Predicated region
          $region25: #{custom-call.10} parent=19 // pred_check
            _
          $region26: #{custom-call.10} parent=19 // pred_check_branch
            %64 = sbr.rel target = $region28
          $region27: #{custom-call.10} parent=19 // pred_region
            %s66 = ssub.s32 256, 1
            loop: start=0, step=1, limit=1
            $region29: #{custom-call.10} parent=27 // loop_pre_header
              _
            $region30: #{custom-call.10} parent=27 // loop_header
              %s68 = sphi 0, %s72
              %p69 = scmp.ge.s32.totalorder %s68, 1
              %s73 = sphi %s58, %s58
              %s74 = sphi %s51, %s51
            $region31: #{custom-call.10} parent=27 // loop_header_branch
              %71 = sbr.rel (%p69) target = $region35
            $region32: #{custom-call.10} parent=27 // loop_body
              %v75 = vld [vmem:[%s73] sm:%s66]
              %76 = vst [vmem:[%s74] sm:%s66] %v75
              %v77 = vld [vmem:[%s73 + $0x8] sm:%s66]
              %78 = vst [vmem:[%s74 + $0x8] sm:%s66] %v77
              %v79 = vld [vmem:[%s73 + $0x10] sm:%s66]
              %80 = vst [vmem:[%s74 + $0x10] sm:%s66] %v79
              %v81 = vld [vmem:[%s73 + $0x18] sm:%s66]
              %82 = vst [vmem:[%s74 + $0x18] sm:%s66] %v81
              %v83 = vld [vmem:[%s73 + $0x20] sm:%s66]
              %84 = vst [vmem:[%s74 + $0x20] sm:%s66] %v83
            $region33: #{custom-call.10} parent=27 // loop_footer
              %s72 = sadd.s32 1, %s68
            $region34: #{custom-call.10} parent=27 // loop_footer_branch
              %67 = sbr.rel target = $region30
            $region35: #{custom-call.10} parent=27 // loop_exit
              _
          $region28: #{custom-call.10} parent=19 // pred_fallthru
            _
        $region20: #{custom-call.10} parent=15 // pred_fallthru
          _
        %107 = vnop
      $region16: #{custom-call.10} parent=5 // pred_fallthru
        _
      %p108 = scmp.le.s32.totalorder 1, %s3
      %p109 = scmp.lt.s32.totalorder %s3, 5
      %p110 = pnand %p108, %p109
      %p111 = pneg %p110
      // Predicated region
      $region51: #{custom-call.10} parent=5 // pred_check
        _
      $region52: #{custom-call.10} parent=5 // pred_check_branch
        %113 = sbr.rel (%p110) target = $region54
      $region53: #{custom-call.10} parent=5 // pred_region
        #allocation2 [shape = 'f32[36,36]{1,0}', space=vmem, size = 0x5000, scoped, tag = 'rescaled input a']
        %s114 = ssub.s32 %s3, 1
        %s115 = sand.u32 %s8, 1
        %s116 = sand.u32 %s8, 1
        %s117 = smul.addr %s116, 40
        %s118 = scalar_lea.vmem [#allocation0], %s117
        %s119 = sand.u32 %s8, 1
        %s120 = sand.u32 %s8, 1
        %s121 = smul.addr %s120, 40
        %s122 = scalar_lea.vmem [#allocation0], %s121
        %s123 = sand.u32 %s8, 1
        %s124 = sand.u32 %s8, 1
        %s125 = smul.addr %s124, 40
        %s126 = scalar_lea.vmem [#allocation1], %s125
        %v127 = vlaneseq
        %v128 = vand.u32 %v127, 127
        %vm129 = vcmp.lt.s32.totalorder %v128, 36
        %v130 = vlaneseq
        %v131 = vshrl.u32 %v130, 7
        %vm133 = vcmp.eq.s32.totalorder %v131, %v128
        %v134 = vld [vmem:[%s118] sm:$0xff]
        %v135 = vsel %vm133, %v134, 0.0
        %136 = vadd.xlane.f32.xlu0 %v135
        %v137 = vpop.xlane.xlu0 %136
        %vm138 = vcmp.ge.s32.totalorder %v131, %v128
        %vm139 = vmand %vm138, %vm129
        %v140 = vsel %vm139, %v134, 0.0
        %v141 = vrcp.pop %v137
        %v142 = vmul.f32 %v140, %v141
        %143 = vst [vmem:[#allocation2] sm:$0xff] %v142
        %s144 = scalar_lea.vmem %s118, 8 [#allocation0]
        %s145 = scalar_lea.vmem [#allocation2], 8
        %v146 = vlaneseq
        %v147 = vshrl.u32 %v146, 7
        %v148 = vadd.s32 %v147, 8
        %vm149 = vcmp.eq.s32.totalorder %v148, %v128
        %v150 = vld [vmem:[%s144] sm:$0xff]
        %v151 = vsel %vm149, %v150, 0.0
        %152 = vadd.xlane.f32.xlu0 %v151
        %v153 = vpop.xlane.xlu0 %152
        %vm154 = vcmp.ge.s32.totalorder %v148, %v128
        %vm155 = vmand %vm154, %vm129
        %v156 = vsel %vm155, %v150, 0.0
        %v157 = vrcp.pop %v153
        %v158 = vmul.f32 %v156, %v157
        %159 = vst [vmem:[%s145] sm:$0xff] %v158
        %s160 = scalar_lea.vmem %s118, 16 [#allocation0]
        %s161 = scalar_lea.vmem [#allocation2], 16
        %v162 = vlaneseq
        %v163 = vshrl.u32 %v162, 7
        %v164 = vadd.s32 %v163, 16
        %vm165 = vcmp.eq.s32.totalorder %v164, %v128
        %v166 = vld [vmem:[%s160] sm:$0xff]
        %v167 = vsel %vm165, %v166, 0.0
        %168 = vadd.xlane.f32.xlu0 %v167
        %v169 = vpop.xlane.xlu0 %168
        %vm170 = vcmp.ge.s32.totalorder %v164, %v128
        %vm171 = vmand %vm170, %vm129
        %v172 = vsel %vm171, %v166, 0.0
        %v173 = vrcp.pop %v169
        %v174 = vmul.f32 %v172, %v173
        %175 = vst [vmem:[%s161] sm:$0xff] %v174
        %s176 = scalar_lea.vmem %s118, 24 [#allocation0]
        %s177 = scalar_lea.vmem [#allocation2], 24
        %v178 = vlaneseq
        %v179 = vshrl.u32 %v178, 7
        %v180 = vadd.s32 %v179, 24
        %vm181 = vcmp.eq.s32.totalorder %v180, %v128
        %v182 = vld [vmem:[%s176] sm:$0xff]
        %v183 = vsel %vm181, %v182, 0.0
        %184 = vadd.xlane.f32.xlu0 %v183
        %v185 = vpop.xlane.xlu0 %184
        %vm186 = vcmp.ge.s32.totalorder %v180, %v128
        %vm187 = vmand %vm186, %vm129
        %v188 = vsel %vm187, %v182, 0.0
        %v189 = vrcp.pop %v185
        %v190 = vmul.f32 %v188, %v189
        %191 = vst [vmem:[%s177] sm:$0xff] %v190
        %s192 = scalar_lea.vmem %s118, 32 [#allocation0]
        %s193 = scalar_lea.vmem [#allocation2], 32
        %v194 = vlaneseq
        %v195 = vshrl.u32 %v194, 7
        %v196 = vadd.s32 %v195, 32
        %vm197 = vcmp.eq.s32.totalorder %v196, %v128
        %v198 = vld [vmem:[%s192] sm:$0xff]
        %v199 = vsel %vm197, %v198, 0.0
        %200 = vadd.xlane.f32.xlu0 %v199
        %v201 = vpop.xlane.xlu0 %200
        %vm202 = vcmp.ge.s32.totalorder %v196, %v128
        %vm203 = vmand %vm202, %vm129
        %v204 = vsel %vm203, %v198, 0.0
        %v205 = vrcp.pop %v201
        %v206 = vmul.f32 %v204, %v205
        %207 = vst [vmem:[%s193] sm:$0xff] %v206
        %v208 = vlaneseq
        %v209 = vand.u32 %v208, 127
        %v210 = vlaneseq
        %v211 = vshrl.u32 %v210, 7
        %vm213 = vcmp.eq.s32.totalorder %v209, %v211
        %v214 = vlaneseq
        %v215 = vand.u32 %v214, 127
        %vm216 = vcmp.eq.s32.totalorder %v215, 0
        %v217 = vsel %vm216, 1.0, -1.0
        %v218 = vsel %vm213, %v217, 0.0
        %v219 = vlaneseq
        %v220 = vand.u32 %v219, 127
        %v221 = vlaneseq
        %v222 = vshrl.u32 %v221, 7
        %v223 = vadd.s32 %v222, 8
        %vm224 = vcmp.eq.s32.totalorder %v220, %v223
        %v225 = vsel %vm224, -1.0, 0.0
        %v226 = vlaneseq
        %v227 = vand.u32 %v226, 127
        %v228 = vlaneseq
        %v229 = vshrl.u32 %v228, 7
        %v230 = vadd.s32 %v229, 16
        %vm231 = vcmp.eq.s32.totalorder %v227, %v230
        %v232 = vsel %vm231, -1.0, 0.0
        %v233 = vlaneseq
        %v234 = vand.u32 %v233, 127
        %v235 = vlaneseq
        %v236 = vshrl.u32 %v235, 7
        %v237 = vadd.s32 %v236, 24
        %vm238 = vcmp.eq.s32.totalorder %v234, %v237
        %v239 = vsel %vm238, -1.0, 0.0
        %v240 = vlaneseq
        %v241 = vand.u32 %v240, 127
        %v242 = vlaneseq
        %v243 = vshrl.u32 %v242, 7
        %v244 = vadd.s32 %v243, 32
        %vm245 = vcmp.eq.s32.totalorder %v241, %v244
        %v246 = vsel %vm245, -1.0, 0.0
        %s247 = scalar_lea.vmem [#allocation2], 1
        %v248 = vld [vmem:[%s247] ss:$0 sm:$0xff]
        %v249 = vxor.u32 %v248, 2147483648
        %v250 = vlaneseq
        %v251 = vand.u32 %v250, 127
        %vm252 = vcmp.eq.s32.totalorder %v251, 1
        %v253 = vmul.f32 %v249, %v218
        %254 = vadd.xlane.f32.xlu0 %v253
        %v255 = vpop.xlane.xlu0 %254
        %v256 = vsel %vm252, %v255, %v218
        %s257 = scalar_lea.vmem [#allocation2], 2
        %v258 = vld [vmem:[%s257] ss:$0 sm:$0xff]
        %v259 = vxor.u32 %v258, 2147483648
        %v260 = vlaneseq
        %v261 = vand.u32 %v260, 127
        %vm262 = vcmp.eq.s32.totalorder %v261, 2
        %v263 = vmul.f32 %v259, %v256
        %264 = vadd.xlane.f32.xlu0 %v263
        %v265 = vpop.xlane.xlu0 %264
        %v266 = vsel %vm262, %v265, %v256
        %s267 = scalar_lea.vmem [#allocation2], 3
        %v268 = vld [vmem:[%s267] ss:$0 sm:$0xff]
        %v269 = vxor.u32 %v268, 2147483648
        %v270 = vlaneseq
        %v271 = vand.u32 %v270, 127
        %vm272 = vcmp.eq.s32.totalorder %v271, 3
        %v273 = vmul.f32 %v269, %v266
        %274 = vadd.xlane.f32.xlu0 %v273
        %v275 = vpop.xlane.xlu0 %274
        %v276 = vsel %vm272, %v275, %v266
        %s277 = scalar_lea.vmem [#allocation2], 4
        %v278 = vld [vmem:[%s277] ss:$0 sm:$0xff]
        %v279 = vxor.u32 %v278, 2147483648
        %v280 = vlaneseq
        %v281 = vand.u32 %v280, 127
        %vm282 = vcmp.eq.s32.totalorder %v281, 4
        %v283 = vmul.f32 %v279, %v276
        %284 = vadd.xlane.f32.xlu0 %v283
        %v285 = vpop.xlane.xlu0 %284
        %v286 = vsel %vm282, %v285, %v276
        %s287 = scalar_lea.vmem [#allocation2], 5
        %v288 = vld [vmem:[%s287] ss:$0 sm:$0xff]
        %v289 = vxor.u32 %v288, 2147483648
        %v290 = vlaneseq
        %v291 = vand.u32 %v290, 127
        %vm292 = vcmp.eq.s32.totalorder %v291, 5
        %v293 = vmul.f32 %v289, %v286
        %294 = vadd.xlane.f32.xlu0 %v293
        %v295 = vpop.xlane.xlu0 %294
        %v296 = vsel %vm292, %v295, %v286
        %s297 = scalar_lea.vmem [#allocation2], 6
        %v298 = vld [vmem:[%s297] ss:$0 sm:$0xff]
        %v299 = vxor.u32 %v298, 2147483648
        %v300 = vlaneseq
        %v301 = vand.u32 %v300, 127
        %vm302 = vcmp.eq.s32.totalorder %v301, 6
        %v303 = vmul.f32 %v299, %v296
        %304 = vadd.xlane.f32.xlu0 %v303
        %v305 = vpop.xlane.xlu0 %304
        %v306 = vsel %vm302, %v305, %v296
        %s307 = scalar_lea.vmem [#allocation2], 7
        %v308 = vld [vmem:[%s307] ss:$0 sm:$0xff]
        %v309 = vxor.u32 %v308, 2147483648
        %v310 = vlaneseq
        %v311 = vand.u32 %v310, 127
        %vm312 = vcmp.eq.s32.totalorder %v311, 7
        %v313 = vmul.f32 %v309, %v306
        %314 = vadd.xlane.f32.xlu0 %v313
        %v315 = vpop.xlane.xlu0 %314
        %v316 = vsel %vm312, %v315, %v306
        %s317 = scalar_lea.vmem [#allocation2], 8
        %v318 = vld [vmem:[%s317] ss:$0 sm:$0xff]
        %v319 = vxor.u32 %v318, 2147483648
        %v320 = vlaneseq
        %v321 = vand.u32 %v320, 127
        %vm322 = vcmp.eq.s32.totalorder %v321, 8
        %v323 = vmul.f32 %v319, %v316
        %324 = vadd.xlane.f32.xlu0 %v323
        %v325 = vpop.xlane.xlu0 %324
        %v326 = vsel %vm322, %v325, %v316
        %v327 = vmul.f32 %v319, %v225
        %328 = vadd.xlane.f32.xlu0 %v327
        %v329 = vpop.xlane.xlu0 %328
        %v330 = vsel %vm322, %v329, %v225
        %s331 = scalar_lea.vmem [#allocation2], 9
        %v332 = vld [vmem:[%s331] ss:$0 sm:$0xff]
        %v333 = vxor.u32 %v332, 2147483648
        %v334 = vlaneseq
        %v335 = vand.u32 %v334, 127
        %vm336 = vcmp.eq.s32.totalorder %v335, 9
        %v337 = vmul.f32 %v333, %v326
        %338 = vadd.xlane.f32.xlu0 %v337
        %v339 = vpop.xlane.xlu0 %338
        %v340 = vsel %vm336, %v339, %v326
        %v341 = vmul.f32 %v333, %v330
        %342 = vadd.xlane.f32.xlu0 %v341
        %v343 = vpop.xlane.xlu0 %342
        %v344 = vsel %vm336, %v343, %v330
        %s345 = scalar_lea.vmem [#allocation2], 10
        %v346 = vld [vmem:[%s345] ss:$0 sm:$0xff]
        %v347 = vxor.u32 %v346, 2147483648
        %v348 = vlaneseq
        %v349 = vand.u32 %v348, 127
        %vm350 = vcmp.eq.s32.totalorder %v349, 10
        %v351 = vmul.f32 %v347, %v340
        %352 = vadd.xlane.f32.xlu0 %v351
        %v353 = vpop.xlane.xlu0 %352
        %v354 = vsel %vm350, %v353, %v340
        %v355 = vmul.f32 %v347, %v344
        %356 = vadd.xlane.f32.xlu0 %v355
        %v357 = vpop.xlane.xlu0 %356
        %v358 = vsel %vm350, %v357, %v344
        %s359 = scalar_lea.vmem [#allocation2], 11
        %v360 = vld [vmem:[%s359] ss:$0 sm:$0xff]
        %v361 = vxor.u32 %v360, 2147483648
        %v362 = vlaneseq
        %v363 = vand.u32 %v362, 127
        %vm364 = vcmp.eq.s32.totalorder %v363, 11
        %v365 = vmul.f32 %v361, %v354
        %366 = vadd.xlane.f32.xlu0 %v365
        %v367 = vpop.xlane.xlu0 %366
        %v368 = vsel %vm364, %v367, %v354
        %v369 = vmul.f32 %v361, %v358
        %370 = vadd.xlane.f32.xlu0 %v369
        %v371 = vpop.xlane.xlu0 %370
        %v372 = vsel %vm364, %v371, %v358
        %s373 = scalar_lea.vmem [#allocation2], 12
        %v374 = vld [vmem:[%s373] ss:$0 sm:$0xff]
        %v375 = vxor.u32 %v374, 2147483648
        %v376 = vlaneseq
        %v377 = vand.u32 %v376, 127
        %vm378 = vcmp.eq.s32.totalorder %v377, 12
        %v379 = vmul.f32 %v375, %v368
        %380 = vadd.xlane.f32.xlu0 %v379
        %v381 = vpop.xlane.xlu0 %380
        %v382 = vsel %vm378, %v381, %v368
        %v383 = vmul.f32 %v375, %v372
        %384 = vadd.xlane.f32.xlu0 %v383
        %v385 = vpop.xlane.xlu0 %384
        %v386 = vsel %vm378, %v385, %v372
        %s387 = scalar_lea.vmem [#allocation2], 13
        %v388 = vld [vmem:[%s387] ss:$0 sm:$0xff]
        %v389 = vxor.u32 %v388, 2147483648
        %v390 = vlaneseq
        %v391 = vand.u32 %v390, 127
        %vm392 = vcmp.eq.s32.totalorder %v391, 13
        %v393 = vmul.f32 %v389, %v382
        %394 = vadd.xlane.f32.xlu0 %v393
        %v395 = vpop.xlane.xlu0 %394
        %v396 = vsel %vm392, %v395, %v382
        %v397 = vmul.f32 %v389, %v386
        %398 = vadd.xlane.f32.xlu0 %v397
        %v399 = vpop.xlane.xlu0 %398
        %v400 = vsel %vm392, %v399, %v386
        %s401 = scalar_lea.vmem [#allocation2], 14
        %v402 = vld [vmem:[%s401] ss:$0 sm:$0xff]
        %v403 = vxor.u32 %v402, 2147483648
        %v404 = vlaneseq
        %v405 = vand.u32 %v404, 127
        %vm406 = vcmp.eq.s32.totalorder %v405, 14
        %v407 = vmul.f32 %v403, %v396
        %408 = vadd.xlane.f32.xlu0 %v407
        %v409 = vpop.xlane.xlu0 %408
        %v410 = vsel %vm406, %v409, %v396
        %v411 = vmul.f32 %v403, %v400
        %412 = vadd.xlane.f32.xlu0 %v411
        %v413 = vpop.xlane.xlu0 %412
        %v414 = vsel %vm406, %v413, %v400
        %s415 = scalar_lea.vmem [#allocation2], 15
        %v416 = vld [vmem:[%s415] ss:$0 sm:$0xff]
        %v417 = vxor.u32 %v416, 2147483648
        %v418 = vlaneseq
        %v419 = vand.u32 %v418, 127
        %vm420 = vcmp.eq.s32.totalorder %v419, 15
        %v421 = vmul.f32 %v417, %v410
        %422 = vadd.xlane.f32.xlu0 %v421
        %v423 = vpop.xlane.xlu0 %422
        %v424 = vsel %vm420, %v423, %v410
        %v425 = vmul.f32 %v417, %v414
        %426 = vadd.xlane.f32.xlu0 %v425
        %v427 = vpop.xlane.xlu0 %426
        %v428 = vsel %vm420, %v427, %v414
        %s429 = scalar_lea.vmem [#allocation2], 16
        %v430 = vld [vmem:[%s429] ss:$0 sm:$0xff]
        %v431 = vxor.u32 %v430, 2147483648
        %v432 = vlaneseq
        %v433 = vand.u32 %v432, 127
        %vm434 = vcmp.eq.s32.totalorder %v433, 16
        %v435 = vmul.f32 %v431, %v424
        %436 = vadd.xlane.f32.xlu0 %v435
        %v437 = vpop.xlane.xlu0 %436
        %v438 = vsel %vm434, %v437, %v424
        %v439 = vmul.f32 %v431, %v428
        %440 = vadd.xlane.f32.xlu0 %v439
        %v441 = vpop.xlane.xlu0 %440
        %v442 = vsel %vm434, %v441, %v428
        %v443 = vmul.f32 %v431, %v232
        %444 = vadd.xlane.f32.xlu0 %v443
        %v445 = vpop.xlane.xlu0 %444
        %v446 = vsel %vm434, %v445, %v232
        %s447 = scalar_lea.vmem [#allocation2], 17
        %v448 = vld [vmem:[%s447] ss:$0 sm:$0xff]
        %v449 = vxor.u32 %v448, 2147483648
        %v450 = vlaneseq
        %v451 = vand.u32 %v450, 127
        %vm452 = vcmp.eq.s32.totalorder %v451, 17
        %v453 = vmul.f32 %v449, %v438
        %454 = vadd.xlane.f32.xlu0 %v453
        %v455 = vpop.xlane.xlu0 %454
        %v456 = vsel %vm452, %v455, %v438
        %v457 = vmul.f32 %v449, %v442
        %458 = vadd.xlane.f32.xlu0 %v457
        %v459 = vpop.xlane.xlu0 %458
        %v460 = vsel %vm452, %v459, %v442
        %v461 = vmul.f32 %v449, %v446
        %462 = vadd.xlane.f32.xlu0 %v461
        %v463 = vpop.xlane.xlu0 %462
        %v464 = vsel %vm452, %v463, %v446
        %s465 = scalar_lea.vmem [#allocation2], 18
        %v466 = vld [vmem:[%s465] ss:$0 sm:$0xff]
        %v467 = vxor.u32 %v466, 2147483648
        %v468 = vlaneseq
        %v469 = vand.u32 %v468, 127
        %vm470 = vcmp.eq.s32.totalorder %v469, 18
        %v471 = vmul.f32 %v467, %v456
        %472 = vadd.xlane.f32.xlu0 %v471
        %v473 = vpop.xlane.xlu0 %472
        %v474 = vsel %vm470, %v473, %v456
        %v475 = vmul.f32 %v467, %v460
        %476 = vadd.xlane.f32.xlu0 %v475
        %v477 = vpop.xlane.xlu0 %476
        %v478 = vsel %vm470, %v477, %v460
        %v479 = vmul.f32 %v467, %v464
        %480 = vadd.xlane.f32.xlu0 %v479
        %v481 = vpop.xlane.xlu0 %480
        %v482 = vsel %vm470, %v481, %v464
        %s483 = scalar_lea.vmem [#allocation2], 19
        %v484 = vld [vmem:[%s483] ss:$0 sm:$0xff]
        %v485 = vxor.u32 %v484, 2147483648
        %v486 = vlaneseq
        %v487 = vand.u32 %v486, 127
        %vm488 = vcmp.eq.s32.totalorder %v487, 19
        %v489 = vmul.f32 %v485, %v474
        %490 = vadd.xlane.f32.xlu0 %v489
        %v491 = vpop.xlane.xlu0 %490
        %v492 = vsel %vm488, %v491, %v474
        %v493 = vmul.f32 %v485, %v478
        %494 = vadd.xlane.f32.xlu0 %v493
        %v495 = vpop.xlane.xlu0 %494
        %v496 = vsel %vm488, %v495, %v478
        %v497 = vmul.f32 %v485, %v482
        %498 = vadd.xlane.f32.xlu0 %v497
        %v499 = vpop.xlane.xlu0 %498
        %v500 = vsel %vm488, %v499, %v482
        %s501 = scalar_lea.vmem [#allocation2], 20
        %v502 = vld [vmem:[%s501] ss:$0 sm:$0xff]
        %v503 = vxor.u32 %v502, 2147483648
        %v504 = vlaneseq
        %v505 = vand.u32 %v504, 127
        %vm506 = vcmp.eq.s32.totalorder %v505, 20
        %v507 = vmul.f32 %v503, %v492
        %508 = vadd.xlane.f32.xlu0 %v507
        %v509 = vpop.xlane.xlu0 %508
        %v510 = vsel %vm506, %v509, %v492
        %v511 = vmul.f32 %v503, %v496
        %512 = vadd.xlane.f32.xlu0 %v511
        %v513 = vpop.xlane.xlu0 %512
        %v514 = vsel %vm506, %v513, %v496
        %v515 = vmul.f32 %v503, %v500
        %516 = vadd.xlane.f32.xlu0 %v515
        %v517 = vpop.xlane.xlu0 %516
        %v518 = vsel %vm506, %v517, %v500
        %s519 = scalar_lea.vmem [#allocation2], 21
        %v520 = vld [vmem:[%s519] ss:$0 sm:$0xff]
        %v521 = vxor.u32 %v520, 2147483648
        %v522 = vlaneseq
        %v523 = vand.u32 %v522, 127
        %vm524 = vcmp.eq.s32.totalorder %v523, 21
        %v525 = vmul.f32 %v521, %v510
        %526 = vadd.xlane.f32.xlu0 %v525
        %v527 = vpop.xlane.xlu0 %526
        %v528 = vsel %vm524, %v527, %v510
        %v529 = vmul.f32 %v521, %v514
        %530 = vadd.xlane.f32.xlu0 %v529
        %v531 = vpop.xlane.xlu0 %530
        %v532 = vsel %vm524, %v531, %v514
        %v533 = vmul.f32 %v521, %v518
        %534 = vadd.xlane.f32.xlu0 %v533
        %v535 = vpop.xlane.xlu0 %534
        %v536 = vsel %vm524, %v535, %v518
        %s537 = scalar_lea.vmem [#allocation2], 22
        %v538 = vld [vmem:[%s537] ss:$0 sm:$0xff]
        %v539 = vxor.u32 %v538, 2147483648
        %v540 = vlaneseq
        %v541 = vand.u32 %v540, 127
        %vm542 = vcmp.eq.s32.totalorder %v541, 22
        %v543 = vmul.f32 %v539, %v528
        %544 = vadd.xlane.f32.xlu0 %v543
        %v545 = vpop.xlane.xlu0 %544
        %v546 = vsel %vm542, %v545, %v528
        %v547 = vmul.f32 %v539, %v532
        %548 = vadd.xlane.f32.xlu0 %v547
        %v549 = vpop.xlane.xlu0 %548
        %v550 = vsel %vm542, %v549, %v532
        %v551 = vmul.f32 %v539, %v536
        %552 = vadd.xlane.f32.xlu0 %v551
        %v553 = vpop.xlane.xlu0 %552
        %v554 = vsel %vm542, %v553, %v536
        %s555 = scalar_lea.vmem [#allocation2], 23
        %v556 = vld [vmem:[%s555] ss:$0 sm:$0xff]
        %v557 = vxor.u32 %v556, 2147483648
        %v558 = vlaneseq
        %v559 = vand.u32 %v558, 127
        %vm560 = vcmp.eq.s32.totalorder %v559, 23
        %v561 = vmul.f32 %v557, %v546
        %562 = vadd.xlane.f32.xlu0 %v561
        %v563 = vpop.xlane.xlu0 %562
        %v564 = vsel %vm560, %v563, %v546
        %v565 = vmul.f32 %v557, %v550
        %566 = vadd.xlane.f32.xlu0 %v565
        %v567 = vpop.xlane.xlu0 %566
        %v568 = vsel %vm560, %v567, %v550
        %v569 = vmul.f32 %v557, %v554
        %570 = vadd.xlane.f32.xlu0 %v569
        %v571 = vpop.xlane.xlu0 %570
        %v572 = vsel %vm560, %v571, %v554
        %s573 = scalar_lea.vmem [#allocation2], 24
        %v574 = vld [vmem:[%s573] ss:$0 sm:$0xff]
        %v575 = vxor.u32 %v574, 2147483648
        %v576 = vlaneseq
        %v577 = vand.u32 %v576, 127
        %vm578 = vcmp.eq.s32.totalorder %v577, 24
        %v579 = vmul.f32 %v575, %v564
        %580 = vadd.xlane.f32.xlu0 %v579
        %v581 = vpop.xlane.xlu0 %580
        %v582 = vsel %vm578, %v581, %v564
        %v583 = vmul.f32 %v575, %v568
        %584 = vadd.xlane.f32.xlu0 %v583
        %v585 = vpop.xlane.xlu0 %584
        %v586 = vsel %vm578, %v585, %v568
        %v587 = vmul.f32 %v575, %v572
        %588 = vadd.xlane.f32.xlu0 %v587
        %v589 = vpop.xlane.xlu0 %588
        %v590 = vsel %vm578, %v589, %v572
        %v591 = vmul.f32 %v575, %v239
        %592 = vadd.xlane.f32.xlu0 %v591
        %v593 = vpop.xlane.xlu0 %592
        %v594 = vsel %vm578, %v593, %v239
        %s595 = scalar_lea.vmem [#allocation2], 25
        %v596 = vld [vmem:[%s595] ss:$0 sm:$0xff]
        %v597 = vxor.u32 %v596, 2147483648
        %v598 = vlaneseq
        %v599 = vand.u32 %v598, 127
        %vm600 = vcmp.eq.s32.totalorder %v599, 25
        %v601 = vmul.f32 %v597, %v582
        %602 = vadd.xlane.f32.xlu0 %v601
        %v603 = vpop.xlane.xlu0 %602
        %v604 = vsel %vm600, %v603, %v582
        %v605 = vmul.f32 %v597, %v586
        %606 = vadd.xlane.f32.xlu0 %v605
        %v607 = vpop.xlane.xlu0 %606
        %v608 = vsel %vm600, %v607, %v586
        %v609 = vmul.f32 %v597, %v590
        %610 = vadd.xlane.f32.xlu0 %v609
        %v611 = vpop.xlane.xlu0 %610
        %v612 = vsel %vm600, %v611, %v590
        %v613 = vmul.f32 %v597, %v594
        %614 = vadd.xlane.f32.xlu0 %v613
        %v615 = vpop.xlane.xlu0 %614
        %v616 = vsel %vm600, %v615, %v594
        %s617 = scalar_lea.vmem [#allocation2], 26
        %v618 = vld [vmem:[%s617] ss:$0 sm:$0xff]
        %v619 = vxor.u32 %v618, 2147483648
        %v620 = vlaneseq
        %v621 = vand.u32 %v620, 127
        %vm622 = vcmp.eq.s32.totalorder %v621, 26
        %v623 = vmul.f32 %v619, %v604
        %624 = vadd.xlane.f32.xlu0 %v623
        %v625 = vpop.xlane.xlu0 %624
        %v626 = vsel %vm622, %v625, %v604
        %v627 = vmul.f32 %v619, %v608
        %628 = vadd.xlane.f32.xlu0 %v627
        %v629 = vpop.xlane.xlu0 %628
        %v630 = vsel %vm622, %v629, %v608
        %v631 = vmul.f32 %v619, %v612
        %632 = vadd.xlane.f32.xlu0 %v631
        %v633 = vpop.xlane.xlu0 %632
        %v634 = vsel %vm622, %v633, %v612
        %v635 = vmul.f32 %v619, %v616
        %636 = vadd.xlane.f32.xlu0 %v635
        %v637 = vpop.xlane.xlu0 %636
        %v638 = vsel %vm622, %v637, %v616
        %s639 = scalar_lea.vmem [#allocation2], 27
        %v640 = vld [vmem:[%s639] ss:$0 sm:$0xff]
        %v641 = vxor.u32 %v640, 2147483648
        %v642 = vlaneseq
        %v643 = vand.u32 %v642, 127
        %vm644 = vcmp.eq.s32.totalorder %v643, 27
        %v645 = vmul.f32 %v641, %v626
        %646 = vadd.xlane.f32.xlu0 %v645
        %v647 = vpop.xlane.xlu0 %646
        %v648 = vsel %vm644, %v647, %v626
        %v649 = vmul.f32 %v641, %v630
        %650 = vadd.xlane.f32.xlu0 %v649
        %v651 = vpop.xlane.xlu0 %650
        %v652 = vsel %vm644, %v651, %v630
        %v653 = vmul.f32 %v641, %v634
        %654 = vadd.xlane.f32.xlu0 %v653
        %v655 = vpop.xlane.xlu0 %654
        %v656 = vsel %vm644, %v655, %v634
        %v657 = vmul.f32 %v641, %v638
        %658 = vadd.xlane.f32.xlu0 %v657
        %v659 = vpop.xlane.xlu0 %658
        %v660 = vsel %vm644, %v659, %v638
        %s661 = scalar_lea.vmem [#allocation2], 28
        %v662 = vld [vmem:[%s661] ss:$0 sm:$0xff]
        %v663 = vxor.u32 %v662, 2147483648
        %v664 = vlaneseq
        %v665 = vand.u32 %v664, 127
        %vm666 = vcmp.eq.s32.totalorder %v665, 28
        %v667 = vmul.f32 %v663, %v648
        %668 = vadd.xlane.f32.xlu0 %v667
        %v669 = vpop.xlane.xlu0 %668
        %v670 = vsel %vm666, %v669, %v648
        %v671 = vmul.f32 %v663, %v652
        %672 = vadd.xlane.f32.xlu0 %v671
        %v673 = vpop.xlane.xlu0 %672
        %v674 = vsel %vm666, %v673, %v652
        %v675 = vmul.f32 %v663, %v656
        %676 = vadd.xlane.f32.xlu0 %v675
        %v677 = vpop.xlane.xlu0 %676
        %v678 = vsel %vm666, %v677, %v656
        %v679 = vmul.f32 %v663, %v660
        %680 = vadd.xlane.f32.xlu0 %v679
        %v681 = vpop.xlane.xlu0 %680
        %v682 = vsel %vm666, %v681, %v660
        %s683 = scalar_lea.vmem [#allocation2], 29
        %v684 = vld [vmem:[%s683] ss:$0 sm:$0xff]
        %v685 = vxor.u32 %v684, 2147483648
        %v686 = vlaneseq
        %v687 = vand.u32 %v686, 127
        %vm688 = vcmp.eq.s32.totalorder %v687, 29
        %v689 = vmul.f32 %v685, %v670
        %690 = vadd.xlane.f32.xlu0 %v689
        %v691 = vpop.xlane.xlu0 %690
        %v692 = vsel %vm688, %v691, %v670
        %v693 = vmul.f32 %v685, %v674
        %694 = vadd.xlane.f32.xlu0 %v693
        %v695 = vpop.xlane.xlu0 %694
        %v696 = vsel %vm688, %v695, %v674
        %v697 = vmul.f32 %v685, %v678
        %698 = vadd.xlane.f32.xlu0 %v697
        %v699 = vpop.xlane.xlu0 %698
        %v700 = vsel %vm688, %v699, %v678
        %v701 = vmul.f32 %v685, %v682
        %702 = vadd.xlane.f32.xlu0 %v701
        %v703 = vpop.xlane.xlu0 %702
        %v704 = vsel %vm688, %v703, %v682
        %s705 = scalar_lea.vmem [#allocation2], 30
        %v706 = vld [vmem:[%s705] ss:$0 sm:$0xff]
        %v707 = vxor.u32 %v706, 2147483648
        %v708 = vlaneseq
        %v709 = vand.u32 %v708, 127
        %vm710 = vcmp.eq.s32.totalorder %v709, 30
        %v711 = vmul.f32 %v707, %v692
        %712 = vadd.xlane.f32.xlu0 %v711
        %v713 = vpop.xlane.xlu0 %712
        %v714 = vsel %vm710, %v713, %v692
        %v715 = vmul.f32 %v707, %v696
        %716 = vadd.xlane.f32.xlu0 %v715
        %v717 = vpop.xlane.xlu0 %716
        %v718 = vsel %vm710, %v717, %v696
        %v719 = vmul.f32 %v707, %v700
        %720 = vadd.xlane.f32.xlu0 %v719
        %v721 = vpop.xlane.xlu0 %720
        %v722 = vsel %vm710, %v721, %v700
        %v723 = vmul.f32 %v707, %v704
        %724 = vadd.xlane.f32.xlu0 %v723
        %v725 = vpop.xlane.xlu0 %724
        %v726 = vsel %vm710, %v725, %v704
        %s727 = scalar_lea.vmem [#allocation2], 31
        %v728 = vld [vmem:[%s727] ss:$0 sm:$0xff]
        %v729 = vxor.u32 %v728, 2147483648
        %v730 = vlaneseq
        %v731 = vand.u32 %v730, 127
        %vm732 = vcmp.eq.s32.totalorder %v731, 31
        %v733 = vmul.f32 %v729, %v714
        %734 = vadd.xlane.f32.xlu0 %v733
        %v735 = vpop.xlane.xlu0 %734
        %v736 = vsel %vm732, %v735, %v714
        %v737 = vmul.f32 %v729, %v718
        %738 = vadd.xlane.f32.xlu0 %v737
        %v739 = vpop.xlane.xlu0 %738
        %v740 = vsel %vm732, %v739, %v718
        %v741 = vmul.f32 %v729, %v722
        %742 = vadd.xlane.f32.xlu0 %v741
        %v743 = vpop.xlane.xlu0 %742
        %v744 = vsel %vm732, %v743, %v722
        %v745 = vmul.f32 %v729, %v726
        %746 = vadd.xlane.f32.xlu0 %v745
        %v747 = vpop.xlane.xlu0 %746
        %v748 = vsel %vm732, %v747, %v726
        %s749 = scalar_lea.vmem [#allocation2], 32
        %v750 = vld [vmem:[%s749] ss:$0 sm:$0xff]
        %v751 = vxor.u32 %v750, 2147483648
        %v752 = vlaneseq
        %v753 = vand.u32 %v752, 127
        %vm754 = vcmp.eq.s32.totalorder %v753, 32
        %v755 = vmul.f32 %v751, %v736
        %756 = vadd.xlane.f32.xlu0 %v755
        %v757 = vpop.xlane.xlu0 %756
        %v758 = vsel %vm754, %v757, %v736
        %v759 = vmul.f32 %v751, %v740
        %760 = vadd.xlane.f32.xlu0 %v759
        %v761 = vpop.xlane.xlu0 %760
        %v762 = vsel %vm754, %v761, %v740
        %v763 = vmul.f32 %v751, %v744
        %764 = vadd.xlane.f32.xlu0 %v763
        %v765 = vpop.xlane.xlu0 %764
        %v766 = vsel %vm754, %v765, %v744
        %v767 = vmul.f32 %v751, %v748
        %768 = vadd.xlane.f32.xlu0 %v767
        %v769 = vpop.xlane.xlu0 %768
        %v770 = vsel %vm754, %v769, %v748
        %v771 = vmul.f32 %v751, %v246
        %772 = vadd.xlane.f32.xlu0 %v771
        %v773 = vpop.xlane.xlu0 %772
        %v774 = vsel %vm754, %v773, %v246
        %s775 = scalar_lea.vmem [#allocation2], 33
        %v776 = vld [vmem:[%s775] ss:$0 sm:$0xff]
        %v777 = vxor.u32 %v776, 2147483648
        %v778 = vlaneseq
        %v779 = vand.u32 %v778, 127
        %vm780 = vcmp.eq.s32.totalorder %v779, 33
        %v781 = vmul.f32 %v777, %v758
        %782 = vadd.xlane.f32.xlu0 %v781
        %v783 = vpop.xlane.xlu0 %782
        %v784 = vsel %vm780, %v783, %v758
        %v785 = vmul.f32 %v777, %v762
        %786 = vadd.xlane.f32.xlu0 %v785
        %v787 = vpop.xlane.xlu0 %786
        %v788 = vsel %vm780, %v787, %v762
        %v789 = vmul.f32 %v777, %v766
        %790 = vadd.xlane.f32.xlu0 %v789
        %v791 = vpop.xlane.xlu0 %790
        %v792 = vsel %vm780, %v791, %v766
        %v793 = vmul.f32 %v777, %v770
        %794 = vadd.xlane.f32.xlu0 %v793
        %v795 = vpop.xlane.xlu0 %794
        %v796 = vsel %vm780, %v795, %v770
        %v797 = vmul.f32 %v777, %v774
        %798 = vadd.xlane.f32.xlu0 %v797
        %v799 = vpop.xlane.xlu0 %798
        %v800 = vsel %vm780, %v799, %v774
        %s801 = scalar_lea.vmem [#allocation2], 34
        %v802 = vld [vmem:[%s801] ss:$0 sm:$0xff]
        %v803 = vxor.u32 %v802, 2147483648
        %v804 = vlaneseq
        %v805 = vand.u32 %v804, 127
        %vm806 = vcmp.eq.s32.totalorder %v805, 34
        %v807 = vmul.f32 %v803, %v784
        %808 = vadd.xlane.f32.xlu0 %v807
        %v809 = vpop.xlane.xlu0 %808
        %v810 = vsel %vm806, %v809, %v784
        %v811 = vmul.f32 %v803, %v788
        %812 = vadd.xlane.f32.xlu0 %v811
        %v813 = vpop.xlane.xlu0 %812
        %v814 = vsel %vm806, %v813, %v788
        %v815 = vmul.f32 %v803, %v792
        %816 = vadd.xlane.f32.xlu0 %v815
        %v817 = vpop.xlane.xlu0 %816
        %v818 = vsel %vm806, %v817, %v792
        %v819 = vmul.f32 %v803, %v796
        %820 = vadd.xlane.f32.xlu0 %v819
        %v821 = vpop.xlane.xlu0 %820
        %v822 = vsel %vm806, %v821, %v796
        %v823 = vmul.f32 %v803, %v800
        %824 = vadd.xlane.f32.xlu0 %v823
        %v825 = vpop.xlane.xlu0 %824
        %v826 = vsel %vm806, %v825, %v800
        %s827 = scalar_lea.vmem [#allocation2], 35
        %v828 = vld [vmem:[%s827] ss:$0 sm:$0xff]
        %v829 = vxor.u32 %v828, 2147483648
        %v830 = vlaneseq
        %v831 = vand.u32 %v830, 127
        %vm832 = vcmp.eq.s32.totalorder %v831, 35
        %v833 = vmul.f32 %v829, %v810
        %834 = vadd.xlane.f32.xlu0 %v833
        %v835 = vpop.xlane.xlu0 %834
        %v836 = vsel %vm832, %v835, %v810
        %v837 = vmul.f32 %v829, %v814
        %838 = vadd.xlane.f32.xlu0 %v837
        %v839 = vpop.xlane.xlu0 %838
        %v840 = vsel %vm832, %v839, %v814
        %v841 = vmul.f32 %v829, %v818
        %842 = vadd.xlane.f32.xlu0 %v841
        %v843 = vpop.xlane.xlu0 %842
        %v844 = vsel %vm832, %v843, %v818
        %v845 = vmul.f32 %v829, %v822
        %846 = vadd.xlane.f32.xlu0 %v845
        %v847 = vpop.xlane.xlu0 %846
        %v848 = vsel %vm832, %v847, %v822
        %v849 = vmul.f32 %v829, %v826
        %850 = vadd.xlane.f32.xlu0 %v849
        %v851 = vpop.xlane.xlu0 %850
        %v852 = vsel %vm832, %v851, %v826
        %v853 = vrcp.pop %v137
        %v854 = vmul.f32 %v836, %v853
        %vm855 = vweird.f32 %v137
        %v856 = vsel %vm855, %v836, %v854
        %857 = vst [vmem:[%s126] sm:$0xff] %v856
        %v858 = vrcp.pop %v153
        %v859 = vmul.f32 %v840, %v858
        %vm860 = vweird.f32 %v153
        %v861 = vsel %vm860, %v840, %v859
        %s862 = scalar_lea.vmem %s126, 8 [#allocation1]
        %863 = vst [vmem:[%s862] sm:$0xff] %v861
        %v864 = vrcp.pop %v169
        %v865 = vmul.f32 %v844, %v864
        %vm866 = vweird.f32 %v169
        %v867 = vsel %vm866, %v844, %v865
        %s868 = scalar_lea.vmem %s126, 16 [#allocation1]
        %869 = vst [vmem:[%s868] sm:$0xff] %v867
        %v870 = vrcp.pop %v185
        %v871 = vmul.f32 %v848, %v870
        %vm872 = vweird.f32 %v185
        %v873 = vsel %vm872, %v848, %v871
        %s874 = scalar_lea.vmem %s126, 24 [#allocation1]
        %875 = vst [vmem:[%s874] sm:$0xff] %v873
        %v876 = vrcp.pop %v201
        %v877 = vmul.f32 %v852, %v876
        %vm878 = vweird.f32 %v201
        %v879 = vsel %vm878, %v852, %v877
        %s880 = scalar_lea.vmem %s126, 32 [#allocation1]
        %881 = vst [vmem:[%s880] sm:$0xff] %v879
        %s882 = sand.u32 %s8, 1
        %s883 = sand.u32 %s8, 1
        %s884 = smul.addr %s883, 40
        %s885 = scalar_lea.vmem [#allocation1], %s884
        %s886 = sadd.s32 %s17, %s16
        %s887 = smul.addr %s15, 5
        %s888 = sadd.s32 %s886, %s887
        %s889 = smul.addr %s14, 5
        %s890 = sadd.s32 %s888, %s889
        %s891 = smul.addr %s890, 8
        %s892 = scalar_lea.vmem %s1, %s891
        // Predicated region
        $region55: #{custom-call.10} parent=53 // pred_check
          _
        $region56: #{custom-call.10} parent=53 // pred_check_branch
          %894 = sbr.rel (0) target = $region58
        $region57: #{custom-call.10} parent=53 // pred_region
          // Predicated region
          $region59: #{custom-call.10} parent=57 // pred_check
            _
          $region60: #{custom-call.10} parent=57 // pred_check_branch
            %896 = sbr.rel (0) target = $region62
          $region61: #{custom-call.10} parent=57 // pred_region
            // Predicated region
            $region74: #{custom-call.10} parent=61 // pred_check
              _
            $region75: #{custom-call.10} parent=61 // pred_check_branch
              %920 = sbr.rel (0) target = $region77
            $region76: #{custom-call.10} parent=61 // pred_region
              loop: start=0, step=1, limit=1
              $region78: #{custom-call.10} parent=76 // loop_pre_header
                _
              $region79: #{custom-call.10} parent=76 // loop_header
                %s922 = sphi 0, %s926
                %p923 = scmp.ge.s32.totalorder %s922, 1
                %s927 = sphi %s885, %s885
                %s928 = sphi %s892, %s892
              $region80: #{custom-call.10} parent=76 // loop_header_branch
                %925 = sbr.rel (%p923) target = $region84
              $region81: #{custom-call.10} parent=76 // loop_body
                %v929 = vld [vmem:[%s927] sm:$0xff]
                %930 = vst [vmem:[%s928] sm:$0xff] %v929
                %v931 = vld [vmem:[%s927 + $0x8] sm:$0xff]
                %932 = vst [vmem:[%s928 + $0x8] sm:$0xff] %v931
                %v933 = vld [vmem:[%s927 + $0x10] sm:$0xff]
                %934 = vst [vmem:[%s928 + $0x10] sm:$0xff] %v933
                %v935 = vld [vmem:[%s927 + $0x18] sm:$0xff]
                %936 = vst [vmem:[%s928 + $0x18] sm:$0xff] %v935
                %v937 = vld [vmem:[%s927 + $0x20] sm:$0xff]
                %938 = vst [vmem:[%s928 + $0x20] sm:$0xff] %v937
              $region82: #{custom-call.10} parent=76 // loop_footer
                %s926 = sadd.s32 1, %s922
              $region83: #{custom-call.10} parent=76 // loop_footer_branch
                %921 = sbr.rel target = $region79
              $region84: #{custom-call.10} parent=76 // loop_exit
                _
            $region77: #{custom-call.10} parent=61 // pred_fallthru
              _
            // Predicated region
            $region85: #{custom-call.10} parent=61 // pred_check
              _
            $region86: #{custom-call.10} parent=61 // pred_check_branch
              %940 = sbr.rel target = $region88
            $region87: #{custom-call.10} parent=61 // pred_region
              _
            $region88: #{custom-call.10} parent=61 // pred_fallthru
              _
          $region62: #{custom-call.10} parent=57 // pred_fallthru
            _
          // Predicated region
          $region63: #{custom-call.10} parent=57 // pred_check
            _
          $region64: #{custom-call.10} parent=57 // pred_check_branch
            %898 = sbr.rel target = $region66
          $region65: #{custom-call.10} parent=57 // pred_region
            %s900 = ssub.s32 256, 1
            loop: start=0, step=1, limit=1
            $region67: #{custom-call.10} parent=65 // loop_pre_header
              _
            $region68: #{custom-call.10} parent=65 // loop_header
              %s902 = sphi 0, %s906
              %p903 = scmp.ge.s32.totalorder %s902, 1
              %s907 = sphi %s885, %s885
              %s908 = sphi %s892, %s892
            $region69: #{custom-call.10} parent=65 // loop_header_branch
              %905 = sbr.rel (%p903) target = $region73
            $region70: #{custom-call.10} parent=65 // loop_body
              %v909 = vld [vmem:[%s907] sm:%s900]
              %910 = vst [vmem:[%s908] sm:%s900] %v909
              %v911 = vld [vmem:[%s907 + $0x8] sm:%s900]
              %912 = vst [vmem:[%s908 + $0x8] sm:%s900] %v911
              %v913 = vld [vmem:[%s907 + $0x10] sm:%s900]
              %914 = vst [vmem:[%s908 + $0x10] sm:%s900] %v913
              %v915 = vld [vmem:[%s907 + $0x18] sm:%s900]
              %916 = vst [vmem:[%s908 + $0x18] sm:%s900] %v915
              %v917 = vld [vmem:[%s907 + $0x20] sm:%s900]
              %918 = vst [vmem:[%s908 + $0x20] sm:%s900] %v917
            $region71: #{custom-call.10} parent=65 // loop_footer
              %s906 = sadd.s32 1, %s902
            $region72: #{custom-call.10} parent=65 // loop_footer_branch
              %901 = sbr.rel target = $region68
            $region73: #{custom-call.10} parent=65 // loop_exit
              _
          $region66: #{custom-call.10} parent=57 // pred_fallthru
            _
        $region58: #{custom-call.10} parent=53 // pred_fallthru
          _
        %941 = vnop
      $region54: #{custom-call.10} parent=5 // pred_fallthru
        _
      %p942 = scmp.le.s32.totalorder 2, %s3
      // Predicated region
      $region89: #{custom-call.10} parent=5 // pred_check
        %p943 = pneg %p942
      $region90: #{custom-call.10} parent=5 // pred_check_branch
        %945 = sbr.rel (%p943) target = $region92
      $region91: #{custom-call.10} parent=5 // pred_region
        %s946 = ssub.s32 %s3, 2
        %s947 = sand.u32 %s9, 1
        %s948 = sand.u32 %s9, 1
        %s949 = smul.addr %s948, 40
        %s950 = scalar_lea.vmem [#allocation1], %s949
      $region92: #{custom-call.10} parent=5 // pred_fallthru
        _
    $region6: #{custom-call.10} parent=1 // loop_footer
      %s7 = sadd.s32 1, %s3
    $region7: #{custom-call.10} parent=1 // loop_footer_branch
      %2 = sbr.rel target = $region3
    $region8: #{custom-call.10} parent=1 // loop_exit
      _

// kernel: custom-call.9
$region0: #{custom-call.9}
  %s0 = inlined_call_operand.vmem [shape: f32[4,1,36,36], index: 0, kind: input, shape index: {}]
  %s1 = inlined_call_operand.vmem [shape: f32[4,1,36,36], index: 1, kind: output, shape index: {}]
  $region1: #{custom-call.9} parent=0
    #allocation0 [shape = 'u8[40960]{0}', space=vmem, size = 0xa000, scoped, tag = 'operand span for operand 0']
    #allocation1 [shape = 'u8[40960]{0}', space=vmem, size = 0xa000, scoped, tag = 'operand span for operand 1']
    loop: start=0, step=1, limit=6
    $region2: #{custom-call.9} parent=1 // loop_pre_header
      _
    $region3: #{custom-call.9} parent=1 // loop_header
      %s3 = sphi 0, %s7
      %p4 = scmp.ge.s32.totalorder %s3, 6
      %s10 = sphi 0, %s36
      %s11 = sphi 0, %s32
      %s12 = sphi 0, %s28
      %s13 = sphi 0, %s24
      %s14 = sphi 0, %s10
      %s15 = sphi 0, %s11
      %s16 = sphi 0, %s12
      %s17 = sphi 0, %s13
      %s18 = sphi 0, %s14
      %s19 = sphi 0, %s15
      %s20 = sphi 0, %s16
      %s21 = sphi 0, %s17
    $region4: #{custom-call.9} parent=1 // loop_header_branch
      %6 = sbr.rel (%p4) target = $region8
    $region5: #{custom-call.9} parent=1 // loop_body
      %s8 = ssub.s32 %s3, 1
      %s9 = ssub.s32 %s3, 2
      %s22 = sadd.s32 1, %s13
      %p23 = scmp.ge.s32.totalorder %s22, 1
      %s24 = scalar_select %p23, 0, %s22
      %s25 = sadd.s32 1, %s12
      %s26 = scalar_select %p23, %s25, %s12
      %p27 = scmp.ge.s32.totalorder %s26, 1
      %s28 = scalar_select %p27, 0, %s26
      %s29 = sadd.s32 1, %s11
      %s30 = scalar_select %p27, %s29, %s11
      %p31 = scmp.ge.s32.totalorder %s30, 1
      %s32 = scalar_select %p31, 0, %s30
      %s33 = sadd.s32 1, %s10
      %s34 = scalar_select %p31, %s33, %s10
      %p35 = scmp.ge.s32.totalorder %s34, 4
      %s36 = scalar_select %p35, 0, %s34
      %p37 = scmp.le.s32.totalorder 1, %s3
      %p38 = scmp.lt.s32.totalorder %s3, 5
      %p39 = pnand %p37, %p38
      %p40 = pneg %p39
      // Predicated region
      $region9: #{custom-call.9} parent=5 // pred_check
        _
      $region10: #{custom-call.9} parent=5 // pred_check_branch
        %42 = sbr.rel (%p39) target = $region12
      $region11: #{custom-call.9} parent=5 // pred_region
        %s43 = ssub.s32 %s3, 1
      $region12: #{custom-call.9} parent=5 // pred_fallthru
        _
      %p44 = scmp.lt.s32.totalorder %s3, 4
      // Predicated region
      $region13: #{custom-call.9} parent=5 // pred_check
        %p45 = pneg %p44
      $region14: #{custom-call.9} parent=5 // pred_check_branch
        %47 = sbr.rel (%p45) target = $region16
      $region15: #{custom-call.9} parent=5 // pred_region
        %s48 = sand.u32 %s3, 1
        %s49 = sand.u32 %s3, 1
        %s50 = smul.addr %s49, 40
        %s51 = scalar_lea.vmem [#allocation0], %s50
        %s52 = sadd.s32 %s13, %s12
        %s53 = smul.addr %s11, 5
        %s54 = sadd.s32 %s52, %s53
        %s55 = smul.addr %s10, 5
        %s56 = sadd.s32 %s54, %s55
        %s57 = smul.addr %s56, 8
        %s58 = scalar_lea.vmem %s0, %s57
        // Predicated region
        $region17: #{custom-call.9} parent=15 // pred_check
          _
        $region18: #{custom-call.9} parent=15 // pred_check_branch
          %60 = sbr.rel (0) target = $region20
        $region19: #{custom-call.9} parent=15 // pred_region
          // Predicated region
          $region21: #{custom-call.9} parent=19 // pred_check
            _
          $region22: #{custom-call.9} parent=19 // pred_check_branch
            %62 = sbr.rel (0) target = $region24
          $region23: #{custom-call.9} parent=19 // pred_region
            // Predicated region
            $region36: #{custom-call.9} parent=23 // pred_check
              _
            $region37: #{custom-call.9} parent=23 // pred_check_branch
              %86 = sbr.rel (0) target = $region39
            $region38: #{custom-call.9} parent=23 // pred_region
              loop: start=0, step=1, limit=1
              $region40: #{custom-call.9} parent=38 // loop_pre_header
                _
              $region41: #{custom-call.9} parent=38 // loop_header
                %s88 = sphi 0, %s92
                %p89 = scmp.ge.s32.totalorder %s88, 1
                %s93 = sphi %s58, %s58
                %s94 = sphi %s51, %s51
              $region42: #{custom-call.9} parent=38 // loop_header_branch
                %91 = sbr.rel (%p89) target = $region46
              $region43: #{custom-call.9} parent=38 // loop_body
                %v95 = vld [vmem:[%s93] sm:$0xff]
                %96 = vst [vmem:[%s94] sm:$0xff] %v95
                %v97 = vld [vmem:[%s93 + $0x8] sm:$0xff]
                %98 = vst [vmem:[%s94 + $0x8] sm:$0xff] %v97
                %v99 = vld [vmem:[%s93 + $0x10] sm:$0xff]
                %100 = vst [vmem:[%s94 + $0x10] sm:$0xff] %v99
                %v101 = vld [vmem:[%s93 + $0x18] sm:$0xff]
                %102 = vst [vmem:[%s94 + $0x18] sm:$0xff] %v101
                %v103 = vld [vmem:[%s93 + $0x20] sm:$0xff]
                %104 = vst [vmem:[%s94 + $0x20] sm:$0xff] %v103
              $region44: #{custom-call.9} parent=38 // loop_footer
                %s92 = sadd.s32 1, %s88
              $region45: #{custom-call.9} parent=38 // loop_footer_branch
                %87 = sbr.rel target = $region41
              $region46: #{custom-call.9} parent=38 // loop_exit
                _
            $region39: #{custom-call.9} parent=23 // pred_fallthru
              _
            // Predicated region
            $region47: #{custom-call.9} parent=23 // pred_check
              _
            $region48: #{custom-call.9} parent=23 // pred_check_branch
              %106 = sbr.rel target = $region50
            $region49: #{custom-call.9} parent=23 // pred_region
              _
            $region50: #{custom-call.9} parent=23 // pred_fallthru
              _
          $region24: #{custom-call.9} parent=19 // pred_fallthru
            _
          // Predicated region
          $region25: #{custom-call.9} parent=19 // pred_check
            _
          $region26: #{custom-call.9} parent=19 // pred_check_branch
            %64 = sbr.rel target = $region28
          $region27: #{custom-call.9} parent=19 // pred_region
            %s66 = ssub.s32 256, 1
            loop: start=0, step=1, limit=1
            $region29: #{custom-call.9} parent=27 // loop_pre_header
              _
            $region30: #{custom-call.9} parent=27 // loop_header
              %s68 = sphi 0, %s72
              %p69 = scmp.ge.s32.totalorder %s68, 1
              %s73 = sphi %s58, %s58
              %s74 = sphi %s51, %s51
            $region31: #{custom-call.9} parent=27 // loop_header_branch
              %71 = sbr.rel (%p69) target = $region35
            $region32: #{custom-call.9} parent=27 // loop_body
              %v75 = vld [vmem:[%s73] sm:%s66]
              %76 = vst [vmem:[%s74] sm:%s66] %v75
              %v77 = vld [vmem:[%s73 + $0x8] sm:%s66]
              %78 = vst [vmem:[%s74 + $0x8] sm:%s66] %v77
              %v79 = vld [vmem:[%s73 + $0x10] sm:%s66]
              %80 = vst [vmem:[%s74 + $0x10] sm:%s66] %v79
              %v81 = vld [vmem:[%s73 + $0x18] sm:%s66]
              %82 = vst [vmem:[%s74 + $0x18] sm:%s66] %v81
              %v83 = vld [vmem:[%s73 + $0x20] sm:%s66]
              %84 = vst [vmem:[%s74 + $0x20] sm:%s66] %v83
            $region33: #{custom-call.9} parent=27 // loop_footer
              %s72 = sadd.s32 1, %s68
            $region34: #{custom-call.9} parent=27 // loop_footer_branch
              %67 = sbr.rel target = $region30
            $region35: #{custom-call.9} parent=27 // loop_exit
              _
          $region28: #{custom-call.9} parent=19 // pred_fallthru
            _
        $region20: #{custom-call.9} parent=15 // pred_fallthru
          _
        %107 = vnop
      $region16: #{custom-call.9} parent=5 // pred_fallthru
        _
      %p108 = scmp.le.s32.totalorder 1, %s3
      %p109 = scmp.lt.s32.totalorder %s3, 5
      %p110 = pnand %p108, %p109
      %p111 = pneg %p110
      // Predicated region
      $region51: #{custom-call.9} parent=5 // pred_check
        _
      $region52: #{custom-call.9} parent=5 // pred_check_branch
        %113 = sbr.rel (%p110) target = $region54
      $region53: #{custom-call.9} parent=5 // pred_region
        #allocation2 [shape = 'f32[36,36]{1,0}', space=vmem, size = 0x5000, scoped, tag = 'rescaled input a']
        %s114 = ssub.s32 %s3, 1
        %s115 = sand.u32 %s8, 1
        %s116 = sand.u32 %s8, 1
        %s117 = smul.addr %s116, 40
        %s118 = scalar_lea.vmem [#allocation0], %s117
        %s119 = sand.u32 %s8, 1
        %s120 = sand.u32 %s8, 1
        %s121 = smul.addr %s120, 40
        %s122 = scalar_lea.vmem [#allocation0], %s121
        %s123 = sand.u32 %s8, 1
        %s124 = sand.u32 %s8, 1
        %s125 = smul.addr %s124, 40
        %s126 = scalar_lea.vmem [#allocation1], %s125
        %v127 = vlaneseq
        %v128 = vand.u32 %v127, 127
        %vm129 = vcmp.lt.s32.totalorder %v128, 36
        %v130 = vlaneseq
        %v131 = vshrl.u32 %v130, 7
        %vm133 = vcmp.eq.s32.totalorder %v131, %v128
        %v134 = vld [vmem:[%s118] sm:$0xff]
        %v135 = vsel %vm133, %v134, 0.0
        %136 = vadd.xlane.f32.xlu0 %v135
        %v137 = vpop.xlane.xlu0 %136
        %vm138 = vcmp.le.s32.totalorder %v131, %v128
        %vm139 = vmand %vm138, %vm129
        %v140 = vsel %vm139, %v134, 0.0
        %v141 = vrcp.pop %v137
        %v142 = vmul.f32 %v140, %v141
        %143 = vst [vmem:[#allocation2] sm:$0xff] %v142
        %s144 = scalar_lea.vmem %s118, 8 [#allocation0]
        %s145 = scalar_lea.vmem [#allocation2], 8
        %v146 = vlaneseq
        %v147 = vshrl.u32 %v146, 7
        %v148 = vadd.s32 %v147, 8
        %vm149 = vcmp.eq.s32.totalorder %v148, %v128
        %v150 = vld [vmem:[%s144] sm:$0xff]
        %v151 = vsel %vm149, %v150, 0.0
        %152 = vadd.xlane.f32.xlu0 %v151
        %v153 = vpop.xlane.xlu0 %152
        %vm154 = vcmp.le.s32.totalorder %v148, %v128
        %vm155 = vmand %vm154, %vm129
        %v156 = vsel %vm155, %v150, 0.0
        %v157 = vrcp.pop %v153
        %v158 = vmul.f32 %v156, %v157
        %159 = vst [vmem:[%s145] sm:$0xff] %v158
        %s160 = scalar_lea.vmem %s118, 16 [#allocation0]
        %s161 = scalar_lea.vmem [#allocation2], 16
        %v162 = vlaneseq
        %v163 = vshrl.u32 %v162, 7
        %v164 = vadd.s32 %v163, 16
        %vm165 = vcmp.eq.s32.totalorder %v164, %v128
        %v166 = vld [vmem:[%s160] sm:$0xff]
        %v167 = vsel %vm165, %v166, 0.0
        %168 = vadd.xlane.f32.xlu0 %v167
        %v169 = vpop.xlane.xlu0 %168
        %vm170 = vcmp.le.s32.totalorder %v164, %v128
        %vm171 = vmand %vm170, %vm129
        %v172 = vsel %vm171, %v166, 0.0
        %v173 = vrcp.pop %v169
        %v174 = vmul.f32 %v172, %v173
        %175 = vst [vmem:[%s161] sm:$0xff] %v174
        %s176 = scalar_lea.vmem %s118, 24 [#allocation0]
        %s177 = scalar_lea.vmem [#allocation2], 24
        %v178 = vlaneseq
        %v179 = vshrl.u32 %v178, 7
        %v180 = vadd.s32 %v179, 24
        %vm181 = vcmp.eq.s32.totalorder %v180, %v128
        %v182 = vld [vmem:[%s176] sm:$0xff]
        %v183 = vsel %vm181, %v182, 0.0
        %184 = vadd.xlane.f32.xlu0 %v183
        %v185 = vpop.xlane.xlu0 %184
        %vm186 = vcmp.le.s32.totalorder %v180, %v128
        %vm187 = vmand %vm186, %vm129
        %v188 = vsel %vm187, %v182, 0.0
        %v189 = vrcp.pop %v185
        %v190 = vmul.f32 %v188, %v189
        %191 = vst [vmem:[%s177] sm:$0xff] %v190
        %s192 = scalar_lea.vmem %s118, 32 [#allocation0]
        %s193 = scalar_lea.vmem [#allocation2], 32
        %v194 = vlaneseq
        %v195 = vshrl.u32 %v194, 7
        %v196 = vadd.s32 %v195, 32
        %vm197 = vcmp.eq.s32.totalorder %v196, %v128
        %v198 = vld [vmem:[%s192] sm:$0xff]
        %v199 = vsel %vm197, %v198, 0.0
        %200 = vadd.xlane.f32.xlu0 %v199
        %v201 = vpop.xlane.xlu0 %200
        %vm202 = vcmp.le.s32.totalorder %v196, %v128
        %vm203 = vmand %vm202, %vm129
        %v204 = vsel %vm203, %v198, 0.0
        %v205 = vrcp.pop %v201
        %v206 = vmul.f32 %v204, %v205
        %207 = vst [vmem:[%s193] sm:$0xff] %v206
        %v208 = vlaneseq
        %v209 = vand.u32 %v208, 127
        %v210 = vlaneseq
        %v211 = vshrl.u32 %v210, 7
        %vm213 = vcmp.eq.s32.totalorder %v209, %v211
        %v214 = vsel %vm213, -1.0, 0.0
        %v215 = vlaneseq
        %v216 = vand.u32 %v215, 127
        %v217 = vlaneseq
        %v218 = vshrl.u32 %v217, 7
        %v219 = vadd.s32 %v218, 8
        %vm220 = vcmp.eq.s32.totalorder %v216, %v219
        %v221 = vsel %vm220, -1.0, 0.0
        %v222 = vlaneseq
        %v223 = vand.u32 %v222, 127
        %v224 = vlaneseq
        %v225 = vshrl.u32 %v224, 7
        %v226 = vadd.s32 %v225, 16
        %vm227 = vcmp.eq.s32.totalorder %v223, %v226
        %v228 = vsel %vm227, -1.0, 0.0
        %v229 = vlaneseq
        %v230 = vand.u32 %v229, 127
        %v231 = vlaneseq
        %v232 = vshrl.u32 %v231, 7
        %v233 = vadd.s32 %v232, 24
        %vm234 = vcmp.eq.s32.totalorder %v230, %v233
        %v235 = vsel %vm234, -1.0, 0.0
        %v236 = vlaneseq
        %v237 = vand.u32 %v236, 127
        %v238 = vlaneseq
        %v239 = vshrl.u32 %v238, 7
        %v240 = vadd.s32 %v239, 32
        %vm241 = vcmp.eq.s32.totalorder %v237, %v240
        %v242 = vlaneseq
        %v243 = vand.u32 %v242, 127
        %vm244 = vcmp.eq.s32.totalorder %v243, 35
        %v245 = vsel %vm244, 1.0, -1.0
        %v246 = vsel %vm241, %v245, 0.0
        %s247 = scalar_lea.vmem [#allocation2], 34
        %v248 = vld [vmem:[%s247] ss:$0 sm:$0xff]
        %v249 = vxor.u32 %v248, 2147483648
        %v250 = vlaneseq
        %v251 = vand.u32 %v250, 127
        %vm252 = vcmp.eq.s32.totalorder %v251, 34
        %v253 = vmul.f32 %v249, %v246
        %254 = vadd.xlane.f32.xlu0 %v253
        %v255 = vpop.xlane.xlu0 %254
        %v256 = vsel %vm252, %v255, %v246
        %s257 = scalar_lea.vmem [#allocation2], 33
        %v258 = vld [vmem:[%s257] ss:$0 sm:$0xff]
        %v259 = vxor.u32 %v258, 2147483648
        %v260 = vlaneseq
        %v261 = vand.u32 %v260, 127
        %vm262 = vcmp.eq.s32.totalorder %v261, 33
        %v263 = vmul.f32 %v259, %v256
        %264 = vadd.xlane.f32.xlu0 %v263
        %v265 = vpop.xlane.xlu0 %264
        %v266 = vsel %vm262, %v265, %v256
        %s267 = scalar_lea.vmem [#allocation2], 32
        %v268 = vld [vmem:[%s267] ss:$0 sm:$0xff]
        %v269 = vxor.u32 %v268, 2147483648
        %v270 = vlaneseq
        %v271 = vand.u32 %v270, 127
        %vm272 = vcmp.eq.s32.totalorder %v271, 32
        %v273 = vmul.f32 %v269, %v266
        %274 = vadd.xlane.f32.xlu0 %v273
        %v275 = vpop.xlane.xlu0 %274
        %v276 = vsel %vm272, %v275, %v266
        %s277 = scalar_lea.vmem [#allocation2], 31
        %v278 = vld [vmem:[%s277] ss:$0 sm:$0xff]
        %v279 = vxor.u32 %v278, 2147483648
        %v280 = vlaneseq
        %v281 = vand.u32 %v280, 127
        %vm282 = vcmp.eq.s32.totalorder %v281, 31
        %v283 = vmul.f32 %v279, %v235
        %284 = vadd.xlane.f32.xlu0 %v283
        %v285 = vpop.xlane.xlu0 %284
        %v286 = vsel %vm282, %v285, %v235
        %v287 = vmul.f32 %v279, %v276
        %288 = vadd.xlane.f32.xlu0 %v287
        %v289 = vpop.xlane.xlu0 %288
        %v290 = vsel %vm282, %v289, %v276
        %s291 = scalar_lea.vmem [#allocation2], 30
        %v292 = vld [vmem:[%s291] ss:$0 sm:$0xff]
        %v293 = vxor.u32 %v292, 2147483648
        %v294 = vlaneseq
        %v295 = vand.u32 %v294, 127
        %vm296 = vcmp.eq.s32.totalorder %v295, 30
        %v297 = vmul.f32 %v293, %v286
        %298 = vadd.xlane.f32.xlu0 %v297
        %v299 = vpop.xlane.xlu0 %298
        %v300 = vsel %vm296, %v299, %v286
        %v301 = vmul.f32 %v293, %v290
        %302 = vadd.xlane.f32.xlu0 %v301
        %v303 = vpop.xlane.xlu0 %302
        %v304 = vsel %vm296, %v303, %v290
        %s305 = scalar_lea.vmem [#allocation2], 29
        %v306 = vld [vmem:[%s305] ss:$0 sm:$0xff]
        %v307 = vxor.u32 %v306, 2147483648
        %v308 = vlaneseq
        %v309 = vand.u32 %v308, 127
        %vm310 = vcmp.eq.s32.totalorder %v309, 29
        %v311 = vmul.f32 %v307, %v300
        %312 = vadd.xlane.f32.xlu0 %v311
        %v313 = vpop.xlane.xlu0 %312
        %v314 = vsel %vm310, %v313, %v300
        %v315 = vmul.f32 %v307, %v304
        %316 = vadd.xlane.f32.xlu0 %v315
        %v317 = vpop.xlane.xlu0 %316
        %v318 = vsel %vm310, %v317, %v304
        %s319 = scalar_lea.vmem [#allocation2], 28
        %v320 = vld [vmem:[%s319] ss:$0 sm:$0xff]
        %v321 = vxor.u32 %v320, 2147483648
        %v322 = vlaneseq
        %v323 = vand.u32 %v322, 127
        %vm324 = vcmp.eq.s32.totalorder %v323, 28
        %v325 = vmul.f32 %v321, %v314
        %326 = vadd.xlane.f32.xlu0 %v325
        %v327 = vpop.xlane.xlu0 %326
        %v328 = vsel %vm324, %v327, %v314
        %v329 = vmul.f32 %v321, %v318
        %330 = vadd.xlane.f32.xlu0 %v329
        %v331 = vpop.xlane.xlu0 %330
        %v332 = vsel %vm324, %v331, %v318
        %s333 = scalar_lea.vmem [#allocation2], 27
        %v334 = vld [vmem:[%s333] ss:$0 sm:$0xff]
        %v335 = vxor.u32 %v334, 2147483648
        %v336 = vlaneseq
        %v337 = vand.u32 %v336, 127
        %vm338 = vcmp.eq.s32.totalorder %v337, 27
        %v339 = vmul.f32 %v335, %v328
        %340 = vadd.xlane.f32.xlu0 %v339
        %v341 = vpop.xlane.xlu0 %340
        %v342 = vsel %vm338, %v341, %v328
        %v343 = vmul.f32 %v335, %v332
        %344 = vadd.xlane.f32.xlu0 %v343
        %v345 = vpop.xlane.xlu0 %344
        %v346 = vsel %vm338, %v345, %v332
        %s347 = scalar_lea.vmem [#allocation2], 26
        %v348 = vld [vmem:[%s347] ss:$0 sm:$0xff]
        %v349 = vxor.u32 %v348, 2147483648
        %v350 = vlaneseq
        %v351 = vand.u32 %v350, 127
        %vm352 = vcmp.eq.s32.totalorder %v351, 26
        %v353 = vmul.f32 %v349, %v342
        %354 = vadd.xlane.f32.xlu0 %v353
        %v355 = vpop.xlane.xlu0 %354
        %v356 = vsel %vm352, %v355, %v342
        %v357 = vmul.f32 %v349, %v346
        %358 = vadd.xlane.f32.xlu0 %v357
        %v359 = vpop.xlane.xlu0 %358
        %v360 = vsel %vm352, %v359, %v346
        %s361 = scalar_lea.vmem [#allocation2], 25
        %v362 = vld [vmem:[%s361] ss:$0 sm:$0xff]
        %v363 = vxor.u32 %v362, 2147483648
        %v364 = vlaneseq
        %v365 = vand.u32 %v364, 127
        %vm366 = vcmp.eq.s32.totalorder %v365, 25
        %v367 = vmul.f32 %v363, %v356
        %368 = vadd.xlane.f32.xlu0 %v367
        %v369 = vpop.xlane.xlu0 %368
        %v370 = vsel %vm366, %v369, %v356
        %v371 = vmul.f32 %v363, %v360
        %372 = vadd.xlane.f32.xlu0 %v371
        %v373 = vpop.xlane.xlu0 %372
        %v374 = vsel %vm366, %v373, %v360
        %s375 = scalar_lea.vmem [#allocation2], 24
        %v376 = vld [vmem:[%s375] ss:$0 sm:$0xff]
        %v377 = vxor.u32 %v376, 2147483648
        %v378 = vlaneseq
        %v379 = vand.u32 %v378, 127
        %vm380 = vcmp.eq.s32.totalorder %v379, 24
        %v381 = vmul.f32 %v377, %v370
        %382 = vadd.xlane.f32.xlu0 %v381
        %v383 = vpop.xlane.xlu0 %382
        %v384 = vsel %vm380, %v383, %v370
        %v385 = vmul.f32 %v377, %v374
        %386 = vadd.xlane.f32.xlu0 %v385
        %v387 = vpop.xlane.xlu0 %386
        %v388 = vsel %vm380, %v387, %v374
        %s389 = scalar_lea.vmem [#allocation2], 23
        %v390 = vld [vmem:[%s389] ss:$0 sm:$0xff]
        %v391 = vxor.u32 %v390, 2147483648
        %v392 = vlaneseq
        %v393 = vand.u32 %v392, 127
        %vm394 = vcmp.eq.s32.totalorder %v393, 23
        %v395 = vmul.f32 %v391, %v228
        %396 = vadd.xlane.f32.xlu0 %v395
        %v397 = vpop.xlane.xlu0 %396
        %v398 = vsel %vm394, %v397, %v228
        %v399 = vmul.f32 %v391, %v384
        %400 = vadd.xlane.f32.xlu0 %v399
        %v401 = vpop.xlane.xlu0 %400
        %v402 = vsel %vm394, %v401, %v384
        %v403 = vmul.f32 %v391, %v388
        %404 = vadd.xlane.f32.xlu0 %v403
        %v405 = vpop.xlane.xlu0 %404
        %v406 = vsel %vm394, %v405, %v388
        %s407 = scalar_lea.vmem [#allocation2], 22
        %v408 = vld [vmem:[%s407] ss:$0 sm:$0xff]
        %v409 = vxor.u32 %v408, 2147483648
        %v410 = vlaneseq
        %v411 = vand.u32 %v410, 127
        %vm412 = vcmp.eq.s32.totalorder %v411, 22
        %v413 = vmul.f32 %v409, %v398
        %414 = vadd.xlane.f32.xlu0 %v413
        %v415 = vpop.xlane.xlu0 %414
        %v416 = vsel %vm412, %v415, %v398
        %v417 = vmul.f32 %v409, %v402
        %418 = vadd.xlane.f32.xlu0 %v417
        %v419 = vpop.xlane.xlu0 %418
        %v420 = vsel %vm412, %v419, %v402
        %v421 = vmul.f32 %v409, %v406
        %422 = vadd.xlane.f32.xlu0 %v421
        %v423 = vpop.xlane.xlu0 %422
        %v424 = vsel %vm412, %v423, %v406
        %s425 = scalar_lea.vmem [#allocation2], 21
        %v426 = vld [vmem:[%s425] ss:$0 sm:$0xff]
        %v427 = vxor.u32 %v426, 2147483648
        %v428 = vlaneseq
        %v429 = vand.u32 %v428, 127
        %vm430 = vcmp.eq.s32.totalorder %v429, 21
        %v431 = vmul.f32 %v427, %v416
        %432 = vadd.xlane.f32.xlu0 %v431
        %v433 = vpop.xlane.xlu0 %432
        %v434 = vsel %vm430, %v433, %v416
        %v435 = vmul.f32 %v427, %v420
        %436 = vadd.xlane.f32.xlu0 %v435
        %v437 = vpop.xlane.xlu0 %436
        %v438 = vsel %vm430, %v437, %v420
        %v439 = vmul.f32 %v427, %v424
        %440 = vadd.xlane.f32.xlu0 %v439
        %v441 = vpop.xlane.xlu0 %440
        %v442 = vsel %vm430, %v441, %v424
        %s443 = scalar_lea.vmem [#allocation2], 20
        %v444 = vld [vmem:[%s443] ss:$0 sm:$0xff]
        %v445 = vxor.u32 %v444, 2147483648
        %v446 = vlaneseq
        %v447 = vand.u32 %v446, 127
        %vm448 = vcmp.eq.s32.totalorder %v447, 20
        %v449 = vmul.f32 %v445, %v434
        %450 = vadd.xlane.f32.xlu0 %v449
        %v451 = vpop.xlane.xlu0 %450
        %v452 = vsel %vm448, %v451, %v434
        %v453 = vmul.f32 %v445, %v438
        %454 = vadd.xlane.f32.xlu0 %v453
        %v455 = vpop.xlane.xlu0 %454
        %v456 = vsel %vm448, %v455, %v438
        %v457 = vmul.f32 %v445, %v442
        %458 = vadd.xlane.f32.xlu0 %v457
        %v459 = vpop.xlane.xlu0 %458
        %v460 = vsel %vm448, %v459, %v442
        %s461 = scalar_lea.vmem [#allocation2], 19
        %v462 = vld [vmem:[%s461] ss:$0 sm:$0xff]
        %v463 = vxor.u32 %v462, 2147483648
        %v464 = vlaneseq
        %v465 = vand.u32 %v464, 127
        %vm466 = vcmp.eq.s32.totalorder %v465, 19
        %v467 = vmul.f32 %v463, %v452
        %468 = vadd.xlane.f32.xlu0 %v467
        %v469 = vpop.xlane.xlu0 %468
        %v470 = vsel %vm466, %v469, %v452
        %v471 = vmul.f32 %v463, %v456
        %472 = vadd.xlane.f32.xlu0 %v471
        %v473 = vpop.xlane.xlu0 %472
        %v474 = vsel %vm466, %v473, %v456
        %v475 = vmul.f32 %v463, %v460
        %476 = vadd.xlane.f32.xlu0 %v475
        %v477 = vpop.xlane.xlu0 %476
        %v478 = vsel %vm466, %v477, %v460
        %s479 = scalar_lea.vmem [#allocation2], 18
        %v480 = vld [vmem:[%s479] ss:$0 sm:$0xff]
        %v481 = vxor.u32 %v480, 2147483648
        %v482 = vlaneseq
        %v483 = vand.u32 %v482, 127
        %vm484 = vcmp.eq.s32.totalorder %v483, 18
        %v485 = vmul.f32 %v481, %v470
        %486 = vadd.xlane.f32.xlu0 %v485
        %v487 = vpop.xlane.xlu0 %486
        %v488 = vsel %vm484, %v487, %v470
        %v489 = vmul.f32 %v481, %v474
        %490 = vadd.xlane.f32.xlu0 %v489
        %v491 = vpop.xlane.xlu0 %490
        %v492 = vsel %vm484, %v491, %v474
        %v493 = vmul.f32 %v481, %v478
        %494 = vadd.xlane.f32.xlu0 %v493
        %v495 = vpop.xlane.xlu0 %494
        %v496 = vsel %vm484, %v495, %v478
        %s497 = scalar_lea.vmem [#allocation2], 17
        %v498 = vld [vmem:[%s497] ss:$0 sm:$0xff]
        %v499 = vxor.u32 %v498, 2147483648
        %v500 = vlaneseq
        %v501 = vand.u32 %v500, 127
        %vm502 = vcmp.eq.s32.totalorder %v501, 17
        %v503 = vmul.f32 %v499, %v488
        %504 = vadd.xlane.f32.xlu0 %v503
        %v505 = vpop.xlane.xlu0 %504
        %v506 = vsel %vm502, %v505, %v488
        %v507 = vmul.f32 %v499, %v492
        %508 = vadd.xlane.f32.xlu0 %v507
        %v509 = vpop.xlane.xlu0 %508
        %v510 = vsel %vm502, %v509, %v492
        %v511 = vmul.f32 %v499, %v496
        %512 = vadd.xlane.f32.xlu0 %v511
        %v513 = vpop.xlane.xlu0 %512
        %v514 = vsel %vm502, %v513, %v496
        %s515 = scalar_lea.vmem [#allocation2], 16
        %v516 = vld [vmem:[%s515] ss:$0 sm:$0xff]
        %v517 = vxor.u32 %v516, 2147483648
        %v518 = vlaneseq
        %v519 = vand.u32 %v518, 127
        %vm520 = vcmp.eq.s32.totalorder %v519, 16
        %v521 = vmul.f32 %v517, %v506
        %522 = vadd.xlane.f32.xlu0 %v521
        %v523 = vpop.xlane.xlu0 %522
        %v524 = vsel %vm520, %v523, %v506
        %v525 = vmul.f32 %v517, %v510
        %526 = vadd.xlane.f32.xlu0 %v525
        %v527 = vpop.xlane.xlu0 %526
        %v528 = vsel %vm520, %v527, %v510
        %v529 = vmul.f32 %v517, %v514
        %530 = vadd.xlane.f32.xlu0 %v529
        %v531 = vpop.xlane.xlu0 %530
        %v532 = vsel %vm520, %v531, %v514
        %s533 = scalar_lea.vmem [#allocation2], 15
        %v534 = vld [vmem:[%s533] ss:$0 sm:$0xff]
        %v535 = vxor.u32 %v534, 2147483648
        %v536 = vlaneseq
        %v537 = vand.u32 %v536, 127
        %vm538 = vcmp.eq.s32.totalorder %v537, 15
        %v539 = vmul.f32 %v535, %v221
        %540 = vadd.xlane.f32.xlu0 %v539
        %v541 = vpop.xlane.xlu0 %540
        %v542 = vsel %vm538, %v541, %v221
        %v543 = vmul.f32 %v535, %v524
        %544 = vadd.xlane.f32.xlu0 %v543
        %v545 = vpop.xlane.xlu0 %544
        %v546 = vsel %vm538, %v545, %v524
        %v547 = vmul.f32 %v535, %v528
        %548 = vadd.xlane.f32.xlu0 %v547
        %v549 = vpop.xlane.xlu0 %548
        %v550 = vsel %vm538, %v549, %v528
        %v551 = vmul.f32 %v535, %v532
        %552 = vadd.xlane.f32.xlu0 %v551
        %v553 = vpop.xlane.xlu0 %552
        %v554 = vsel %vm538, %v553, %v532
        %s555 = scalar_lea.vmem [#allocation2], 14
        %v556 = vld [vmem:[%s555] ss:$0 sm:$0xff]
        %v557 = vxor.u32 %v556, 2147483648
        %v558 = vlaneseq
        %v559 = vand.u32 %v558, 127
        %vm560 = vcmp.eq.s32.totalorder %v559, 14
        %v561 = vmul.f32 %v557, %v542
        %562 = vadd.xlane.f32.xlu0 %v561
        %v563 = vpop.xlane.xlu0 %562
        %v564 = vsel %vm560, %v563, %v542
        %v565 = vmul.f32 %v557, %v546
        %566 = vadd.xlane.f32.xlu0 %v565
        %v567 = vpop.xlane.xlu0 %566
        %v568 = vsel %vm560, %v567, %v546
        %v569 = vmul.f32 %v557, %v550
        %570 = vadd.xlane.f32.xlu0 %v569
        %v571 = vpop.xlane.xlu0 %570
        %v572 = vsel %vm560, %v571, %v550
        %v573 = vmul.f32 %v557, %v554
        %574 = vadd.xlane.f32.xlu0 %v573
        %v575 = vpop.xlane.xlu0 %574
        %v576 = vsel %vm560, %v575, %v554
        %s577 = scalar_lea.vmem [#allocation2], 13
        %v578 = vld [vmem:[%s577] ss:$0 sm:$0xff]
        %v579 = vxor.u32 %v578, 2147483648
        %v580 = vlaneseq
        %v581 = vand.u32 %v580, 127
        %vm582 = vcmp.eq.s32.totalorder %v581, 13
        %v583 = vmul.f32 %v579, %v564
        %584 = vadd.xlane.f32.xlu0 %v583
        %v585 = vpop.xlane.xlu0 %584
        %v586 = vsel %vm582, %v585, %v564
        %v587 = vmul.f32 %v579, %v568
        %588 = vadd.xlane.f32.xlu0 %v587
        %v589 = vpop.xlane.xlu0 %588
        %v590 = vsel %vm582, %v589, %v568
        %v591 = vmul.f32 %v579, %v572
        %592 = vadd.xlane.f32.xlu0 %v591
        %v593 = vpop.xlane.xlu0 %592
        %v594 = vsel %vm582, %v593, %v572
        %v595 = vmul.f32 %v579, %v576
        %596 = vadd.xlane.f32.xlu0 %v595
        %v597 = vpop.xlane.xlu0 %596
        %v598 = vsel %vm582, %v597, %v576
        %s599 = scalar_lea.vmem [#allocation2], 12
        %v600 = vld [vmem:[%s599] ss:$0 sm:$0xff]
        %v601 = vxor.u32 %v600, 2147483648
        %v602 = vlaneseq
        %v603 = vand.u32 %v602, 127
        %vm604 = vcmp.eq.s32.totalorder %v603, 12
        %v605 = vmul.f32 %v601, %v586
        %606 = vadd.xlane.f32.xlu0 %v605
        %v607 = vpop.xlane.xlu0 %606
        %v608 = vsel %vm604, %v607, %v586
        %v609 = vmul.f32 %v601, %v590
        %610 = vadd.xlane.f32.xlu0 %v609
        %v611 = vpop.xlane.xlu0 %610
        %v612 = vsel %vm604, %v611, %v590
        %v613 = vmul.f32 %v601, %v594
        %614 = vadd.xlane.f32.xlu0 %v613
        %v615 = vpop.xlane.xlu0 %614
        %v616 = vsel %vm604, %v615, %v594
        %v617 = vmul.f32 %v601, %v598
        %618 = vadd.xlane.f32.xlu0 %v617
        %v619 = vpop.xlane.xlu0 %618
        %v620 = vsel %vm604, %v619, %v598
        %s621 = scalar_lea.vmem [#allocation2], 11
        %v622 = vld [vmem:[%s621] ss:$0 sm:$0xff]
        %v623 = vxor.u32 %v622, 2147483648
        %v624 = vlaneseq
        %v625 = vand.u32 %v624, 127
        %vm626 = vcmp.eq.s32.totalorder %v625, 11
        %v627 = vmul.f32 %v623, %v608
        %628 = vadd.xlane.f32.xlu0 %v627
        %v629 = vpop.xlane.xlu0 %628
        %v630 = vsel %vm626, %v629, %v608
        %v631 = vmul.f32 %v623, %v612
        %632 = vadd.xlane.f32.xlu0 %v631
        %v633 = vpop.xlane.xlu0 %632
        %v634 = vsel %vm626, %v633, %v612
        %v635 = vmul.f32 %v623, %v616
        %636 = vadd.xlane.f32.xlu0 %v635
        %v637 = vpop.xlane.xlu0 %636
        %v638 = vsel %vm626, %v637, %v616
        %v639 = vmul.f32 %v623, %v620
        %640 = vadd.xlane.f32.xlu0 %v639
        %v641 = vpop.xlane.xlu0 %640
        %v642 = vsel %vm626, %v641, %v620
        %s643 = scalar_lea.vmem [#allocation2], 10
        %v644 = vld [vmem:[%s643] ss:$0 sm:$0xff]
        %v645 = vxor.u32 %v644, 2147483648
        %v646 = vlaneseq
        %v647 = vand.u32 %v646, 127
        %vm648 = vcmp.eq.s32.totalorder %v647, 10
        %v649 = vmul.f32 %v645, %v630
        %650 = vadd.xlane.f32.xlu0 %v649
        %v651 = vpop.xlane.xlu0 %650
        %v652 = vsel %vm648, %v651, %v630
        %v653 = vmul.f32 %v645, %v634
        %654 = vadd.xlane.f32.xlu0 %v653
        %v655 = vpop.xlane.xlu0 %654
        %v656 = vsel %vm648, %v655, %v634
        %v657 = vmul.f32 %v645, %v638
        %658 = vadd.xlane.f32.xlu0 %v657
        %v659 = vpop.xlane.xlu0 %658
        %v660 = vsel %vm648, %v659, %v638
        %v661 = vmul.f32 %v645, %v642
        %662 = vadd.xlane.f32.xlu0 %v661
        %v663 = vpop.xlane.xlu0 %662
        %v664 = vsel %vm648, %v663, %v642
        %s665 = scalar_lea.vmem [#allocation2], 9
        %v666 = vld [vmem:[%s665] ss:$0 sm:$0xff]
        %v667 = vxor.u32 %v666, 2147483648
        %v668 = vlaneseq
        %v669 = vand.u32 %v668, 127
        %vm670 = vcmp.eq.s32.totalorder %v669, 9
        %v671 = vmul.f32 %v667, %v652
        %672 = vadd.xlane.f32.xlu0 %v671
        %v673 = vpop.xlane.xlu0 %672
        %v674 = vsel %vm670, %v673, %v652
        %v675 = vmul.f32 %v667, %v656
        %676 = vadd.xlane.f32.xlu0 %v675
        %v677 = vpop.xlane.xlu0 %676
        %v678 = vsel %vm670, %v677, %v656
        %v679 = vmul.f32 %v667, %v660
        %680 = vadd.xlane.f32.xlu0 %v679
        %v681 = vpop.xlane.xlu0 %680
        %v682 = vsel %vm670, %v681, %v660
        %v683 = vmul.f32 %v667, %v664
        %684 = vadd.xlane.f32.xlu0 %v683
        %v685 = vpop.xlane.xlu0 %684
        %v686 = vsel %vm670, %v685, %v664
        %s687 = scalar_lea.vmem [#allocation2], 8
        %v688 = vld [vmem:[%s687] ss:$0 sm:$0xff]
        %v689 = vxor.u32 %v688, 2147483648
        %v690 = vlaneseq
        %v691 = vand.u32 %v690, 127
        %vm692 = vcmp.eq.s32.totalorder %v691, 8
        %v693 = vmul.f32 %v689, %v674
        %694 = vadd.xlane.f32.xlu0 %v693
        %v695 = vpop.xlane.xlu0 %694
        %v696 = vsel %vm692, %v695, %v674
        %v697 = vmul.f32 %v689, %v678
        %698 = vadd.xlane.f32.xlu0 %v697
        %v699 = vpop.xlane.xlu0 %698
        %v700 = vsel %vm692, %v699, %v678
        %v701 = vmul.f32 %v689, %v682
        %702 = vadd.xlane.f32.xlu0 %v701
        %v703 = vpop.xlane.xlu0 %702
        %v704 = vsel %vm692, %v703, %v682
        %v705 = vmul.f32 %v689, %v686
        %706 = vadd.xlane.f32.xlu0 %v705
        %v707 = vpop.xlane.xlu0 %706
        %v708 = vsel %vm692, %v707, %v686
        %s709 = scalar_lea.vmem [#allocation2], 7
        %v710 = vld [vmem:[%s709] ss:$0 sm:$0xff]
        %v711 = vxor.u32 %v710, 2147483648
        %v712 = vlaneseq
        %v713 = vand.u32 %v712, 127
        %vm714 = vcmp.eq.s32.totalorder %v713, 7
        %v715 = vmul.f32 %v711, %v214
        %716 = vadd.xlane.f32.xlu0 %v715
        %v717 = vpop.xlane.xlu0 %716
        %v718 = vsel %vm714, %v717, %v214
        %v719 = vmul.f32 %v711, %v696
        %720 = vadd.xlane.f32.xlu0 %v719
        %v721 = vpop.xlane.xlu0 %720
        %v722 = vsel %vm714, %v721, %v696
        %v723 = vmul.f32 %v711, %v700
        %724 = vadd.xlane.f32.xlu0 %v723
        %v725 = vpop.xlane.xlu0 %724
        %v726 = vsel %vm714, %v725, %v700
        %v727 = vmul.f32 %v711, %v704
        %728 = vadd.xlane.f32.xlu0 %v727
        %v729 = vpop.xlane.xlu0 %728
        %v730 = vsel %vm714, %v729, %v704
        %v731 = vmul.f32 %v711, %v708
        %732 = vadd.xlane.f32.xlu0 %v731
        %v733 = vpop.xlane.xlu0 %732
        %v734 = vsel %vm714, %v733, %v708
        %s735 = scalar_lea.vmem [#allocation2], 6
        %v736 = vld [vmem:[%s735] ss:$0 sm:$0xff]
        %v737 = vxor.u32 %v736, 2147483648
        %v738 = vlaneseq
        %v739 = vand.u32 %v738, 127
        %vm740 = vcmp.eq.s32.totalorder %v739, 6
        %v741 = vmul.f32 %v737, %v718
        %742 = vadd.xlane.f32.xlu0 %v741
        %v743 = vpop.xlane.xlu0 %742
        %v744 = vsel %vm740, %v743, %v718
        %v745 = vmul.f32 %v737, %v722
        %746 = vadd.xlane.f32.xlu0 %v745
        %v747 = vpop.xlane.xlu0 %746
        %v748 = vsel %vm740, %v747, %v722
        %v749 = vmul.f32 %v737, %v726
        %750 = vadd.xlane.f32.xlu0 %v749
        %v751 = vpop.xlane.xlu0 %750
        %v752 = vsel %vm740, %v751, %v726
        %v753 = vmul.f32 %v737, %v730
        %754 = vadd.xlane.f32.xlu0 %v753
        %v755 = vpop.xlane.xlu0 %754
        %v756 = vsel %vm740, %v755, %v730
        %v757 = vmul.f32 %v737, %v734
        %758 = vadd.xlane.f32.xlu0 %v757
        %v759 = vpop.xlane.xlu0 %758
        %v760 = vsel %vm740, %v759, %v734
        %s761 = scalar_lea.vmem [#allocation2], 5
        %v762 = vld [vmem:[%s761] ss:$0 sm:$0xff]
        %v763 = vxor.u32 %v762, 2147483648
        %v764 = vlaneseq
        %v765 = vand.u32 %v764, 127
        %vm766 = vcmp.eq.s32.totalorder %v765, 5
        %v767 = vmul.f32 %v763, %v744
        %768 = vadd.xlane.f32.xlu0 %v767
        %v769 = vpop.xlane.xlu0 %768
        %v770 = vsel %vm766, %v769, %v744
        %v771 = vmul.f32 %v763, %v748
        %772 = vadd.xlane.f32.xlu0 %v771
        %v773 = vpop.xlane.xlu0 %772
        %v774 = vsel %vm766, %v773, %v748
        %v775 = vmul.f32 %v763, %v752
        %776 = vadd.xlane.f32.xlu0 %v775
        %v777 = vpop.xlane.xlu0 %776
        %v778 = vsel %vm766, %v777, %v752
        %v779 = vmul.f32 %v763, %v756
        %780 = vadd.xlane.f32.xlu0 %v779
        %v781 = vpop.xlane.xlu0 %780
        %v782 = vsel %vm766, %v781, %v756
        %v783 = vmul.f32 %v763, %v760
        %784 = vadd.xlane.f32.xlu0 %v783
        %v785 = vpop.xlane.xlu0 %784
        %v786 = vsel %vm766, %v785, %v760
        %s787 = scalar_lea.vmem [#allocation2], 4
        %v788 = vld [vmem:[%s787] ss:$0 sm:$0xff]
        %v789 = vxor.u32 %v788, 2147483648
        %v790 = vlaneseq
        %v791 = vand.u32 %v790, 127
        %vm792 = vcmp.eq.s32.totalorder %v791, 4
        %v793 = vmul.f32 %v789, %v770
        %794 = vadd.xlane.f32.xlu0 %v793
        %v795 = vpop.xlane.xlu0 %794
        %v796 = vsel %vm792, %v795, %v770
        %v797 = vmul.f32 %v789, %v774
        %798 = vadd.xlane.f32.xlu0 %v797
        %v799 = vpop.xlane.xlu0 %798
        %v800 = vsel %vm792, %v799, %v774
        %v801 = vmul.f32 %v789, %v778
        %802 = vadd.xlane.f32.xlu0 %v801
        %v803 = vpop.xlane.xlu0 %802
        %v804 = vsel %vm792, %v803, %v778
        %v805 = vmul.f32 %v789, %v782
        %806 = vadd.xlane.f32.xlu0 %v805
        %v807 = vpop.xlane.xlu0 %806
        %v808 = vsel %vm792, %v807, %v782
        %v809 = vmul.f32 %v789, %v786
        %810 = vadd.xlane.f32.xlu0 %v809
        %v811 = vpop.xlane.xlu0 %810
        %v812 = vsel %vm792, %v811, %v786
        %s813 = scalar_lea.vmem [#allocation2], 3
        %v814 = vld [vmem:[%s813] ss:$0 sm:$0xff]
        %v815 = vxor.u32 %v814, 2147483648
        %v816 = vlaneseq
        %v817 = vand.u32 %v816, 127
        %vm818 = vcmp.eq.s32.totalorder %v817, 3
        %v819 = vmul.f32 %v815, %v796
        %820 = vadd.xlane.f32.xlu0 %v819
        %v821 = vpop.xlane.xlu0 %820
        %v822 = vsel %vm818, %v821, %v796
        %v823 = vmul.f32 %v815, %v800
        %824 = vadd.xlane.f32.xlu0 %v823
        %v825 = vpop.xlane.xlu0 %824
        %v826 = vsel %vm818, %v825, %v800
        %v827 = vmul.f32 %v815, %v804
        %828 = vadd.xlane.f32.xlu0 %v827
        %v829 = vpop.xlane.xlu0 %828
        %v830 = vsel %vm818, %v829, %v804
        %v831 = vmul.f32 %v815, %v808
        %832 = vadd.xlane.f32.xlu0 %v831
        %v833 = vpop.xlane.xlu0 %832
        %v834 = vsel %vm818, %v833, %v808
        %v835 = vmul.f32 %v815, %v812
        %836 = vadd.xlane.f32.xlu0 %v835
        %v837 = vpop.xlane.xlu0 %836
        %v838 = vsel %vm818, %v837, %v812
        %s839 = scalar_lea.vmem [#allocation2], 2
        %v840 = vld [vmem:[%s839] ss:$0 sm:$0xff]
        %v841 = vxor.u32 %v840, 2147483648
        %v842 = vlaneseq
        %v843 = vand.u32 %v842, 127
        %vm844 = vcmp.eq.s32.totalorder %v843, 2
        %v845 = vmul.f32 %v841, %v822
        %846 = vadd.xlane.f32.xlu0 %v845
        %v847 = vpop.xlane.xlu0 %846
        %v848 = vsel %vm844, %v847, %v822
        %v849 = vmul.f32 %v841, %v826
        %850 = vadd.xlane.f32.xlu0 %v849
        %v851 = vpop.xlane.xlu0 %850
        %v852 = vsel %vm844, %v851, %v826
        %v853 = vmul.f32 %v841, %v830
        %854 = vadd.xlane.f32.xlu0 %v853
        %v855 = vpop.xlane.xlu0 %854
        %v856 = vsel %vm844, %v855, %v830
        %v857 = vmul.f32 %v841, %v834
        %858 = vadd.xlane.f32.xlu0 %v857
        %v859 = vpop.xlane.xlu0 %858
        %v860 = vsel %vm844, %v859, %v834
        %v861 = vmul.f32 %v841, %v838
        %862 = vadd.xlane.f32.xlu0 %v861
        %v863 = vpop.xlane.xlu0 %862
        %v864 = vsel %vm844, %v863, %v838
        %s865 = scalar_lea.vmem [#allocation2], 1
        %v866 = vld [vmem:[%s865] ss:$0 sm:$0xff]
        %v867 = vxor.u32 %v866, 2147483648
        %v868 = vlaneseq
        %v869 = vand.u32 %v868, 127
        %vm870 = vcmp.eq.s32.totalorder %v869, 1
        %v871 = vmul.f32 %v867, %v848
        %872 = vadd.xlane.f32.xlu0 %v871
        %v873 = vpop.xlane.xlu0 %872
        %v874 = vsel %vm870, %v873, %v848
        %v875 = vmul.f32 %v867, %v852
        %876 = vadd.xlane.f32.xlu0 %v875
        %v877 = vpop.xlane.xlu0 %876
        %v878 = vsel %vm870, %v877, %v852
        %v879 = vmul.f32 %v867, %v856
        %880 = vadd.xlane.f32.xlu0 %v879
        %v881 = vpop.xlane.xlu0 %880
        %v882 = vsel %vm870, %v881, %v856
        %v883 = vmul.f32 %v867, %v860
        %884 = vadd.xlane.f32.xlu0 %v883
        %v885 = vpop.xlane.xlu0 %884
        %v886 = vsel %vm870, %v885, %v860
        %v887 = vmul.f32 %v867, %v864
        %888 = vadd.xlane.f32.xlu0 %v887
        %v889 = vpop.xlane.xlu0 %888
        %v890 = vsel %vm870, %v889, %v864
        %v891 = vld [vmem:[#allocation2] ss:$0 sm:$0xff]
        %v892 = vxor.u32 %v891, 2147483648
        %v893 = vlaneseq
        %v894 = vand.u32 %v893, 127
        %vm895 = vcmp.eq.s32.totalorder %v894, 0
        %v896 = vmul.f32 %v892, %v874
        %897 = vadd.xlane.f32.xlu0 %v896
        %v898 = vpop.xlane.xlu0 %897
        %v899 = vsel %vm895, %v898, %v874
        %v900 = vmul.f32 %v892, %v878
        %901 = vadd.xlane.f32.xlu0 %v900
        %v902 = vpop.xlane.xlu0 %901
        %v903 = vsel %vm895, %v902, %v878
        %v904 = vmul.f32 %v892, %v882
        %905 = vadd.xlane.f32.xlu0 %v904
        %v906 = vpop.xlane.xlu0 %905
        %v907 = vsel %vm895, %v906, %v882
        %v908 = vmul.f32 %v892, %v886
        %909 = vadd.xlane.f32.xlu0 %v908
        %v910 = vpop.xlane.xlu0 %909
        %v911 = vsel %vm895, %v910, %v886
        %v912 = vmul.f32 %v892, %v890
        %913 = vadd.xlane.f32.xlu0 %v912
        %v914 = vpop.xlane.xlu0 %913
        %v915 = vsel %vm895, %v914, %v890
        %v916 = vrcp.pop %v137
        %v917 = vmul.f32 %v899, %v916
        %vm918 = vweird.f32 %v137
        %v919 = vsel %vm918, %v899, %v917
        %920 = vst [vmem:[%s126] sm:$0xff] %v919
        %v921 = vrcp.pop %v153
        %v922 = vmul.f32 %v903, %v921
        %vm923 = vweird.f32 %v153
        %v924 = vsel %vm923, %v903, %v922
        %s925 = scalar_lea.vmem %s126, 8 [#allocation1]
        %926 = vst [vmem:[%s925] sm:$0xff] %v924
        %v927 = vrcp.pop %v169
        %v928 = vmul.f32 %v907, %v927
        %vm929 = vweird.f32 %v169
        %v930 = vsel %vm929, %v907, %v928
        %s931 = scalar_lea.vmem %s126, 16 [#allocation1]
        %932 = vst [vmem:[%s931] sm:$0xff] %v930
        %v933 = vrcp.pop %v185
        %v934 = vmul.f32 %v911, %v933
        %vm935 = vweird.f32 %v185
        %v936 = vsel %vm935, %v911, %v934
        %s937 = scalar_lea.vmem %s126, 24 [#allocation1]
        %938 = vst [vmem:[%s937] sm:$0xff] %v936
        %v939 = vrcp.pop %v201
        %v940 = vmul.f32 %v915, %v939
        %vm941 = vweird.f32 %v201
        %v942 = vsel %vm941, %v915, %v940
        %s943 = scalar_lea.vmem %s126, 32 [#allocation1]
        %944 = vst [vmem:[%s943] sm:$0xff] %v942
        %s945 = sand.u32 %s8, 1
        %s946 = sand.u32 %s8, 1
        %s947 = smul.addr %s946, 40
        %s948 = scalar_lea.vmem [#allocation1], %s947
        %s949 = sadd.s32 %s17, %s16
        %s950 = smul.addr %s15, 5
        %s951 = sadd.s32 %s949, %s950
        %s952 = smul.addr %s14, 5
        %s953 = sadd.s32 %s951, %s952
        %s954 = smul.addr %s953, 8
        %s955 = scalar_lea.vmem %s1, %s954
        // Predicated region
        $region55: #{custom-call.9} parent=53 // pred_check
          _
        $region56: #{custom-call.9} parent=53 // pred_check_branch
          %957 = sbr.rel (0) target = $region58
        $region57: #{custom-call.9} parent=53 // pred_region
          // Predicated region
          $region59: #{custom-call.9} parent=57 // pred_check
            _
          $region60: #{custom-call.9} parent=57 // pred_check_branch
            %959 = sbr.rel (0) target = $region62
          $region61: #{custom-call.9} parent=57 // pred_region
            // Predicated region
            $region74: #{custom-call.9} parent=61 // pred_check
              _
            $region75: #{custom-call.9} parent=61 // pred_check_branch
              %983 = sbr.rel (0) target = $region77
            $region76: #{custom-call.9} parent=61 // pred_region
              loop: start=0, step=1, limit=1
              $region78: #{custom-call.9} parent=76 // loop_pre_header
                _
              $region79: #{custom-call.9} parent=76 // loop_header
                %s985 = sphi 0, %s989
                %p986 = scmp.ge.s32.totalorder %s985, 1
                %s990 = sphi %s948, %s948
                %s991 = sphi %s955, %s955
              $region80: #{custom-call.9} parent=76 // loop_header_branch
                %988 = sbr.rel (%p986) target = $region84
              $region81: #{custom-call.9} parent=76 // loop_body
                %v992 = vld [vmem:[%s990] sm:$0xff]
                %993 = vst [vmem:[%s991] sm:$0xff] %v992
                %v994 = vld [vmem:[%s990 + $0x8] sm:$0xff]
                %995 = vst [vmem:[%s991 + $0x8] sm:$0xff] %v994
                %v996 = vld [vmem:[%s990 + $0x10] sm:$0xff]
                %997 = vst [vmem:[%s991 + $0x10] sm:$0xff] %v996
                %v998 = vld [vmem:[%s990 + $0x18] sm:$0xff]
                %999 = vst [vmem:[%s991 + $0x18] sm:$0xff] %v998
                %v1000 = vld [vmem:[%s990 + $0x20] sm:$0xff]
                %1001 = vst [vmem:[%s991 + $0x20] sm:$0xff] %v1000
              $region82: #{custom-call.9} parent=76 // loop_footer
                %s989 = sadd.s32 1, %s985
              $region83: #{custom-call.9} parent=76 // loop_footer_branch
                %984 = sbr.rel target = $region79
              $region84: #{custom-call.9} parent=76 // loop_exit
                _
            $region77: #{custom-call.9} parent=61 // pred_fallthru
              _
            // Predicated region
            $region85: #{custom-call.9} parent=61 // pred_check
              _
            $region86: #{custom-call.9} parent=61 // pred_check_branch
              %1003 = sbr.rel target = $region88
            $region87: #{custom-call.9} parent=61 // pred_region
              _
            $region88: #{custom-call.9} parent=61 // pred_fallthru
              _
          $region62: #{custom-call.9} parent=57 // pred_fallthru
            _
          // Predicated region
          $region63: #{custom-call.9} parent=57 // pred_check
            _
          $region64: #{custom-call.9} parent=57 // pred_check_branch
            %961 = sbr.rel target = $region66
          $region65: #{custom-call.9} parent=57 // pred_region
            %s963 = ssub.s32 256, 1
            loop: start=0, step=1, limit=1
            $region67: #{custom-call.9} parent=65 // loop_pre_header
              _
            $region68: #{custom-call.9} parent=65 // loop_header
              %s965 = sphi 0, %s969
              %p966 = scmp.ge.s32.totalorder %s965, 1
              %s970 = sphi %s948, %s948
              %s971 = sphi %s955, %s955
            $region69: #{custom-call.9} parent=65 // loop_header_branch
              %968 = sbr.rel (%p966) target = $region73
            $region70: #{custom-call.9} parent=65 // loop_body
              %v972 = vld [vmem:[%s970] sm:%s963]
              %973 = vst [vmem:[%s971] sm:%s963] %v972
              %v974 = vld [vmem:[%s970 + $0x8] sm:%s963]
              %975 = vst [vmem:[%s971 + $0x8] sm:%s963] %v974
              %v976 = vld [vmem:[%s970 + $0x10] sm:%s963]
              %977 = vst [vmem:[%s971 + $0x10] sm:%s963] %v976
              %v978 = vld [vmem:[%s970 + $0x18] sm:%s963]
              %979 = vst [vmem:[%s971 + $0x18] sm:%s963] %v978
              %v980 = vld [vmem:[%s970 + $0x20] sm:%s963]
              %981 = vst [vmem:[%s971 + $0x20] sm:%s963] %v980
            $region71: #{custom-call.9} parent=65 // loop_footer
              %s969 = sadd.s32 1, %s965
            $region72: #{custom-call.9} parent=65 // loop_footer_branch
              %964 = sbr.rel target = $region68
            $region73: #{custom-call.9} parent=65 // loop_exit
              _
          $region66: #{custom-call.9} parent=57 // pred_fallthru
            _
        $region58: #{custom-call.9} parent=53 // pred_fallthru
          _
        %1004 = vnop
      $region54: #{custom-call.9} parent=5 // pred_fallthru
        _
      %p1005 = scmp.le.s32.totalorder 2, %s3
      // Predicated region
      $region89: #{custom-call.9} parent=5 // pred_check
        %p1006 = pneg %p1005
      $region90: #{custom-call.9} parent=5 // pred_check_branch
        %1008 = sbr.rel (%p1006) target = $region92
      $region91: #{custom-call.9} parent=5 // pred_region
        %s1009 = ssub.s32 %s3, 2
        %s1010 = sand.u32 %s9, 1
        %s1011 = sand.u32 %s9, 1
        %s1012 = smul.addr %s1011, 40
        %s1013 = scalar_lea.vmem [#allocation1], %s1012
      $region92: #{custom-call.9} parent=5 // pred_fallthru
        _
    $region6: #{custom-call.9} parent=1 // loop_footer
      %s7 = sadd.s32 1, %s3
    $region7: #{custom-call.9} parent=1 // loop_footer_branch
      %2 = sbr.rel target = $region3
    $region8: #{custom-call.9} parent=1 // loop_exit
      _

// kernel: _reconstruction_step.1
$region0: #{_reconstruction_step.1}
  #allocation0 [shape = 'u32[]', space=smem, size = 0x4, offset = 0x4, fixed_abs, tag = 'smem constant byte address 0x4 - core index']
  #allocation1 [shape = 'u32[144,128]{1,0:T(1,128)}', space=vmem, size = 0x12000, scoped, tag = 'internal scratch']
  %s0 = inlined_call_operand.vmem [shape: f32[256,128], index: 0, kind: input, shape index: {}]
  %s1 = inlined_call_operand.vmem [shape: bf16[128,512], index: 1, kind: input, shape index: {}]
  %s2 = inlined_call_operand.vmem [shape: bf16[128,512], index: 2, kind: input, shape index: {}]
  %s3 = inlined_call_operand.vmem [shape: f32[256,128], index: 3, kind: output, shape index: {}]
  %s4 = sld [smem:[#allocation0]]
  $region22: #{_reconstruction_step.1} parent=0
    _
  %s6 = ssub.s32 1, %s4
  %s7 = scalar_select 0, %s6, %s4
  // Predicated region
  $region2: #{_reconstruction_step.1} parent=0 // pred_check
    _
  $region3: #{_reconstruction_step.1} parent=0 // pred_check_branch
    %9 = sbr.rel (0) target = $region5
  $region4: #{_reconstruction_step.1} parent=0 // pred_region
    _
  $region5: #{_reconstruction_step.1} parent=0 // pred_fallthru
    _
  // Predicated region
  $region6: #{_reconstruction_step.1} parent=0 // pred_check
    _
  $region7: #{_reconstruction_step.1} parent=0 // pred_check_branch
    %11 = sbr.rel (0) target = $region9
  $region8: #{_reconstruction_step.1} parent=0 // pred_region
    _
  $region9: #{_reconstruction_step.1} parent=0 // pred_fallthru
    _
  // Predicated region
  $region10: #{_reconstruction_step.1} parent=0 // pred_check
    _
  $region11: #{_reconstruction_step.1} parent=0 // pred_check_branch
    %13 = sbr.rel (0) target = $region13
  $region12: #{_reconstruction_step.1} parent=0 // pred_region
    _
  $region13: #{_reconstruction_step.1} parent=0 // pred_fallthru
    _
  %v15 = vld [vmem:[%s0] sm:$0xff]
  %v16 = vld [vmem:[%s0 + $0x8] sm:$0xff]
  %v17 = vld [vmem:[%s0 + $0x10] sm:$0xff]
  %v18 = vld [vmem:[%s0 + $0x18] sm:$0xff]
  %v19 = vld [vmem:[%s0 + $0x20] sm:$0xff]
  %v20 = vld [vmem:[%s0 + $0x28] sm:$0xff]
  %v21 = vld [vmem:[%s0 + $0x30] sm:$0xff]
  %v22 = vld [vmem:[%s0 + $0x38] sm:$0xff]
  %v23 = vld [vmem:[%s0 + $0x40] sm:$0xff]
  %v24 = vld [vmem:[%s0 + $0x48] sm:$0xff]
  %v25 = vld [vmem:[%s0 + $0x50] sm:$0xff]
  %v26 = vld [vmem:[%s0 + $0x58] sm:$0xff]
  %v27 = vld [vmem:[%s0 + $0x60] sm:$0xff]
  %v28 = vld [vmem:[%s0 + $0x68] sm:$0xff]
  %v29 = vld [vmem:[%s0 + $0x70] sm:$0xff]
  %v30 = vld [vmem:[%s0 + $0x78] sm:$0xff]
  %v31 = vld [vmem:[%s0 + $0x80] sm:$0xff]
  %v32 = vld [vmem:[%s0 + $0x88] sm:$0xff]
  %v33 = vld [vmem:[%s0 + $0x90] sm:$0xff]
  %v34 = vld [vmem:[%s0 + $0x98] sm:$0xff]
  %v35 = vld [vmem:[%s0 + $0xa0] sm:$0xff]
  %v36 = vld [vmem:[%s0 + $0xa8] sm:$0xff]
  %v37 = vld [vmem:[%s0 + $0xb0] sm:$0xff]
  %v38 = vld [vmem:[%s0 + $0xb8] sm:$0xff]
  %v39 = vld [vmem:[%s0 + $0xc0] sm:$0xff]
  %v40 = vld [vmem:[%s0 + $0xc8] sm:$0xff]
  %v41 = vld [vmem:[%s0 + $0xd0] sm:$0xff]
  %v42 = vld [vmem:[%s0 + $0xd8] sm:$0xff]
  %v43 = vld [vmem:[%s0 + $0xe0] sm:$0xff]
  %v44 = vld [vmem:[%s0 + $0xe8] sm:$0xff]
  %v45 = vld [vmem:[%s0 + $0xf0] sm:$0xff]
  %v46 = vld [vmem:[%s0 + $0xf8] sm:$0xff]
  %v47 = vpack.c.bf16 %v16, %v15
  %v48 = vpack.c.bf16 %v18, %v17
  %v49 = vpack.c.bf16 %v20, %v19
  %v50 = vpack.c.bf16 %v22, %v21
  %v51 = vpack.c.bf16 %v24, %v23
  %v52 = vpack.c.bf16 %v26, %v25
  %v53 = vpack.c.bf16 %v28, %v27
  %v54 = vpack.c.bf16 %v30, %v29
  %v55 = vpack.c.bf16 %v32, %v31
  %v56 = vpack.c.bf16 %v34, %v33
  %v57 = vpack.c.bf16 %v36, %v35
  %v58 = vpack.c.bf16 %v38, %v37
  %v59 = vpack.c.bf16 %v40, %v39
  %v60 = vpack.c.bf16 %v42, %v41
  %v61 = vpack.c.bf16 %v44, %v43
  %v62 = vpack.c.bf16 %v46, %v45
  %v63 = vld [vmem:[%s1] sm:$0xff]
  %v64 = vld [vmem:[%s1 + $0x8] sm:$0xff]
  %v65 = vld [vmem:[%s1 + $0x10] sm:$0xff]
  %v66 = vld [vmem:[%s1 + $0x18] sm:$0xff]
  %v67 = vld [vmem:[%s1 + $0x20] sm:$0xff]
  %v68 = vld [vmem:[%s1 + $0x28] sm:$0xff]
  %v69 = vld [vmem:[%s1 + $0x30] sm:$0xff]
  %v70 = vld [vmem:[%s1 + $0x38] sm:$0xff]
  %v71 = vld [vmem:[%s1 + $0x40] sm:$0xff]
  %v72 = vld [vmem:[%s1 + $0x48] sm:$0xff]
  %v73 = vld [vmem:[%s1 + $0x50] sm:$0xff]
  %v74 = vld [vmem:[%s1 + $0x58] sm:$0xff]
  %v75 = vld [vmem:[%s1 + $0x60] sm:$0xff]
  %v76 = vld [vmem:[%s1 + $0x68] sm:$0xff]
  %v77 = vld [vmem:[%s1 + $0x70] sm:$0xff]
  %v78 = vld [vmem:[%s1 + $0x78] sm:$0xff]
  %v79 = vld [vmem:[%s1 + $0x80] sm:$0xff]
  %v80 = vld [vmem:[%s1 + $0x88] sm:$0xff]
  %v81 = vld [vmem:[%s1 + $0x90] sm:$0xff]
  %v82 = vld [vmem:[%s1 + $0x98] sm:$0xff]
  %v83 = vld [vmem:[%s1 + $0xa0] sm:$0xff]
  %v84 = vld [vmem:[%s1 + $0xa8] sm:$0xff]
  %v85 = vld [vmem:[%s1 + $0xb0] sm:$0xff]
  %v86 = vld [vmem:[%s1 + $0xb8] sm:$0xff]
  %v87 = vld [vmem:[%s1 + $0xc0] sm:$0xff]
  %v88 = vld [vmem:[%s1 + $0xc8] sm:$0xff]
  %v89 = vld [vmem:[%s1 + $0xd0] sm:$0xff]
  %v90 = vld [vmem:[%s1 + $0xd8] sm:$0xff]
  %v91 = vld [vmem:[%s1 + $0xe0] sm:$0xff]
  %v92 = vld [vmem:[%s1 + $0xe8] sm:$0xff]
  %v93 = vld [vmem:[%s1 + $0xf0] sm:$0xff]
  %v94 = vld [vmem:[%s1 + $0xf8] sm:$0xff]
  %v127 = vunpack.c.l.b16 %v63
  %v128 = vunpack.c.h.b16 %v63
  %v129 = vunpack.c.l.b16 %v64
  %v130 = vunpack.c.h.b16 %v64
  %v131 = vunpack.c.l.b16 %v65
  %v132 = vunpack.c.h.b16 %v65
  %v133 = vunpack.c.l.b16 %v66
  %v134 = vunpack.c.h.b16 %v66
  %v135 = vunpack.c.l.b16 %v67
  %v136 = vunpack.c.h.b16 %v67
  %v137 = vunpack.c.l.b16 %v68
  %v138 = vunpack.c.h.b16 %v68
  %v139 = vunpack.c.l.b16 %v69
  %v140 = vunpack.c.h.b16 %v69
  %v141 = vunpack.c.l.b16 %v70
  %v142 = vunpack.c.h.b16 %v70
  %v143 = vunpack.c.l.b16 %v71
  %v144 = vunpack.c.h.b16 %v71
  %v145 = vunpack.c.l.b16 %v72
  %v146 = vunpack.c.h.b16 %v72
  %v147 = vunpack.c.l.b16 %v73
  %v148 = vunpack.c.h.b16 %v73
  %v149 = vunpack.c.l.b16 %v74
  %v150 = vunpack.c.h.b16 %v74
  %v151 = vunpack.c.l.b16 %v75
  %v152 = vunpack.c.h.b16 %v75
  %v153 = vunpack.c.l.b16 %v76
  %v154 = vunpack.c.h.b16 %v76
  %v155 = vunpack.c.l.b16 %v77
  %v156 = vunpack.c.h.b16 %v77
  %v157 = vunpack.c.l.b16 %v78
  %v158 = vunpack.c.h.b16 %v78
  %v159 = vunpack.c.l.b16 %v79
  %v160 = vunpack.c.h.b16 %v79
  %v161 = vunpack.c.l.b16 %v80
  %v162 = vunpack.c.h.b16 %v80
  %v163 = vunpack.c.l.b16 %v81
  %v164 = vunpack.c.h.b16 %v81
  %v165 = vunpack.c.l.b16 %v82
  %v166 = vunpack.c.h.b16 %v82
  %v167 = vunpack.c.l.b16 %v83
  %v168 = vunpack.c.h.b16 %v83
  %v169 = vunpack.c.l.b16 %v84
  %v170 = vunpack.c.h.b16 %v84
  %v171 = vunpack.c.l.b16 %v85
  %v172 = vunpack.c.h.b16 %v85
  %v173 = vunpack.c.l.b16 %v86
  %v174 = vunpack.c.h.b16 %v86
  %v175 = vunpack.c.l.b16 %v87
  %v176 = vunpack.c.h.b16 %v87
  %v177 = vunpack.c.l.b16 %v88
  %v178 = vunpack.c.h.b16 %v88
  %v179 = vunpack.c.l.b16 %v89
  %v180 = vunpack.c.h.b16 %v89
  %v181 = vunpack.c.l.b16 %v90
  %v182 = vunpack.c.h.b16 %v90
  %v183 = vunpack.c.l.b16 %v91
  %v184 = vunpack.c.h.b16 %v91
  %v185 = vunpack.c.l.b16 %v92
  %v186 = vunpack.c.h.b16 %v92
  %v187 = vunpack.c.l.b16 %v93
  %v188 = vunpack.c.h.b16 %v93
  %v189 = vunpack.c.l.b16 %v94
  %v190 = vunpack.c.h.b16 %v94
  %v191 = vpack.c.b16 %v131, %v127
  %v192 = vpack.c.b16 %v132, %v128
  %v193 = vpack.c.b16 %v133, %v129
  %v194 = vpack.c.b16 %v134, %v130
  %v195 = vpack.c.b16 %v139, %v135
  %v196 = vpack.c.b16 %v140, %v136
  %v197 = vpack.c.b16 %v141, %v137
  %v198 = vpack.c.b16 %v142, %v138
  %v199 = vpack.c.b16 %v147, %v143
  %v200 = vpack.c.b16 %v148, %v144
  %v201 = vpack.c.b16 %v149, %v145
  %v202 = vpack.c.b16 %v150, %v146
  %v203 = vpack.c.b16 %v155, %v151
  %v204 = vpack.c.b16 %v156, %v152
  %v205 = vpack.c.b16 %v157, %v153
  %v206 = vpack.c.b16 %v158, %v154
  %v207 = vpack.c.b16 %v163, %v159
  %v208 = vpack.c.b16 %v164, %v160
  %v209 = vpack.c.b16 %v165, %v161
  %v210 = vpack.c.b16 %v166, %v162
  %v211 = vpack.c.b16 %v171, %v167
  %v212 = vpack.c.b16 %v172, %v168
  %v213 = vpack.c.b16 %v173, %v169
  %v214 = vpack.c.b16 %v174, %v170
  %v215 = vpack.c.b16 %v179, %v175
  %v216 = vpack.c.b16 %v180, %v176
  %v217 = vpack.c.b16 %v181, %v177
  %v218 = vpack.c.b16 %v182, %v178
  %v219 = vpack.c.b16 %v187, %v183
  %v220 = vpack.c.b16 %v188, %v184
  %v221 = vpack.c.b16 %v189, %v185
  %v222 = vpack.c.b16 %v190, %v186
  %255 = vmatprep.subr.bf16.mxu0 %v220
  %256 = vmatpush1.bf16.msra.mxu0 %v219
  %257 = vmatprep.subr.bf16.mxu0 %v216
  %258 = vmatpush1.bf16.msra.mxu0 %v215
  %259 = vmatprep.subr.bf16.mxu0 %v212
  %260 = vmatpush1.bf16.msra.mxu0 %v211
  %261 = vmatprep.subr.bf16.mxu0 %v208
  %262 = vmatpush1.bf16.msra.mxu0 %v207
  %263 = vmatprep.subr.bf16.mxu0 %v204
  %264 = vmatpush1.bf16.msra.mxu0 %v203
  %265 = vmatprep.subr.bf16.mxu0 %v200
  %266 = vmatpush1.bf16.msra.mxu0 %v199
  %267 = vmatprep.subr.bf16.mxu0 %v196
  %268 = vmatpush1.bf16.msra.mxu0 %v195
  %269 = vmatprep.subr.bf16.mxu0 %v192
  %270 = vmatpush1.bf16.msra.mxu0 %v191
  %271 = vmatprep.subr.bf16.mxu0 0
  %272 = vmatpush2.bf16.msra.mxu0 0
  %273 = vmatprep.subr.bf16.mxu0 0
  %274 = vmatpush2.bf16.msra.mxu0 0
  %275 = vmatprep.subr.bf16.mxu0 0
  %276 = vmatpush2.bf16.msra.mxu0 0
  %277 = vmatprep.subr.bf16.mxu0 0
  %278 = vmatpush2.bf16.msra.mxu0 0
  %279 = vmatprep.subr.bf16.mxu0 0
  %280 = vmatpush2.bf16.msra.mxu0 0
  %281 = vmatprep.subr.bf16.mxu0 0
  %282 = vmatpush2.bf16.msra.mxu0 0
  %283 = vmatprep.subr.bf16.mxu0 0
  %284 = vmatpush2.bf16.msra.mxu0 0
  %285 = vmatprep.subr.bf16.mxu0 0
  %286 = vmatpush2.bf16.msra.mxu0 0
  %287 = vmatprep.mubr.bf16.mxu0 0
  %288 = vmatmul.mubr.bf16.gmra.mxu0 %v47
  %v289 = vpop.f32.mrf.mxu0
  %v290 = vadd.f32 0.0, %v289
  %v291 = vpop.f32.mrf.mxu0
  %v292 = vadd.f32 0.0, %v291
  %v293 = vpop.f32.mrf.mxu0
  %v294 = vadd.f32 0.0, %v293
  %v295 = vpop.f32.mrf.mxu0
  %v296 = vadd.f32 0.0, %v295
  %297 = vmatprep.mubr.bf16.mxu0 0
  %298 = vmatmul.mubr.bf16.gmra.mxu0 %v48
  %v299 = vpop.f32.mrf.mxu0
  %v300 = vadd.f32 0.0, %v299
  %v301 = vpop.f32.mrf.mxu0
  %v302 = vadd.f32 0.0, %v301
  %v303 = vpop.f32.mrf.mxu0
  %v304 = vadd.f32 0.0, %v303
  %v305 = vpop.f32.mrf.mxu0
  %v306 = vadd.f32 0.0, %v305
  %307 = vmatprep.mubr.bf16.mxu0 0
  %308 = vmatmul.mubr.bf16.gmra.mxu0 %v49
  %v309 = vpop.f32.mrf.mxu0
  %v310 = vadd.f32 0.0, %v309
  %v311 = vpop.f32.mrf.mxu0
  %v312 = vadd.f32 0.0, %v311
  %v313 = vpop.f32.mrf.mxu0
  %v314 = vadd.f32 0.0, %v313
  %v315 = vpop.f32.mrf.mxu0
  %v316 = vadd.f32 0.0, %v315
  %317 = vmatprep.mubr.bf16.mxu0 0
  %318 = vmatmul.mubr.bf16.gmra.mxu0 %v50
  %v319 = vpop.f32.mrf.mxu0
  %v320 = vadd.f32 0.0, %v319
  %v321 = vpop.f32.mrf.mxu0
  %v322 = vadd.f32 0.0, %v321
  %v323 = vpop.f32.mrf.mxu0
  %v324 = vadd.f32 0.0, %v323
  %v325 = vpop.f32.mrf.mxu0
  %v326 = vadd.f32 0.0, %v325
  %327 = vmatprep.mubr.bf16.mxu0 0
  %328 = vmatmul.mubr.bf16.gmra.mxu0 %v51
  %v329 = vpop.f32.mrf.mxu0
  %v330 = vadd.f32 0.0, %v329
  %v331 = vpop.f32.mrf.mxu0
  %v332 = vadd.f32 0.0, %v331
  %v333 = vpop.f32.mrf.mxu0
  %v334 = vadd.f32 0.0, %v333
  %v335 = vpop.f32.mrf.mxu0
  %v336 = vadd.f32 0.0, %v335
  %337 = vmatprep.mubr.bf16.mxu0 0
  %338 = vmatmul.mubr.bf16.gmra.mxu0 %v52
  %v339 = vpop.f32.mrf.mxu0
  %v340 = vadd.f32 0.0, %v339
  %v341 = vpop.f32.mrf.mxu0
  %v342 = vadd.f32 0.0, %v341
  %v343 = vpop.f32.mrf.mxu0
  %v344 = vadd.f32 0.0, %v343
  %v345 = vpop.f32.mrf.mxu0
  %v346 = vadd.f32 0.0, %v345
  %347 = vmatprep.mubr.bf16.mxu0 0
  %348 = vmatmul.mubr.bf16.gmra.mxu0 %v53
  %v349 = vpop.f32.mrf.mxu0
  %v350 = vadd.f32 0.0, %v349
  %v351 = vpop.f32.mrf.mxu0
  %v352 = vadd.f32 0.0, %v351
  %v353 = vpop.f32.mrf.mxu0
  %v354 = vadd.f32 0.0, %v353
  %v355 = vpop.f32.mrf.mxu0
  %v356 = vadd.f32 0.0, %v355
  %357 = vmatprep.mubr.bf16.mxu0 0
  %358 = vmatmul.mubr.bf16.gmra.mxu0 %v54
  %v359 = vpop.f32.mrf.mxu0
  %v360 = vadd.f32 0.0, %v359
  %v361 = vpop.f32.mrf.mxu0
  %v362 = vadd.f32 0.0, %v361
  %v363 = vpop.f32.mrf.mxu0
  %v364 = vadd.f32 0.0, %v363
  %v365 = vpop.f32.mrf.mxu0
  %v366 = vadd.f32 0.0, %v365
  %367 = vmatprep.mubr.bf16.mxu0 0
  %368 = vmatmul.mubr.bf16.gmra.mxu0 %v55
  %v369 = vpop.f32.mrf.mxu0
  %v370 = vadd.f32 0.0, %v369
  %v371 = vpop.f32.mrf.mxu0
  %v372 = vadd.f32 0.0, %v371
  %v373 = vpop.f32.mrf.mxu0
  %v374 = vadd.f32 0.0, %v373
  %v375 = vpop.f32.mrf.mxu0
  %v376 = vadd.f32 0.0, %v375
  %377 = vmatprep.mubr.bf16.mxu0 0
  %378 = vmatmul.mubr.bf16.gmra.mxu0 %v56
  %v379 = vpop.f32.mrf.mxu0
  %v380 = vadd.f32 0.0, %v379
  %v381 = vpop.f32.mrf.mxu0
  %v382 = vadd.f32 0.0, %v381
  %v383 = vpop.f32.mrf.mxu0
  %v384 = vadd.f32 0.0, %v383
  %v385 = vpop.f32.mrf.mxu0
  %v386 = vadd.f32 0.0, %v385
  %387 = vmatprep.mubr.bf16.mxu0 0
  %388 = vmatmul.mubr.bf16.gmra.mxu0 %v57
  %v389 = vpop.f32.mrf.mxu0
  %v390 = vadd.f32 0.0, %v389
  %v391 = vpop.f32.mrf.mxu0
  %v392 = vadd.f32 0.0, %v391
  %v393 = vpop.f32.mrf.mxu0
  %v394 = vadd.f32 0.0, %v393
  %v395 = vpop.f32.mrf.mxu0
  %v396 = vadd.f32 0.0, %v395
  %397 = vmatprep.mubr.bf16.mxu0 0
  %398 = vmatmul.mubr.bf16.gmra.mxu0 %v58
  %v399 = vpop.f32.mrf.mxu0
  %v400 = vadd.f32 0.0, %v399
  %v401 = vpop.f32.mrf.mxu0
  %v402 = vadd.f32 0.0, %v401
  %v403 = vpop.f32.mrf.mxu0
  %v404 = vadd.f32 0.0, %v403
  %v405 = vpop.f32.mrf.mxu0
  %v406 = vadd.f32 0.0, %v405
  %407 = vmatprep.mubr.bf16.mxu0 0
  %408 = vmatmul.mubr.bf16.gmra.mxu0 %v59
  %v409 = vpop.f32.mrf.mxu0
  %v410 = vadd.f32 0.0, %v409
  %v411 = vpop.f32.mrf.mxu0
  %v412 = vadd.f32 0.0, %v411
  %v413 = vpop.f32.mrf.mxu0
  %v414 = vadd.f32 0.0, %v413
  %v415 = vpop.f32.mrf.mxu0
  %v416 = vadd.f32 0.0, %v415
  %417 = vmatprep.mubr.bf16.mxu0 0
  %418 = vmatmul.mubr.bf16.gmra.mxu0 %v60
  %v419 = vpop.f32.mrf.mxu0
  %v420 = vadd.f32 0.0, %v419
  %v421 = vpop.f32.mrf.mxu0
  %v422 = vadd.f32 0.0, %v421
  %v423 = vpop.f32.mrf.mxu0
  %v424 = vadd.f32 0.0, %v423
  %v425 = vpop.f32.mrf.mxu0
  %v426 = vadd.f32 0.0, %v425
  %427 = vmatprep.mubr.bf16.mxu0 0
  %428 = vmatmul.mubr.bf16.gmra.mxu0 %v61
  %v429 = vpop.f32.mrf.mxu0
  %v430 = vadd.f32 0.0, %v429
  %v431 = vpop.f32.mrf.mxu0
  %v432 = vadd.f32 0.0, %v431
  %v433 = vpop.f32.mrf.mxu0
  %v434 = vadd.f32 0.0, %v433
  %v435 = vpop.f32.mrf.mxu0
  %v436 = vadd.f32 0.0, %v435
  %437 = vmatprep.mubr.bf16.mxu0 0
  %438 = vmatmul.mubr.bf16.gmra.mxu0 %v62
  %v439 = vpop.f32.mrf.mxu0
  %v440 = vadd.f32 0.0, %v439
  %v441 = vpop.f32.mrf.mxu0
  %v442 = vadd.f32 0.0, %v441
  %v443 = vpop.f32.mrf.mxu0
  %v444 = vadd.f32 0.0, %v443
  %v445 = vpop.f32.mrf.mxu0
  %v446 = vadd.f32 0.0, %v445
  %447 = vdwg.mxu0
  %448 = vmatprep.subr.bf16.mxu0 %v222
  %449 = vmatpush1.bf16.msra.mxu0 %v221
  %450 = vmatprep.subr.bf16.mxu0 %v218
  %451 = vmatpush1.bf16.msra.mxu0 %v217
  %452 = vmatprep.subr.bf16.mxu0 %v214
  %453 = vmatpush1.bf16.msra.mxu0 %v213
  %454 = vmatprep.subr.bf16.mxu0 %v210
  %455 = vmatpush1.bf16.msra.mxu0 %v209
  %456 = vmatprep.subr.bf16.mxu0 %v206
  %457 = vmatpush1.bf16.msra.mxu0 %v205
  %458 = vmatprep.subr.bf16.mxu0 %v202
  %459 = vmatpush1.bf16.msra.mxu0 %v201
  %460 = vmatprep.subr.bf16.mxu0 %v198
  %461 = vmatpush1.bf16.msra.mxu0 %v197
  %462 = vmatprep.subr.bf16.mxu0 %v194
  %463 = vmatpush1.bf16.msra.mxu0 %v193
  %464 = vmatprep.subr.bf16.mxu0 0
  %465 = vmatpush2.bf16.msra.mxu0 0
  %466 = vmatprep.subr.bf16.mxu0 0
  %467 = vmatpush2.bf16.msra.mxu0 0
  %468 = vmatprep.subr.bf16.mxu0 0
  %469 = vmatpush2.bf16.msra.mxu0 0
  %470 = vmatprep.subr.bf16.mxu0 0
  %471 = vmatpush2.bf16.msra.mxu0 0
  %472 = vmatprep.subr.bf16.mxu0 0
  %473 = vmatpush2.bf16.msra.mxu0 0
  %474 = vmatprep.subr.bf16.mxu0 0
  %475 = vmatpush2.bf16.msra.mxu0 0
  %476 = vmatprep.subr.bf16.mxu0 0
  %477 = vmatpush2.bf16.msra.mxu0 0
  %478 = vmatprep.subr.bf16.mxu0 0
  %479 = vmatpush2.bf16.msra.mxu0 0
  %480 = vmatprep.mubr.bf16.mxu0 0
  %481 = vmatmul.mubr.bf16.gmra.mxu0 %v47
  %v482 = vpop.f32.mrf.mxu0
  %v483 = vadd.f32 0.0, %v482
  %v484 = vpop.f32.mrf.mxu0
  %v485 = vadd.f32 0.0, %v484
  %v486 = vpop.f32.mrf.mxu0
  %v487 = vadd.f32 0.0, %v486
  %v488 = vpop.f32.mrf.mxu0
  %v489 = vadd.f32 0.0, %v488
  %490 = vmatprep.mubr.bf16.mxu0 0
  %491 = vmatmul.mubr.bf16.gmra.mxu0 %v48
  %v492 = vpop.f32.mrf.mxu0
  %v493 = vadd.f32 0.0, %v492
  %v494 = vpop.f32.mrf.mxu0
  %v495 = vadd.f32 0.0, %v494
  %v496 = vpop.f32.mrf.mxu0
  %v497 = vadd.f32 0.0, %v496
  %v498 = vpop.f32.mrf.mxu0
  %v499 = vadd.f32 0.0, %v498
  %500 = vmatprep.mubr.bf16.mxu0 0
  %501 = vmatmul.mubr.bf16.gmra.mxu0 %v49
  %v502 = vpop.f32.mrf.mxu0
  %v503 = vadd.f32 0.0, %v502
  %v504 = vpop.f32.mrf.mxu0
  %v505 = vadd.f32 0.0, %v504
  %v506 = vpop.f32.mrf.mxu0
  %v507 = vadd.f32 0.0, %v506
  %v508 = vpop.f32.mrf.mxu0
  %v509 = vadd.f32 0.0, %v508
  %510 = vmatprep.mubr.bf16.mxu0 0
  %511 = vmatmul.mubr.bf16.gmra.mxu0 %v50
  %v512 = vpop.f32.mrf.mxu0
  %v513 = vadd.f32 0.0, %v512
  %v514 = vpop.f32.mrf.mxu0
  %v515 = vadd.f32 0.0, %v514
  %v516 = vpop.f32.mrf.mxu0
  %v517 = vadd.f32 0.0, %v516
  %v518 = vpop.f32.mrf.mxu0
  %v519 = vadd.f32 0.0, %v518
  %520 = vmatprep.mubr.bf16.mxu0 0
  %521 = vmatmul.mubr.bf16.gmra.mxu0 %v51
  %v522 = vpop.f32.mrf.mxu0
  %v523 = vadd.f32 0.0, %v522
  %v524 = vpop.f32.mrf.mxu0
  %v525 = vadd.f32 0.0, %v524
  %v526 = vpop.f32.mrf.mxu0
  %v527 = vadd.f32 0.0, %v526
  %v528 = vpop.f32.mrf.mxu0
  %v529 = vadd.f32 0.0, %v528
  %530 = vmatprep.mubr.bf16.mxu0 0
  %531 = vmatmul.mubr.bf16.gmra.mxu0 %v52
  %v532 = vpop.f32.mrf.mxu0
  %v533 = vadd.f32 0.0, %v532
  %v534 = vpop.f32.mrf.mxu0
  %v535 = vadd.f32 0.0, %v534
  %v536 = vpop.f32.mrf.mxu0
  %v537 = vadd.f32 0.0, %v536
  %v538 = vpop.f32.mrf.mxu0
  %v539 = vadd.f32 0.0, %v538
  %540 = vmatprep.mubr.bf16.mxu0 0
  %541 = vmatmul.mubr.bf16.gmra.mxu0 %v53
  %v542 = vpop.f32.mrf.mxu0
  %v543 = vadd.f32 0.0, %v542
  %v544 = vpop.f32.mrf.mxu0
  %v545 = vadd.f32 0.0, %v544
  %v546 = vpop.f32.mrf.mxu0
  %v547 = vadd.f32 0.0, %v546
  %v548 = vpop.f32.mrf.mxu0
  %v549 = vadd.f32 0.0, %v548
  %550 = vmatprep.mubr.bf16.mxu0 0
  %551 = vmatmul.mubr.bf16.gmra.mxu0 %v54
  %v552 = vpop.f32.mrf.mxu0
  %v553 = vadd.f32 0.0, %v552
  %v554 = vpop.f32.mrf.mxu0
  %v555 = vadd.f32 0.0, %v554
  %v556 = vpop.f32.mrf.mxu0
  %v557 = vadd.f32 0.0, %v556
  %v558 = vpop.f32.mrf.mxu0
  %v559 = vadd.f32 0.0, %v558
  %560 = vmatprep.mubr.bf16.mxu0 0
  %561 = vmatmul.mubr.bf16.gmra.mxu0 %v55
  %v562 = vpop.f32.mrf.mxu0
  %v563 = vadd.f32 0.0, %v562
  %v564 = vpop.f32.mrf.mxu0
  %v565 = vadd.f32 0.0, %v564
  %v566 = vpop.f32.mrf.mxu0
  %v567 = vadd.f32 0.0, %v566
  %v568 = vpop.f32.mrf.mxu0
  %v569 = vadd.f32 0.0, %v568
  %570 = vmatprep.mubr.bf16.mxu0 0
  %571 = vmatmul.mubr.bf16.gmra.mxu0 %v56
  %v572 = vpop.f32.mrf.mxu0
  %v573 = vadd.f32 0.0, %v572
  %v574 = vpop.f32.mrf.mxu0
  %v575 = vadd.f32 0.0, %v574
  %v576 = vpop.f32.mrf.mxu0
  %v577 = vadd.f32 0.0, %v576
  %v578 = vpop.f32.mrf.mxu0
  %v579 = vadd.f32 0.0, %v578
  %580 = vmatprep.mubr.bf16.mxu0 0
  %581 = vmatmul.mubr.bf16.gmra.mxu0 %v57
  %v582 = vpop.f32.mrf.mxu0
  %v583 = vadd.f32 0.0, %v582
  %v584 = vpop.f32.mrf.mxu0
  %v585 = vadd.f32 0.0, %v584
  %v586 = vpop.f32.mrf.mxu0
  %v587 = vadd.f32 0.0, %v586
  %v588 = vpop.f32.mrf.mxu0
  %v589 = vadd.f32 0.0, %v588
  %590 = vmatprep.mubr.bf16.mxu0 0
  %591 = vmatmul.mubr.bf16.gmra.mxu0 %v58
  %v592 = vpop.f32.mrf.mxu0
  %v593 = vadd.f32 0.0, %v592
  %v594 = vpop.f32.mrf.mxu0
  %v595 = vadd.f32 0.0, %v594
  %v596 = vpop.f32.mrf.mxu0
  %v597 = vadd.f32 0.0, %v596
  %v598 = vpop.f32.mrf.mxu0
  %v599 = vadd.f32 0.0, %v598
  %600 = vmatprep.mubr.bf16.mxu0 0
  %601 = vmatmul.mubr.bf16.gmra.mxu0 %v59
  %v602 = vpop.f32.mrf.mxu0
  %v603 = vadd.f32 0.0, %v602
  %v604 = vpop.f32.mrf.mxu0
  %v605 = vadd.f32 0.0, %v604
  %v606 = vpop.f32.mrf.mxu0
  %v607 = vadd.f32 0.0, %v606
  %v608 = vpop.f32.mrf.mxu0
  %v609 = vadd.f32 0.0, %v608
  %610 = vmatprep.mubr.bf16.mxu0 0
  %611 = vmatmul.mubr.bf16.gmra.mxu0 %v60
  %v612 = vpop.f32.mrf.mxu0
  %v613 = vadd.f32 0.0, %v612
  %v614 = vpop.f32.mrf.mxu0
  %v615 = vadd.f32 0.0, %v614
  %v616 = vpop.f32.mrf.mxu0
  %v617 = vadd.f32 0.0, %v616
  %v618 = vpop.f32.mrf.mxu0
  %v619 = vadd.f32 0.0, %v618
  %620 = vmatprep.mubr.bf16.mxu0 0
  %621 = vmatmul.mubr.bf16.gmra.mxu0 %v61
  %v622 = vpop.f32.mrf.mxu0
  %v623 = vadd.f32 0.0, %v622
  %v624 = vpop.f32.mrf.mxu0
  %v625 = vadd.f32 0.0, %v624
  %v626 = vpop.f32.mrf.mxu0
  %v627 = vadd.f32 0.0, %v626
  %v628 = vpop.f32.mrf.mxu0
  %v629 = vadd.f32 0.0, %v628
  %630 = vmatprep.mubr.bf16.mxu0 0
  %631 = vmatmul.mubr.bf16.gmra.mxu0 %v62
  %v632 = vpop.f32.mrf.mxu0
  %v633 = vadd.f32 0.0, %v632
  %v634 = vpop.f32.mrf.mxu0
  %v635 = vadd.f32 0.0, %v634
  %v636 = vpop.f32.mrf.mxu0
  %v637 = vadd.f32 0.0, %v636
  %v638 = vpop.f32.mrf.mxu0
  %v639 = vadd.f32 0.0, %v638
  %640 = vdwg.mxu0
  %v641 = vld [vmem:[%s2] sm:$0xff]
  %v642 = vld [vmem:[%s2 + $0x8] sm:$0xff]
  %v643 = vld [vmem:[%s2 + $0x10] sm:$0xff]
  %v644 = vld [vmem:[%s2 + $0x18] sm:$0xff]
  %v645 = vld [vmem:[%s2 + $0x20] sm:$0xff]
  %v646 = vld [vmem:[%s2 + $0x28] sm:$0xff]
  %v647 = vld [vmem:[%s2 + $0x30] sm:$0xff]
  %v648 = vld [vmem:[%s2 + $0x38] sm:$0xff]
  %v649 = vld [vmem:[%s2 + $0x40] sm:$0xff]
  %v650 = vld [vmem:[%s2 + $0x48] sm:$0xff]
  %v651 = vld [vmem:[%s2 + $0x50] sm:$0xff]
  %v652 = vld [vmem:[%s2 + $0x58] sm:$0xff]
  %v653 = vld [vmem:[%s2 + $0x60] sm:$0xff]
  %v654 = vld [vmem:[%s2 + $0x68] sm:$0xff]
  %v655 = vld [vmem:[%s2 + $0x70] sm:$0xff]
  %v656 = vld [vmem:[%s2 + $0x78] sm:$0xff]
  %v657 = vld [vmem:[%s2 + $0x80] sm:$0xff]
  %v658 = vld [vmem:[%s2 + $0x88] sm:$0xff]
  %v659 = vld [vmem:[%s2 + $0x90] sm:$0xff]
  %v660 = vld [vmem:[%s2 + $0x98] sm:$0xff]
  %v661 = vld [vmem:[%s2 + $0xa0] sm:$0xff]
  %v662 = vld [vmem:[%s2 + $0xa8] sm:$0xff]
  %v663 = vld [vmem:[%s2 + $0xb0] sm:$0xff]
  %v664 = vld [vmem:[%s2 + $0xb8] sm:$0xff]
  %v665 = vld [vmem:[%s2 + $0xc0] sm:$0xff]
  %v666 = vld [vmem:[%s2 + $0xc8] sm:$0xff]
  %v667 = vld [vmem:[%s2 + $0xd0] sm:$0xff]
  %v668 = vld [vmem:[%s2 + $0xd8] sm:$0xff]
  %v669 = vld [vmem:[%s2 + $0xe0] sm:$0xff]
  %v670 = vld [vmem:[%s2 + $0xe8] sm:$0xff]
  %v671 = vld [vmem:[%s2 + $0xf0] sm:$0xff]
  %v672 = vld [vmem:[%s2 + $0xf8] sm:$0xff]
  %v705 = vunpack.c.l.b16 %v641
  %v706 = vunpack.c.h.b16 %v641
  %v707 = vunpack.c.l.b16 %v642
  %v708 = vunpack.c.h.b16 %v642
  %v709 = vunpack.c.l.b16 %v643
  %v710 = vunpack.c.h.b16 %v643
  %v711 = vunpack.c.l.b16 %v644
  %v712 = vunpack.c.h.b16 %v644
  %v713 = vunpack.c.l.b16 %v645
  %v714 = vunpack.c.h.b16 %v645
  %v715 = vunpack.c.l.b16 %v646
  %v716 = vunpack.c.h.b16 %v646
  %v717 = vunpack.c.l.b16 %v647
  %v718 = vunpack.c.h.b16 %v647
  %v719 = vunpack.c.l.b16 %v648
  %v720 = vunpack.c.h.b16 %v648
  %v721 = vunpack.c.l.b16 %v649
  %v722 = vunpack.c.h.b16 %v649
  %v723 = vunpack.c.l.b16 %v650
  %v724 = vunpack.c.h.b16 %v650
  %v725 = vunpack.c.l.b16 %v651
  %v726 = vunpack.c.h.b16 %v651
  %v727 = vunpack.c.l.b16 %v652
  %v728 = vunpack.c.h.b16 %v652
  %v729 = vunpack.c.l.b16 %v653
  %v730 = vunpack.c.h.b16 %v653
  %v731 = vunpack.c.l.b16 %v654
  %v732 = vunpack.c.h.b16 %v654
  %v733 = vunpack.c.l.b16 %v655
  %v734 = vunpack.c.h.b16 %v655
  %v735 = vunpack.c.l.b16 %v656
  %v736 = vunpack.c.h.b16 %v656
  %v737 = vunpack.c.l.b16 %v657
  %v738 = vunpack.c.h.b16 %v657
  %v739 = vunpack.c.l.b16 %v658
  %v740 = vunpack.c.h.b16 %v658
  %v741 = vunpack.c.l.b16 %v659
  %v742 = vunpack.c.h.b16 %v659
  %v743 = vunpack.c.l.b16 %v660
  %v744 = vunpack.c.h.b16 %v660
  %v745 = vunpack.c.l.b16 %v661
  %v746 = vunpack.c.h.b16 %v661
  %v747 = vunpack.c.l.b16 %v662
  %v748 = vunpack.c.h.b16 %v662
  %v749 = vunpack.c.l.b16 %v663
  %v750 = vunpack.c.h.b16 %v663
  %v751 = vunpack.c.l.b16 %v664
  %v752 = vunpack.c.h.b16 %v664
  %v753 = vunpack.c.l.b16 %v665
  %v754 = vunpack.c.h.b16 %v665
  %v755 = vunpack.c.l.b16 %v666
  %v756 = vunpack.c.h.b16 %v666
  %v757 = vunpack.c.l.b16 %v667
  %v758 = vunpack.c.h.b16 %v667
  %v759 = vunpack.c.l.b16 %v668
  %v760 = vunpack.c.h.b16 %v668
  %v761 = vunpack.c.l.b16 %v669
  %v762 = vunpack.c.h.b16 %v669
  %v763 = vunpack.c.l.b16 %v670
  %v764 = vunpack.c.h.b16 %v670
  %v765 = vunpack.c.l.b16 %v671
  %v766 = vunpack.c.h.b16 %v671
  %v767 = vunpack.c.l.b16 %v672
  %v768 = vunpack.c.h.b16 %v672
  %v769 = vpack.c.b16 %v709, %v705
  %v770 = vpack.c.b16 %v710, %v706
  %v771 = vpack.c.b16 %v711, %v707
  %v772 = vpack.c.b16 %v712, %v708
  %v773 = vpack.c.b16 %v717, %v713
  %v774 = vpack.c.b16 %v718, %v714
  %v775 = vpack.c.b16 %v719, %v715
  %v776 = vpack.c.b16 %v720, %v716
  %v777 = vpack.c.b16 %v725, %v721
  %v778 = vpack.c.b16 %v726, %v722
  %v779 = vpack.c.b16 %v727, %v723
  %v780 = vpack.c.b16 %v728, %v724
  %v781 = vpack.c.b16 %v733, %v729
  %v782 = vpack.c.b16 %v734, %v730
  %v783 = vpack.c.b16 %v735, %v731
  %v784 = vpack.c.b16 %v736, %v732
  %v785 = vpack.c.b16 %v741, %v737
  %v786 = vpack.c.b16 %v742, %v738
  %v787 = vpack.c.b16 %v743, %v739
  %v788 = vpack.c.b16 %v744, %v740
  %v789 = vpack.c.b16 %v749, %v745
  %v790 = vpack.c.b16 %v750, %v746
  %v791 = vpack.c.b16 %v751, %v747
  %v792 = vpack.c.b16 %v752, %v748
  %v793 = vpack.c.b16 %v757, %v753
  %v794 = vpack.c.b16 %v758, %v754
  %v795 = vpack.c.b16 %v759, %v755
  %v796 = vpack.c.b16 %v760, %v756
  %v797 = vpack.c.b16 %v765, %v761
  %v798 = vpack.c.b16 %v766, %v762
  %v799 = vpack.c.b16 %v767, %v763
  %v800 = vpack.c.b16 %v768, %v764
  %833 = vmatprep.subr.bf16.mxu0 %v798
  %834 = vmatpush1.bf16.msra.mxu0 %v797
  %835 = vmatprep.subr.bf16.mxu0 %v794
  %836 = vmatpush1.bf16.msra.mxu0 %v793
  %837 = vmatprep.subr.bf16.mxu0 %v790
  %838 = vmatpush1.bf16.msra.mxu0 %v789
  %839 = vmatprep.subr.bf16.mxu0 %v786
  %840 = vmatpush1.bf16.msra.mxu0 %v785
  %841 = vmatprep.subr.bf16.mxu0 %v782
  %842 = vmatpush1.bf16.msra.mxu0 %v781
  %843 = vmatprep.subr.bf16.mxu0 %v778
  %844 = vmatpush1.bf16.msra.mxu0 %v777
  %845 = vmatprep.subr.bf16.mxu0 %v774
  %846 = vmatpush1.bf16.msra.mxu0 %v773
  %847 = vmatprep.subr.bf16.mxu0 %v770
  %848 = vmatpush1.bf16.msra.mxu0 %v769
  %849 = vmatprep.subr.bf16.mxu0 0
  %850 = vmatpush2.bf16.msra.mxu0 0
  %851 = vmatprep.subr.bf16.mxu0 0
  %852 = vmatpush2.bf16.msra.mxu0 0
  %853 = vmatprep.subr.bf16.mxu0 0
  %854 = vmatpush2.bf16.msra.mxu0 0
  %855 = vmatprep.subr.bf16.mxu0 0
  %856 = vmatpush2.bf16.msra.mxu0 0
  %857 = vmatprep.subr.bf16.mxu0 0
  %858 = vmatpush2.bf16.msra.mxu0 0
  %859 = vmatprep.subr.bf16.mxu0 0
  %860 = vmatpush2.bf16.msra.mxu0 0
  %861 = vmatprep.subr.bf16.mxu0 0
  %862 = vmatpush2.bf16.msra.mxu0 0
  %863 = vmatprep.subr.bf16.mxu0 0
  %864 = vmatpush2.bf16.msra.mxu0 0
  %865 = vmatprep.mubr.bf16.mxu0 0
  %866 = vmatmul.mubr.bf16.gmra.mxu0 %v47
  %v867 = vpop.f32.mrf.mxu0
  %v868 = vadd.f32 0.0, %v867
  %v869 = vpop.f32.mrf.mxu0
  %v870 = vadd.f32 0.0, %v869
  %v871 = vpop.f32.mrf.mxu0
  %v872 = vadd.f32 0.0, %v871
  %v873 = vpop.f32.mrf.mxu0
  %v874 = vadd.f32 0.0, %v873
  %875 = vmatprep.mubr.bf16.mxu0 0
  %876 = vmatmul.mubr.bf16.gmra.mxu0 %v48
  %v877 = vpop.f32.mrf.mxu0
  %v878 = vadd.f32 0.0, %v877
  %v879 = vpop.f32.mrf.mxu0
  %v880 = vadd.f32 0.0, %v879
  %v881 = vpop.f32.mrf.mxu0
  %v882 = vadd.f32 0.0, %v881
  %v883 = vpop.f32.mrf.mxu0
  %v884 = vadd.f32 0.0, %v883
  %885 = vmatprep.mubr.bf16.mxu0 0
  %886 = vmatmul.mubr.bf16.gmra.mxu0 %v49
  %v887 = vpop.f32.mrf.mxu0
  %v888 = vadd.f32 0.0, %v887
  %v889 = vpop.f32.mrf.mxu0
  %v890 = vadd.f32 0.0, %v889
  %v891 = vpop.f32.mrf.mxu0
  %v892 = vadd.f32 0.0, %v891
  %v893 = vpop.f32.mrf.mxu0
  %v894 = vadd.f32 0.0, %v893
  %895 = vmatprep.mubr.bf16.mxu0 0
  %896 = vmatmul.mubr.bf16.gmra.mxu0 %v50
  %v897 = vpop.f32.mrf.mxu0
  %v898 = vadd.f32 0.0, %v897
  %v899 = vpop.f32.mrf.mxu0
  %v900 = vadd.f32 0.0, %v899
  %v901 = vpop.f32.mrf.mxu0
  %v902 = vadd.f32 0.0, %v901
  %v903 = vpop.f32.mrf.mxu0
  %v904 = vadd.f32 0.0, %v903
  %905 = vmatprep.mubr.bf16.mxu0 0
  %906 = vmatmul.mubr.bf16.gmra.mxu0 %v51
  %v907 = vpop.f32.mrf.mxu0
  %v908 = vadd.f32 0.0, %v907
  %v909 = vpop.f32.mrf.mxu0
  %v910 = vadd.f32 0.0, %v909
  %v911 = vpop.f32.mrf.mxu0
  %v912 = vadd.f32 0.0, %v911
  %v913 = vpop.f32.mrf.mxu0
  %v914 = vadd.f32 0.0, %v913
  %915 = vmatprep.mubr.bf16.mxu0 0
  %916 = vmatmul.mubr.bf16.gmra.mxu0 %v52
  %v917 = vpop.f32.mrf.mxu0
  %v918 = vadd.f32 0.0, %v917
  %v919 = vpop.f32.mrf.mxu0
  %v920 = vadd.f32 0.0, %v919
  %v921 = vpop.f32.mrf.mxu0
  %v922 = vadd.f32 0.0, %v921
  %v923 = vpop.f32.mrf.mxu0
  %v924 = vadd.f32 0.0, %v923
  %925 = vmatprep.mubr.bf16.mxu0 0
  %926 = vmatmul.mubr.bf16.gmra.mxu0 %v53
  %v927 = vpop.f32.mrf.mxu0
  %v928 = vadd.f32 0.0, %v927
  %v929 = vpop.f32.mrf.mxu0
  %v930 = vadd.f32 0.0, %v929
  %v931 = vpop.f32.mrf.mxu0
  %v932 = vadd.f32 0.0, %v931
  %v933 = vpop.f32.mrf.mxu0
  %v934 = vadd.f32 0.0, %v933
  %935 = vmatprep.mubr.bf16.mxu0 0
  %936 = vmatmul.mubr.bf16.gmra.mxu0 %v54
  %v937 = vpop.f32.mrf.mxu0
  %v938 = vadd.f32 0.0, %v937
  %v939 = vpop.f32.mrf.mxu0
  %v940 = vadd.f32 0.0, %v939
  %v941 = vpop.f32.mrf.mxu0
  %v942 = vadd.f32 0.0, %v941
  %v943 = vpop.f32.mrf.mxu0
  %v944 = vadd.f32 0.0, %v943
  %945 = vmatprep.mubr.bf16.mxu0 0
  %946 = vmatmul.mubr.bf16.gmra.mxu0 %v55
  %v947 = vpop.f32.mrf.mxu0
  %v948 = vadd.f32 0.0, %v947
  %v949 = vpop.f32.mrf.mxu0
  %v950 = vadd.f32 0.0, %v949
  %v951 = vpop.f32.mrf.mxu0
  %v952 = vadd.f32 0.0, %v951
  %v953 = vpop.f32.mrf.mxu0
  %v954 = vadd.f32 0.0, %v953
  %955 = vmatprep.mubr.bf16.mxu0 0
  %956 = vmatmul.mubr.bf16.gmra.mxu0 %v56
  %v957 = vpop.f32.mrf.mxu0
  %v958 = vadd.f32 0.0, %v957
  %v959 = vpop.f32.mrf.mxu0
  %v960 = vadd.f32 0.0, %v959
  %v961 = vpop.f32.mrf.mxu0
  %v962 = vadd.f32 0.0, %v961
  %v963 = vpop.f32.mrf.mxu0
  %v964 = vadd.f32 0.0, %v963
  %965 = vmatprep.mubr.bf16.mxu0 0
  %966 = vmatmul.mubr.bf16.gmra.mxu0 %v57
  %v967 = vpop.f32.mrf.mxu0
  %v968 = vadd.f32 0.0, %v967
  %v969 = vpop.f32.mrf.mxu0
  %v970 = vadd.f32 0.0, %v969
  %v971 = vpop.f32.mrf.mxu0
  %v972 = vadd.f32 0.0, %v971
  %v973 = vpop.f32.mrf.mxu0
  %v974 = vadd.f32 0.0, %v973
  %975 = vmatprep.mubr.bf16.mxu0 0
  %976 = vmatmul.mubr.bf16.gmra.mxu0 %v58
  %v977 = vpop.f32.mrf.mxu0
  %v978 = vadd.f32 0.0, %v977
  %v979 = vpop.f32.mrf.mxu0
  %v980 = vadd.f32 0.0, %v979
  %v981 = vpop.f32.mrf.mxu0
  %v982 = vadd.f32 0.0, %v981
  %v983 = vpop.f32.mrf.mxu0
  %v984 = vadd.f32 0.0, %v983
  %985 = vmatprep.mubr.bf16.mxu0 0
  %986 = vmatmul.mubr.bf16.gmra.mxu0 %v59
  %v987 = vpop.f32.mrf.mxu0
  %v988 = vadd.f32 0.0, %v987
  %v989 = vpop.f32.mrf.mxu0
  %v990 = vadd.f32 0.0, %v989
  %v991 = vpop.f32.mrf.mxu0
  %v992 = vadd.f32 0.0, %v991
  %v993 = vpop.f32.mrf.mxu0
  %v994 = vadd.f32 0.0, %v993
  %995 = vmatprep.mubr.bf16.mxu0 0
  %996 = vmatmul.mubr.bf16.gmra.mxu0 %v60
  %v997 = vpop.f32.mrf.mxu0
  %v998 = vadd.f32 0.0, %v997
  %v999 = vpop.f32.mrf.mxu0
  %v1000 = vadd.f32 0.0, %v999
  %v1001 = vpop.f32.mrf.mxu0
  %v1002 = vadd.f32 0.0, %v1001
  %v1003 = vpop.f32.mrf.mxu0
  %v1004 = vadd.f32 0.0, %v1003
  %1005 = vmatprep.mubr.bf16.mxu0 0
  %1006 = vmatmul.mubr.bf16.gmra.mxu0 %v61
  %v1007 = vpop.f32.mrf.mxu0
  %v1008 = vadd.f32 0.0, %v1007
  %v1009 = vpop.f32.mrf.mxu0
  %v1010 = vadd.f32 0.0, %v1009
  %v1011 = vpop.f32.mrf.mxu0
  %v1012 = vadd.f32 0.0, %v1011
  %v1013 = vpop.f32.mrf.mxu0
  %v1014 = vadd.f32 0.0, %v1013
  %1015 = vmatprep.mubr.bf16.mxu0 0
  %1016 = vmatmul.mubr.bf16.gmra.mxu0 %v62
  %v1017 = vpop.f32.mrf.mxu0
  %v1018 = vadd.f32 0.0, %v1017
  %v1019 = vpop.f32.mrf.mxu0
  %v1020 = vadd.f32 0.0, %v1019
  %v1021 = vpop.f32.mrf.mxu0
  %v1022 = vadd.f32 0.0, %v1021
  %v1023 = vpop.f32.mrf.mxu0
  %v1024 = vadd.f32 0.0, %v1023
  %1025 = vdwg.mxu0
  %1026 = vmatprep.subr.bf16.mxu0 %v800
  %1027 = vmatpush1.bf16.msra.mxu0 %v799
  %1028 = vmatprep.subr.bf16.mxu0 %v796
  %1029 = vmatpush1.bf16.msra.mxu0 %v795
  %1030 = vmatprep.subr.bf16.mxu0 %v792
  %1031 = vmatpush1.bf16.msra.mxu0 %v791
  %1032 = vmatprep.subr.bf16.mxu0 %v788
  %1033 = vmatpush1.bf16.msra.mxu0 %v787
  %1034 = vmatprep.subr.bf16.mxu0 %v784
  %1035 = vmatpush1.bf16.msra.mxu0 %v783
  %1036 = vmatprep.subr.bf16.mxu0 %v780
  %1037 = vmatpush1.bf16.msra.mxu0 %v779
  %1038 = vmatprep.subr.bf16.mxu0 %v776
  %1039 = vmatpush1.bf16.msra.mxu0 %v775
  %1040 = vmatprep.subr.bf16.mxu0 %v772
  %1041 = vmatpush1.bf16.msra.mxu0 %v771
  %1042 = vmatprep.subr.bf16.mxu0 0
  %1043 = vmatpush2.bf16.msra.mxu0 0
  %1044 = vmatprep.subr.bf16.mxu0 0
  %1045 = vmatpush2.bf16.msra.mxu0 0
  %1046 = vmatprep.subr.bf16.mxu0 0
  %1047 = vmatpush2.bf16.msra.mxu0 0
  %1048 = vmatprep.subr.bf16.mxu0 0
  %1049 = vmatpush2.bf16.msra.mxu0 0
  %1050 = vmatprep.subr.bf16.mxu0 0
  %1051 = vmatpush2.bf16.msra.mxu0 0
  %1052 = vmatprep.subr.bf16.mxu0 0
  %1053 = vmatpush2.bf16.msra.mxu0 0
  %1054 = vmatprep.subr.bf16.mxu0 0
  %1055 = vmatpush2.bf16.msra.mxu0 0
  %1056 = vmatprep.subr.bf16.mxu0 0
  %1057 = vmatpush2.bf16.msra.mxu0 0
  %1058 = vmatprep.mubr.bf16.mxu0 0
  %1059 = vmatmul.mubr.bf16.gmra.mxu0 %v47
  %v1060 = vpop.f32.mrf.mxu0
  %v1061 = vadd.f32 0.0, %v1060
  %v1062 = vpop.f32.mrf.mxu0
  %v1063 = vadd.f32 0.0, %v1062
  %v1064 = vpop.f32.mrf.mxu0
  %v1065 = vadd.f32 0.0, %v1064
  %v1066 = vpop.f32.mrf.mxu0
  %v1067 = vadd.f32 0.0, %v1066
  %1068 = vmatprep.mubr.bf16.mxu0 0
  %1069 = vmatmul.mubr.bf16.gmra.mxu0 %v48
  %v1070 = vpop.f32.mrf.mxu0
  %v1071 = vadd.f32 0.0, %v1070
  %v1072 = vpop.f32.mrf.mxu0
  %v1073 = vadd.f32 0.0, %v1072
  %v1074 = vpop.f32.mrf.mxu0
  %v1075 = vadd.f32 0.0, %v1074
  %v1076 = vpop.f32.mrf.mxu0
  %v1077 = vadd.f32 0.0, %v1076
  %1078 = vmatprep.mubr.bf16.mxu0 0
  %1079 = vmatmul.mubr.bf16.gmra.mxu0 %v49
  %v1080 = vpop.f32.mrf.mxu0
  %v1081 = vadd.f32 0.0, %v1080
  %v1082 = vpop.f32.mrf.mxu0
  %v1083 = vadd.f32 0.0, %v1082
  %v1084 = vpop.f32.mrf.mxu0
  %v1085 = vadd.f32 0.0, %v1084
  %v1086 = vpop.f32.mrf.mxu0
  %v1087 = vadd.f32 0.0, %v1086
  %1088 = vmatprep.mubr.bf16.mxu0 0
  %1089 = vmatmul.mubr.bf16.gmra.mxu0 %v50
  %v1090 = vpop.f32.mrf.mxu0
  %v1091 = vadd.f32 0.0, %v1090
  %v1092 = vpop.f32.mrf.mxu0
  %v1093 = vadd.f32 0.0, %v1092
  %v1094 = vpop.f32.mrf.mxu0
  %v1095 = vadd.f32 0.0, %v1094
  %v1096 = vpop.f32.mrf.mxu0
  %v1097 = vadd.f32 0.0, %v1096
  %1098 = vmatprep.mubr.bf16.mxu0 0
  %1099 = vmatmul.mubr.bf16.gmra.mxu0 %v51
  %v1100 = vpop.f32.mrf.mxu0
  %v1101 = vadd.f32 0.0, %v1100
  %v1102 = vpop.f32.mrf.mxu0
  %v1103 = vadd.f32 0.0, %v1102
  %v1104 = vpop.f32.mrf.mxu0
  %v1105 = vadd.f32 0.0, %v1104
  %v1106 = vpop.f32.mrf.mxu0
  %v1107 = vadd.f32 0.0, %v1106
  %1108 = vmatprep.mubr.bf16.mxu0 0
  %1109 = vmatmul.mubr.bf16.gmra.mxu0 %v52
  %v1110 = vpop.f32.mrf.mxu0
  %v1111 = vadd.f32 0.0, %v1110
  %v1112 = vpop.f32.mrf.mxu0
  %v1113 = vadd.f32 0.0, %v1112
  %v1114 = vpop.f32.mrf.mxu0
  %v1115 = vadd.f32 0.0, %v1114
  %v1116 = vpop.f32.mrf.mxu0
  %v1117 = vadd.f32 0.0, %v1116
  %1118 = vmatprep.mubr.bf16.mxu0 0
  %1119 = vmatmul.mubr.bf16.gmra.mxu0 %v53
  %v1120 = vpop.f32.mrf.mxu0
  %v1121 = vadd.f32 0.0, %v1120
  %v1122 = vpop.f32.mrf.mxu0
  %v1123 = vadd.f32 0.0, %v1122
  %v1124 = vpop.f32.mrf.mxu0
  %v1125 = vadd.f32 0.0, %v1124
  %v1126 = vpop.f32.mrf.mxu0
  %v1127 = vadd.f32 0.0, %v1126
  %1128 = vmatprep.mubr.bf16.mxu0 0
  %1129 = vmatmul.mubr.bf16.gmra.mxu0 %v54
  %v1130 = vpop.f32.mrf.mxu0
  %v1131 = vadd.f32 0.0, %v1130
  %v1132 = vpop.f32.mrf.mxu0
  %v1133 = vadd.f32 0.0, %v1132
  %v1134 = vpop.f32.mrf.mxu0
  %v1135 = vadd.f32 0.0, %v1134
  %v1136 = vpop.f32.mrf.mxu0
  %v1137 = vadd.f32 0.0, %v1136
  %1138 = vmatprep.mubr.bf16.mxu0 0
  %1139 = vmatmul.mubr.bf16.gmra.mxu0 %v55
  %v1140 = vpop.f32.mrf.mxu0
  %v1141 = vadd.f32 0.0, %v1140
  %v1142 = vpop.f32.mrf.mxu0
  %v1143 = vadd.f32 0.0, %v1142
  %v1144 = vpop.f32.mrf.mxu0
  %v1145 = vadd.f32 0.0, %v1144
  %v1146 = vpop.f32.mrf.mxu0
  %v1147 = vadd.f32 0.0, %v1146
  %1148 = vmatprep.mubr.bf16.mxu0 0
  %1149 = vmatmul.mubr.bf16.gmra.mxu0 %v56
  %v1150 = vpop.f32.mrf.mxu0
  %v1151 = vadd.f32 0.0, %v1150
  %v1152 = vpop.f32.mrf.mxu0
  %v1153 = vadd.f32 0.0, %v1152
  %v1154 = vpop.f32.mrf.mxu0
  %v1155 = vadd.f32 0.0, %v1154
  %v1156 = vpop.f32.mrf.mxu0
  %v1157 = vadd.f32 0.0, %v1156
  %1158 = vmatprep.mubr.bf16.mxu0 0
  %1159 = vmatmul.mubr.bf16.gmra.mxu0 %v57
  %v1160 = vpop.f32.mrf.mxu0
  %v1161 = vadd.f32 0.0, %v1160
  %v1162 = vpop.f32.mrf.mxu0
  %v1163 = vadd.f32 0.0, %v1162
  %v1164 = vpop.f32.mrf.mxu0
  %v1165 = vadd.f32 0.0, %v1164
  %v1166 = vpop.f32.mrf.mxu0
  %v1167 = vadd.f32 0.0, %v1166
  %1168 = vmatprep.mubr.bf16.mxu0 0
  %1169 = vmatmul.mubr.bf16.gmra.mxu0 %v58
  %v1170 = vpop.f32.mrf.mxu0
  %v1171 = vadd.f32 0.0, %v1170
  %v1172 = vpop.f32.mrf.mxu0
  %v1173 = vadd.f32 0.0, %v1172
  %v1174 = vpop.f32.mrf.mxu0
  %v1175 = vadd.f32 0.0, %v1174
  %v1176 = vpop.f32.mrf.mxu0
  %v1177 = vadd.f32 0.0, %v1176
  %1178 = vmatprep.mubr.bf16.mxu0 0
  %1179 = vmatmul.mubr.bf16.gmra.mxu0 %v59
  %v1180 = vpop.f32.mrf.mxu0
  %v1181 = vadd.f32 0.0, %v1180
  %v1182 = vpop.f32.mrf.mxu0
  %v1183 = vadd.f32 0.0, %v1182
  %v1184 = vpop.f32.mrf.mxu0
  %v1185 = vadd.f32 0.0, %v1184
  %v1186 = vpop.f32.mrf.mxu0
  %v1187 = vadd.f32 0.0, %v1186
  %1188 = vmatprep.mubr.bf16.mxu0 0
  %1189 = vmatmul.mubr.bf16.gmra.mxu0 %v60
  %v1190 = vpop.f32.mrf.mxu0
  %v1191 = vadd.f32 0.0, %v1190
  %v1192 = vpop.f32.mrf.mxu0
  %v1193 = vadd.f32 0.0, %v1192
  %v1194 = vpop.f32.mrf.mxu0
  %v1195 = vadd.f32 0.0, %v1194
  %v1196 = vpop.f32.mrf.mxu0
  %v1197 = vadd.f32 0.0, %v1196
  %1198 = vmatprep.mubr.bf16.mxu0 0
  %1199 = vmatmul.mubr.bf16.gmra.mxu0 %v61
  %v1200 = vpop.f32.mrf.mxu0
  %v1201 = vadd.f32 0.0, %v1200
  %v1202 = vpop.f32.mrf.mxu0
  %v1203 = vadd.f32 0.0, %v1202
  %v1204 = vpop.f32.mrf.mxu0
  %v1205 = vadd.f32 0.0, %v1204
  %v1206 = vpop.f32.mrf.mxu0
  %v1207 = vadd.f32 0.0, %v1206
  %1208 = vmatprep.mubr.bf16.mxu0 0
  %1209 = vmatmul.mubr.bf16.gmra.mxu0 %v62
  %v1210 = vpop.f32.mrf.mxu0
  %v1211 = vadd.f32 0.0, %v1210
  %v1212 = vpop.f32.mrf.mxu0
  %v1213 = vadd.f32 0.0, %v1212
  %v1214 = vpop.f32.mrf.mxu0
  %v1215 = vadd.f32 0.0, %v1214
  %v1216 = vpop.f32.mrf.mxu0
  %v1217 = vadd.f32 0.0, %v1216
  %1218 = vdwg.mxu0
  %v1219 = vmul.f32 %v290, %v15
  %v1220 = vmul.f32 %v294, %v16
  %v1221 = vmul.f32 %v300, %v17
  %v1222 = vmul.f32 %v304, %v18
  %v1223 = vmul.f32 %v310, %v19
  %v1224 = vmul.f32 %v314, %v20
  %v1225 = vmul.f32 %v320, %v21
  %v1226 = vmul.f32 %v324, %v22
  %v1227 = vmul.f32 %v330, %v23
  %v1228 = vmul.f32 %v334, %v24
  %v1229 = vmul.f32 %v340, %v25
  %v1230 = vmul.f32 %v344, %v26
  %v1231 = vmul.f32 %v350, %v27
  %v1232 = vmul.f32 %v354, %v28
  %v1233 = vmul.f32 %v360, %v29
  %v1234 = vmul.f32 %v364, %v30
  %v1235 = vmul.f32 %v370, %v31
  %v1236 = vmul.f32 %v374, %v32
  %v1237 = vmul.f32 %v380, %v33
  %v1238 = vmul.f32 %v384, %v34
  %v1239 = vmul.f32 %v390, %v35
  %v1240 = vmul.f32 %v394, %v36
  %v1241 = vmul.f32 %v400, %v37
  %v1242 = vmul.f32 %v404, %v38
  %v1243 = vmul.f32 %v410, %v39
  %v1244 = vmul.f32 %v414, %v40
  %v1245 = vmul.f32 %v420, %v41
  %v1246 = vmul.f32 %v424, %v42
  %v1247 = vmul.f32 %v430, %v43
  %v1248 = vmul.f32 %v434, %v44
  %v1249 = vmul.f32 %v440, %v45
  %v1250 = vmul.f32 %v444, %v46
  %1251 = vadd.xlane.f32.xlu0 %v1219
  %v1252 = vpop.xlane.xlu0 %1251
  %1253 = vadd.xlane.f32.xlu0 %v1220
  %v1254 = vpop.xlane.xlu0 %1253
  %1255 = vadd.xlane.f32.xlu0 %v1221
  %v1256 = vpop.xlane.xlu0 %1255
  %1257 = vadd.xlane.f32.xlu0 %v1222
  %v1258 = vpop.xlane.xlu0 %1257
  %1259 = vadd.xlane.f32.xlu0 %v1223
  %v1260 = vpop.xlane.xlu0 %1259
  %1261 = vadd.xlane.f32.xlu0 %v1224
  %v1262 = vpop.xlane.xlu0 %1261
  %1263 = vadd.xlane.f32.xlu0 %v1225
  %v1264 = vpop.xlane.xlu0 %1263
  %1265 = vadd.xlane.f32.xlu0 %v1226
  %v1266 = vpop.xlane.xlu0 %1265
  %1267 = vadd.xlane.f32.xlu0 %v1227
  %v1268 = vpop.xlane.xlu0 %1267
  %1269 = vadd.xlane.f32.xlu0 %v1228
  %v1270 = vpop.xlane.xlu0 %1269
  %1271 = vadd.xlane.f32.xlu0 %v1229
  %v1272 = vpop.xlane.xlu0 %1271
  %1273 = vadd.xlane.f32.xlu0 %v1230
  %v1274 = vpop.xlane.xlu0 %1273
  %1275 = vadd.xlane.f32.xlu0 %v1231
  %v1276 = vpop.xlane.xlu0 %1275
  %1277 = vadd.xlane.f32.xlu0 %v1232
  %v1278 = vpop.xlane.xlu0 %1277
  %1279 = vadd.xlane.f32.xlu0 %v1233
  %v1280 = vpop.xlane.xlu0 %1279
  %1281 = vadd.xlane.f32.xlu0 %v1234
  %v1282 = vpop.xlane.xlu0 %1281
  %1283 = vadd.xlane.f32.xlu0 %v1235
  %v1284 = vpop.xlane.xlu0 %1283
  %1285 = vadd.xlane.f32.xlu0 %v1236
  %v1286 = vpop.xlane.xlu0 %1285
  %1287 = vadd.xlane.f32.xlu0 %v1237
  %v1288 = vpop.xlane.xlu0 %1287
  %1289 = vadd.xlane.f32.xlu0 %v1238
  %v1290 = vpop.xlane.xlu0 %1289
  %1291 = vadd.xlane.f32.xlu0 %v1239
  %v1292 = vpop.xlane.xlu0 %1291
  %1293 = vadd.xlane.f32.xlu0 %v1240
  %v1294 = vpop.xlane.xlu0 %1293
  %1295 = vadd.xlane.f32.xlu0 %v1241
  %v1296 = vpop.xlane.xlu0 %1295
  %1297 = vadd.xlane.f32.xlu0 %v1242
  %v1298 = vpop.xlane.xlu0 %1297
  %1299 = vadd.xlane.f32.xlu0 %v1243
  %v1300 = vpop.xlane.xlu0 %1299
  %1301 = vadd.xlane.f32.xlu0 %v1244
  %v1302 = vpop.xlane.xlu0 %1301
  %1303 = vadd.xlane.f32.xlu0 %v1245
  %v1304 = vpop.xlane.xlu0 %1303
  %1305 = vadd.xlane.f32.xlu0 %v1246
  %v1306 = vpop.xlane.xlu0 %1305
  %1307 = vadd.xlane.f32.xlu0 %v1247
  %v1308 = vpop.xlane.xlu0 %1307
  %1309 = vadd.xlane.f32.xlu0 %v1248
  %v1310 = vpop.xlane.xlu0 %1309
  %1311 = vadd.xlane.f32.xlu0 %v1249
  %v1312 = vpop.xlane.xlu0 %1311
  %1313 = vadd.xlane.f32.xlu0 %v1250
  %v1314 = vpop.xlane.xlu0 %1313
  %v1315 = vmul.f32 %v292, %v15
  %v1316 = vmul.f32 %v296, %v16
  %v1317 = vmul.f32 %v302, %v17
  %v1318 = vmul.f32 %v306, %v18
  %v1319 = vmul.f32 %v312, %v19
  %v1320 = vmul.f32 %v316, %v20
  %v1321 = vmul.f32 %v322, %v21
  %v1322 = vmul.f32 %v326, %v22
  %v1323 = vmul.f32 %v332, %v23
  %v1324 = vmul.f32 %v336, %v24
  %v1325 = vmul.f32 %v342, %v25
  %v1326 = vmul.f32 %v346, %v26
  %v1327 = vmul.f32 %v352, %v27
  %v1328 = vmul.f32 %v356, %v28
  %v1329 = vmul.f32 %v362, %v29
  %v1330 = vmul.f32 %v366, %v30
  %v1331 = vmul.f32 %v372, %v31
  %v1332 = vmul.f32 %v376, %v32
  %v1333 = vmul.f32 %v382, %v33
  %v1334 = vmul.f32 %v386, %v34
  %v1335 = vmul.f32 %v392, %v35
  %v1336 = vmul.f32 %v396, %v36
  %v1337 = vmul.f32 %v402, %v37
  %v1338 = vmul.f32 %v406, %v38
  %v1339 = vmul.f32 %v412, %v39
  %v1340 = vmul.f32 %v416, %v40
  %v1341 = vmul.f32 %v422, %v41
  %v1342 = vmul.f32 %v426, %v42
  %v1343 = vmul.f32 %v432, %v43
  %v1344 = vmul.f32 %v436, %v44
  %v1345 = vmul.f32 %v442, %v45
  %v1346 = vmul.f32 %v446, %v46
  %1347 = vadd.xlane.f32.xlu0 %v1315
  %v1348 = vpop.xlane.xlu0 %1347
  %1349 = vadd.xlane.f32.xlu0 %v1316
  %v1350 = vpop.xlane.xlu0 %1349
  %1351 = vadd.xlane.f32.xlu0 %v1317
  %v1352 = vpop.xlane.xlu0 %1351
  %1353 = vadd.xlane.f32.xlu0 %v1318
  %v1354 = vpop.xlane.xlu0 %1353
  %1355 = vadd.xlane.f32.xlu0 %v1319
  %v1356 = vpop.xlane.xlu0 %1355
  %1357 = vadd.xlane.f32.xlu0 %v1320
  %v1358 = vpop.xlane.xlu0 %1357
  %1359 = vadd.xlane.f32.xlu0 %v1321
  %v1360 = vpop.xlane.xlu0 %1359
  %1361 = vadd.xlane.f32.xlu0 %v1322
  %v1362 = vpop.xlane.xlu0 %1361
  %1363 = vadd.xlane.f32.xlu0 %v1323
  %v1364 = vpop.xlane.xlu0 %1363
  %1365 = vadd.xlane.f32.xlu0 %v1324
  %v1366 = vpop.xlane.xlu0 %1365
  %1367 = vadd.xlane.f32.xlu0 %v1325
  %v1368 = vpop.xlane.xlu0 %1367
  %1369 = vadd.xlane.f32.xlu0 %v1326
  %v1370 = vpop.xlane.xlu0 %1369
  %1371 = vadd.xlane.f32.xlu0 %v1327
  %v1372 = vpop.xlane.xlu0 %1371
  %1373 = vadd.xlane.f32.xlu0 %v1328
  %v1374 = vpop.xlane.xlu0 %1373
  %1375 = vadd.xlane.f32.xlu0 %v1329
  %v1376 = vpop.xlane.xlu0 %1375
  %1377 = vadd.xlane.f32.xlu0 %v1330
  %v1378 = vpop.xlane.xlu0 %1377
  %1379 = vadd.xlane.f32.xlu0 %v1331
  %v1380 = vpop.xlane.xlu0 %1379
  %1381 = vadd.xlane.f32.xlu0 %v1332
  %v1382 = vpop.xlane.xlu0 %1381
  %1383 = vadd.xlane.f32.xlu0 %v1333
  %v1384 = vpop.xlane.xlu0 %1383
  %1385 = vadd.xlane.f32.xlu0 %v1334
  %v1386 = vpop.xlane.xlu0 %1385
  %1387 = vadd.xlane.f32.xlu0 %v1335
  %v1388 = vpop.xlane.xlu0 %1387
  %1389 = vadd.xlane.f32.xlu0 %v1336
  %v1390 = vpop.xlane.xlu0 %1389
  %1391 = vadd.xlane.f32.xlu0 %v1337
  %v1392 = vpop.xlane.xlu0 %1391
  %1393 = vadd.xlane.f32.xlu0 %v1338
  %v1394 = vpop.xlane.xlu0 %1393
  %1395 = vadd.xlane.f32.xlu0 %v1339
  %v1396 = vpop.xlane.xlu0 %1395
  %1397 = vadd.xlane.f32.xlu0 %v1340
  %v1398 = vpop.xlane.xlu0 %1397
  %1399 = vadd.xlane.f32.xlu0 %v1341
  %v1400 = vpop.xlane.xlu0 %1399
  %1401 = vadd.xlane.f32.xlu0 %v1342
  %v1402 = vpop.xlane.xlu0 %1401
  %1403 = vadd.xlane.f32.xlu0 %v1343
  %v1404 = vpop.xlane.xlu0 %1403
  %1405 = vadd.xlane.f32.xlu0 %v1344
  %v1406 = vpop.xlane.xlu0 %1405
  %1407 = vadd.xlane.f32.xlu0 %v1345
  %v1408 = vpop.xlane.xlu0 %1407
  %1409 = vadd.xlane.f32.xlu0 %v1346
  %v1410 = vpop.xlane.xlu0 %1409
  %vm1411 = vcmp.lt.f32.partialorder %v1348, %v1252
  %vm1412 = vcmp.lt.f32.partialorder %v1350, %v1254
  %vm1413 = vcmp.lt.f32.partialorder %v1352, %v1256
  %vm1414 = vcmp.lt.f32.partialorder %v1354, %v1258
  %vm1415 = vcmp.lt.f32.partialorder %v1356, %v1260
  %vm1416 = vcmp.lt.f32.partialorder %v1358, %v1262
  %vm1417 = vcmp.lt.f32.partialorder %v1360, %v1264
  %vm1418 = vcmp.lt.f32.partialorder %v1362, %v1266
  %vm1419 = vcmp.lt.f32.partialorder %v1364, %v1268
  %vm1420 = vcmp.lt.f32.partialorder %v1366, %v1270
  %vm1421 = vcmp.lt.f32.partialorder %v1368, %v1272
  %vm1422 = vcmp.lt.f32.partialorder %v1370, %v1274
  %vm1423 = vcmp.lt.f32.partialorder %v1372, %v1276
  %vm1424 = vcmp.lt.f32.partialorder %v1374, %v1278
  %vm1425 = vcmp.lt.f32.partialorder %v1376, %v1280
  %vm1426 = vcmp.lt.f32.partialorder %v1378, %v1282
  %vm1427 = vcmp.lt.f32.partialorder %v1380, %v1284
  %vm1428 = vcmp.lt.f32.partialorder %v1382, %v1286
  %vm1429 = vcmp.lt.f32.partialorder %v1384, %v1288
  %vm1430 = vcmp.lt.f32.partialorder %v1386, %v1290
  %vm1431 = vcmp.lt.f32.partialorder %v1388, %v1292
  %vm1432 = vcmp.lt.f32.partialorder %v1390, %v1294
  %vm1433 = vcmp.lt.f32.partialorder %v1392, %v1296
  %vm1434 = vcmp.lt.f32.partialorder %v1394, %v1298
  %vm1435 = vcmp.lt.f32.partialorder %v1396, %v1300
  %vm1436 = vcmp.lt.f32.partialorder %v1398, %v1302
  %vm1437 = vcmp.lt.f32.partialorder %v1400, %v1304
  %vm1438 = vcmp.lt.f32.partialorder %v1402, %v1306
  %vm1439 = vcmp.lt.f32.partialorder %v1404, %v1308
  %vm1440 = vcmp.lt.f32.partialorder %v1406, %v1310
  %vm1441 = vcmp.lt.f32.partialorder %v1408, %v1312
  %vm1442 = vcmp.lt.f32.partialorder %v1410, %v1314
  %v1443 = vsel %vm1411, %v1348, %v1252
  %v1444 = vsel %vm1412, %v1350, %v1254
  %v1445 = vsel %vm1413, %v1352, %v1256
  %v1446 = vsel %vm1414, %v1354, %v1258
  %v1447 = vsel %vm1415, %v1356, %v1260
  %v1448 = vsel %vm1416, %v1358, %v1262
  %v1449 = vsel %vm1417, %v1360, %v1264
  %v1450 = vsel %vm1418, %v1362, %v1266
  %v1451 = vsel %vm1419, %v1364, %v1268
  %v1452 = vsel %vm1420, %v1366, %v1270
  %v1453 = vsel %vm1421, %v1368, %v1272
  %v1454 = vsel %vm1422, %v1370, %v1274
  %v1455 = vsel %vm1423, %v1372, %v1276
  %v1456 = vsel %vm1424, %v1374, %v1278
  %v1457 = vsel %vm1425, %v1376, %v1280
  %v1458 = vsel %vm1426, %v1378, %v1282
  %v1459 = vsel %vm1427, %v1380, %v1284
  %v1460 = vsel %vm1428, %v1382, %v1286
  %v1461 = vsel %vm1429, %v1384, %v1288
  %v1462 = vsel %vm1430, %v1386, %v1290
  %v1463 = vsel %vm1431, %v1388, %v1292
  %v1464 = vsel %vm1432, %v1390, %v1294
  %v1465 = vsel %vm1433, %v1392, %v1296
  %v1466 = vsel %vm1434, %v1394, %v1298
  %v1467 = vsel %vm1435, %v1396, %v1300
  %v1468 = vsel %vm1436, %v1398, %v1302
  %v1469 = vsel %vm1437, %v1400, %v1304
  %v1470 = vsel %vm1438, %v1402, %v1306
  %v1471 = vsel %vm1439, %v1404, %v1308
  %v1472 = vsel %vm1440, %v1406, %v1310
  %v1473 = vsel %vm1441, %v1408, %v1312
  %v1474 = vsel %vm1442, %v1410, %v1314
  %v1475 = vsel %vm1411, 1, 0
  %v1476 = vsel %vm1412, 1, 0
  %v1477 = vsel %vm1413, 1, 0
  %v1478 = vsel %vm1414, 1, 0
  %v1479 = vsel %vm1415, 1, 0
  %v1480 = vsel %vm1416, 1, 0
  %v1481 = vsel %vm1417, 1, 0
  %v1482 = vsel %vm1418, 1, 0
  %v1483 = vsel %vm1419, 1, 0
  %v1484 = vsel %vm1420, 1, 0
  %v1485 = vsel %vm1421, 1, 0
  %v1486 = vsel %vm1422, 1, 0
  %v1487 = vsel %vm1423, 1, 0
  %v1488 = vsel %vm1424, 1, 0
  %v1489 = vsel %vm1425, 1, 0
  %v1490 = vsel %vm1426, 1, 0
  %v1491 = vsel %vm1427, 1, 0
  %v1492 = vsel %vm1428, 1, 0
  %v1493 = vsel %vm1429, 1, 0
  %v1494 = vsel %vm1430, 1, 0
  %v1495 = vsel %vm1431, 1, 0
  %v1496 = vsel %vm1432, 1, 0
  %v1497 = vsel %vm1433, 1, 0
  %v1498 = vsel %vm1434, 1, 0
  %v1499 = vsel %vm1435, 1, 0
  %v1500 = vsel %vm1436, 1, 0
  %v1501 = vsel %vm1437, 1, 0
  %v1502 = vsel %vm1438, 1, 0
  %v1503 = vsel %vm1439, 1, 0
  %v1504 = vsel %vm1440, 1, 0
  %v1505 = vsel %vm1441, 1, 0
  %v1506 = vsel %vm1442, 1, 0
  %v1507 = vmul.f32 %v483, %v15
  %v1508 = vmul.f32 %v487, %v16
  %v1509 = vmul.f32 %v493, %v17
  %v1510 = vmul.f32 %v497, %v18
  %v1511 = vmul.f32 %v503, %v19
  %v1512 = vmul.f32 %v507, %v20
  %v1513 = vmul.f32 %v513, %v21
  %v1514 = vmul.f32 %v517, %v22
  %v1515 = vmul.f32 %v523, %v23
  %v1516 = vmul.f32 %v527, %v24
  %v1517 = vmul.f32 %v533, %v25
  %v1518 = vmul.f32 %v537, %v26
  %v1519 = vmul.f32 %v543, %v27
  %v1520 = vmul.f32 %v547, %v28
  %v1521 = vmul.f32 %v553, %v29
  %v1522 = vmul.f32 %v557, %v30
  %v1523 = vmul.f32 %v563, %v31
  %v1524 = vmul.f32 %v567, %v32
  %v1525 = vmul.f32 %v573, %v33
  %v1526 = vmul.f32 %v577, %v34
  %v1527 = vmul.f32 %v583, %v35
  %v1528 = vmul.f32 %v587, %v36
  %v1529 = vmul.f32 %v593, %v37
  %v1530 = vmul.f32 %v597, %v38
  %v1531 = vmul.f32 %v603, %v39
  %v1532 = vmul.f32 %v607, %v40
  %v1533 = vmul.f32 %v613, %v41
  %v1534 = vmul.f32 %v617, %v42
  %v1535 = vmul.f32 %v623, %v43
  %v1536 = vmul.f32 %v627, %v44
  %v1537 = vmul.f32 %v633, %v45
  %v1538 = vmul.f32 %v637, %v46
  %1539 = vadd.xlane.f32.xlu0 %v1507
  %v1540 = vpop.xlane.xlu0 %1539
  %1541 = vadd.xlane.f32.xlu0 %v1508
  %v1542 = vpop.xlane.xlu0 %1541
  %1543 = vadd.xlane.f32.xlu0 %v1509
  %v1544 = vpop.xlane.xlu0 %1543
  %1545 = vadd.xlane.f32.xlu0 %v1510
  %v1546 = vpop.xlane.xlu0 %1545
  %1547 = vadd.xlane.f32.xlu0 %v1511
  %v1548 = vpop.xlane.xlu0 %1547
  %1549 = vadd.xlane.f32.xlu0 %v1512
  %v1550 = vpop.xlane.xlu0 %1549
  %1551 = vadd.xlane.f32.xlu0 %v1513
  %v1552 = vpop.xlane.xlu0 %1551
  %1553 = vadd.xlane.f32.xlu0 %v1514
  %v1554 = vpop.xlane.xlu0 %1553
  %1555 = vadd.xlane.f32.xlu0 %v1515
  %v1556 = vpop.xlane.xlu0 %1555
  %1557 = vadd.xlane.f32.xlu0 %v1516
  %v1558 = vpop.xlane.xlu0 %1557
  %1559 = vadd.xlane.f32.xlu0 %v1517
  %v1560 = vpop.xlane.xlu0 %1559
  %1561 = vadd.xlane.f32.xlu0 %v1518
  %v1562 = vpop.xlane.xlu0 %1561
  %1563 = vadd.xlane.f32.xlu0 %v1519
  %v1564 = vpop.xlane.xlu0 %1563
  %1565 = vadd.xlane.f32.xlu0 %v1520
  %v1566 = vpop.xlane.xlu0 %1565
  %1567 = vadd.xlane.f32.xlu0 %v1521
  %v1568 = vpop.xlane.xlu0 %1567
  %1569 = vadd.xlane.f32.xlu0 %v1522
  %v1570 = vpop.xlane.xlu0 %1569
  %1571 = vadd.xlane.f32.xlu0 %v1523
  %v1572 = vpop.xlane.xlu0 %1571
  %1573 = vadd.xlane.f32.xlu0 %v1524
  %v1574 = vpop.xlane.xlu0 %1573
  %1575 = vadd.xlane.f32.xlu0 %v1525
  %v1576 = vpop.xlane.xlu0 %1575
  %1577 = vadd.xlane.f32.xlu0 %v1526
  %v1578 = vpop.xlane.xlu0 %1577
  %1579 = vadd.xlane.f32.xlu0 %v1527
  %v1580 = vpop.xlane.xlu0 %1579
  %1581 = vadd.xlane.f32.xlu0 %v1528
  %v1582 = vpop.xlane.xlu0 %1581
  %1583 = vadd.xlane.f32.xlu0 %v1529
  %v1584 = vpop.xlane.xlu0 %1583
  %1585 = vadd.xlane.f32.xlu0 %v1530
  %v1586 = vpop.xlane.xlu0 %1585
  %1587 = vadd.xlane.f32.xlu0 %v1531
  %v1588 = vpop.xlane.xlu0 %1587
  %1589 = vadd.xlane.f32.xlu0 %v1532
  %v1590 = vpop.xlane.xlu0 %1589
  %1591 = vadd.xlane.f32.xlu0 %v1533
  %v1592 = vpop.xlane.xlu0 %1591
  %1593 = vadd.xlane.f32.xlu0 %v1534
  %v1594 = vpop.xlane.xlu0 %1593
  %1595 = vadd.xlane.f32.xlu0 %v1535
  %v1596 = vpop.xlane.xlu0 %1595
  %1597 = vadd.xlane.f32.xlu0 %v1536
  %v1598 = vpop.xlane.xlu0 %1597
  %1599 = vadd.xlane.f32.xlu0 %v1537
  %v1600 = vpop.xlane.xlu0 %1599
  %1601 = vadd.xlane.f32.xlu0 %v1538
  %v1602 = vpop.xlane.xlu0 %1601
  %vm1603 = vcmp.lt.f32.partialorder %v1540, %v1443
  %vm1604 = vcmp.lt.f32.partialorder %v1542, %v1444
  %vm1605 = vcmp.lt.f32.partialorder %v1544, %v1445
  %vm1606 = vcmp.lt.f32.partialorder %v1546, %v1446
  %vm1607 = vcmp.lt.f32.partialorder %v1548, %v1447
  %vm1608 = vcmp.lt.f32.partialorder %v1550, %v1448
  %vm1609 = vcmp.lt.f32.partialorder %v1552, %v1449
  %vm1610 = vcmp.lt.f32.partialorder %v1554, %v1450
  %vm1611 = vcmp.lt.f32.partialorder %v1556, %v1451
  %vm1612 = vcmp.lt.f32.partialorder %v1558, %v1452
  %vm1613 = vcmp.lt.f32.partialorder %v1560, %v1453
  %vm1614 = vcmp.lt.f32.partialorder %v1562, %v1454
  %vm1615 = vcmp.lt.f32.partialorder %v1564, %v1455
  %vm1616 = vcmp.lt.f32.partialorder %v1566, %v1456
  %vm1617 = vcmp.lt.f32.partialorder %v1568, %v1457
  %vm1618 = vcmp.lt.f32.partialorder %v1570, %v1458
  %vm1619 = vcmp.lt.f32.partialorder %v1572, %v1459
  %vm1620 = vcmp.lt.f32.partialorder %v1574, %v1460
  %vm1621 = vcmp.lt.f32.partialorder %v1576, %v1461
  %vm1622 = vcmp.lt.f32.partialorder %v1578, %v1462
  %vm1623 = vcmp.lt.f32.partialorder %v1580, %v1463
  %vm1624 = vcmp.lt.f32.partialorder %v1582, %v1464
  %vm1625 = vcmp.lt.f32.partialorder %v1584, %v1465
  %vm1626 = vcmp.lt.f32.partialorder %v1586, %v1466
  %vm1627 = vcmp.lt.f32.partialorder %v1588, %v1467
  %vm1628 = vcmp.lt.f32.partialorder %v1590, %v1468
  %vm1629 = vcmp.lt.f32.partialorder %v1592, %v1469
  %vm1630 = vcmp.lt.f32.partialorder %v1594, %v1470
  %vm1631 = vcmp.lt.f32.partialorder %v1596, %v1471
  %vm1632 = vcmp.lt.f32.partialorder %v1598, %v1472
  %vm1633 = vcmp.lt.f32.partialorder %v1600, %v1473
  %vm1634 = vcmp.lt.f32.partialorder %v1602, %v1474
  %v1635 = vsel %vm1603, %v1540, %v1443
  %v1636 = vsel %vm1604, %v1542, %v1444
  %v1637 = vsel %vm1605, %v1544, %v1445
  %v1638 = vsel %vm1606, %v1546, %v1446
  %v1639 = vsel %vm1607, %v1548, %v1447
  %v1640 = vsel %vm1608, %v1550, %v1448
  %v1641 = vsel %vm1609, %v1552, %v1449
  %v1642 = vsel %vm1610, %v1554, %v1450
  %v1643 = vsel %vm1611, %v1556, %v1451
  %v1644 = vsel %vm1612, %v1558, %v1452
  %v1645 = vsel %vm1613, %v1560, %v1453
  %v1646 = vsel %vm1614, %v1562, %v1454
  %v1647 = vsel %vm1615, %v1564, %v1455
  %v1648 = vsel %vm1616, %v1566, %v1456
  %v1649 = vsel %vm1617, %v1568, %v1457
  %v1650 = vsel %vm1618, %v1570, %v1458
  %v1651 = vsel %vm1619, %v1572, %v1459
  %v1652 = vsel %vm1620, %v1574, %v1460
  %v1653 = vsel %vm1621, %v1576, %v1461
  %v1654 = vsel %vm1622, %v1578, %v1462
  %v1655 = vsel %vm1623, %v1580, %v1463
  %v1656 = vsel %vm1624, %v1582, %v1464
  %v1657 = vsel %vm1625, %v1584, %v1465
  %v1658 = vsel %vm1626, %v1586, %v1466
  %v1659 = vsel %vm1627, %v1588, %v1467
  %v1660 = vsel %vm1628, %v1590, %v1468
  %v1661 = vsel %vm1629, %v1592, %v1469
  %v1662 = vsel %vm1630, %v1594, %v1470
  %v1663 = vsel %vm1631, %v1596, %v1471
  %v1664 = vsel %vm1632, %v1598, %v1472
  %v1665 = vsel %vm1633, %v1600, %v1473
  %v1666 = vsel %vm1634, %v1602, %v1474
  %v1667 = vsel %vm1603, 2, %v1475
  %v1668 = vsel %vm1604, 2, %v1476
  %v1669 = vsel %vm1605, 2, %v1477
  %v1670 = vsel %vm1606, 2, %v1478
  %v1671 = vsel %vm1607, 2, %v1479
  %v1672 = vsel %vm1608, 2, %v1480
  %v1673 = vsel %vm1609, 2, %v1481
  %v1674 = vsel %vm1610, 2, %v1482
  %v1675 = vsel %vm1611, 2, %v1483
  %v1676 = vsel %vm1612, 2, %v1484
  %v1677 = vsel %vm1613, 2, %v1485
  %v1678 = vsel %vm1614, 2, %v1486
  %v1679 = vsel %vm1615, 2, %v1487
  %v1680 = vsel %vm1616, 2, %v1488
  %v1681 = vsel %vm1617, 2, %v1489
  %v1682 = vsel %vm1618, 2, %v1490
  %v1683 = vsel %vm1619, 2, %v1491
  %v1684 = vsel %vm1620, 2, %v1492
  %v1685 = vsel %vm1621, 2, %v1493
  %v1686 = vsel %vm1622, 2, %v1494
  %v1687 = vsel %vm1623, 2, %v1495
  %v1688 = vsel %vm1624, 2, %v1496
  %v1689 = vsel %vm1625, 2, %v1497
  %v1690 = vsel %vm1626, 2, %v1498
  %v1691 = vsel %vm1627, 2, %v1499
  %v1692 = vsel %vm1628, 2, %v1500
  %v1693 = vsel %vm1629, 2, %v1501
  %v1694 = vsel %vm1630, 2, %v1502
  %v1695 = vsel %vm1631, 2, %v1503
  %v1696 = vsel %vm1632, 2, %v1504
  %v1697 = vsel %vm1633, 2, %v1505
  %v1698 = vsel %vm1634, 2, %v1506
  %v1699 = vmul.f32 %v485, %v15
  %v1700 = vmul.f32 %v489, %v16
  %v1701 = vmul.f32 %v495, %v17
  %v1702 = vmul.f32 %v499, %v18
  %v1703 = vmul.f32 %v505, %v19
  %v1704 = vmul.f32 %v509, %v20
  %v1705 = vmul.f32 %v515, %v21
  %v1706 = vmul.f32 %v519, %v22
  %v1707 = vmul.f32 %v525, %v23
  %v1708 = vmul.f32 %v529, %v24
  %v1709 = vmul.f32 %v535, %v25
  %v1710 = vmul.f32 %v539, %v26
  %v1711 = vmul.f32 %v545, %v27
  %v1712 = vmul.f32 %v549, %v28
  %v1713 = vmul.f32 %v555, %v29
  %v1714 = vmul.f32 %v559, %v30
  %v1715 = vmul.f32 %v565, %v31
  %v1716 = vmul.f32 %v569, %v32
  %v1717 = vmul.f32 %v575, %v33
  %v1718 = vmul.f32 %v579, %v34
  %v1719 = vmul.f32 %v585, %v35
  %v1720 = vmul.f32 %v589, %v36
  %v1721 = vmul.f32 %v595, %v37
  %v1722 = vmul.f32 %v599, %v38
  %v1723 = vmul.f32 %v605, %v39
  %v1724 = vmul.f32 %v609, %v40
  %v1725 = vmul.f32 %v615, %v41
  %v1726 = vmul.f32 %v619, %v42
  %v1727 = vmul.f32 %v625, %v43
  %v1728 = vmul.f32 %v629, %v44
  %v1729 = vmul.f32 %v635, %v45
  %v1730 = vmul.f32 %v639, %v46
  %1731 = vadd.xlane.f32.xlu0 %v1699
  %v1732 = vpop.xlane.xlu0 %1731
  %1733 = vadd.xlane.f32.xlu0 %v1700
  %v1734 = vpop.xlane.xlu0 %1733
  %1735 = vadd.xlane.f32.xlu0 %v1701
  %v1736 = vpop.xlane.xlu0 %1735
  %1737 = vadd.xlane.f32.xlu0 %v1702
  %v1738 = vpop.xlane.xlu0 %1737
  %1739 = vadd.xlane.f32.xlu0 %v1703
  %v1740 = vpop.xlane.xlu0 %1739
  %1741 = vadd.xlane.f32.xlu0 %v1704
  %v1742 = vpop.xlane.xlu0 %1741
  %1743 = vadd.xlane.f32.xlu0 %v1705
  %v1744 = vpop.xlane.xlu0 %1743
  %1745 = vadd.xlane.f32.xlu0 %v1706
  %v1746 = vpop.xlane.xlu0 %1745
  %1747 = vadd.xlane.f32.xlu0 %v1707
  %v1748 = vpop.xlane.xlu0 %1747
  %1749 = vadd.xlane.f32.xlu0 %v1708
  %v1750 = vpop.xlane.xlu0 %1749
  %1751 = vadd.xlane.f32.xlu0 %v1709
  %v1752 = vpop.xlane.xlu0 %1751
  %1753 = vadd.xlane.f32.xlu0 %v1710
  %v1754 = vpop.xlane.xlu0 %1753
  %1755 = vadd.xlane.f32.xlu0 %v1711
  %v1756 = vpop.xlane.xlu0 %1755
  %1757 = vadd.xlane.f32.xlu0 %v1712
  %v1758 = vpop.xlane.xlu0 %1757
  %1759 = vadd.xlane.f32.xlu0 %v1713
  %v1760 = vpop.xlane.xlu0 %1759
  %1761 = vadd.xlane.f32.xlu0 %v1714
  %v1762 = vpop.xlane.xlu0 %1761
  %1763 = vadd.xlane.f32.xlu0 %v1715
  %v1764 = vpop.xlane.xlu0 %1763
  %1765 = vadd.xlane.f32.xlu0 %v1716
  %v1766 = vpop.xlane.xlu0 %1765
  %1767 = vadd.xlane.f32.xlu0 %v1717
  %v1768 = vpop.xlane.xlu0 %1767
  %1769 = vadd.xlane.f32.xlu0 %v1718
  %v1770 = vpop.xlane.xlu0 %1769
  %1771 = vadd.xlane.f32.xlu0 %v1719
  %v1772 = vpop.xlane.xlu0 %1771
  %1773 = vadd.xlane.f32.xlu0 %v1720
  %v1774 = vpop.xlane.xlu0 %1773
  %1775 = vadd.xlane.f32.xlu0 %v1721
  %v1776 = vpop.xlane.xlu0 %1775
  %1777 = vadd.xlane.f32.xlu0 %v1722
  %v1778 = vpop.xlane.xlu0 %1777
  %1779 = vadd.xlane.f32.xlu0 %v1723
  %v1780 = vpop.xlane.xlu0 %1779
  %1781 = vadd.xlane.f32.xlu0 %v1724
  %v1782 = vpop.xlane.xlu0 %1781
  %1783 = vadd.xlane.f32.xlu0 %v1725
  %v1784 = vpop.xlane.xlu0 %1783
  %1785 = vadd.xlane.f32.xlu0 %v1726
  %v1786 = vpop.xlane.xlu0 %1785
  %1787 = vadd.xlane.f32.xlu0 %v1727
  %v1788 = vpop.xlane.xlu0 %1787
  %1789 = vadd.xlane.f32.xlu0 %v1728
  %v1790 = vpop.xlane.xlu0 %1789
  %1791 = vadd.xlane.f32.xlu0 %v1729
  %v1792 = vpop.xlane.xlu0 %1791
  %1793 = vadd.xlane.f32.xlu0 %v1730
  %v1794 = vpop.xlane.xlu0 %1793
  %vm1795 = vcmp.lt.f32.partialorder %v1732, %v1635
  %vm1796 = vcmp.lt.f32.partialorder %v1734, %v1636
  %vm1797 = vcmp.lt.f32.partialorder %v1736, %v1637
  %vm1798 = vcmp.lt.f32.partialorder %v1738, %v1638
  %vm1799 = vcmp.lt.f32.partialorder %v1740, %v1639
  %vm1800 = vcmp.lt.f32.partialorder %v1742, %v1640
  %vm1801 = vcmp.lt.f32.partialorder %v1744, %v1641
  %vm1802 = vcmp.lt.f32.partialorder %v1746, %v1642
  %vm1803 = vcmp.lt.f32.partialorder %v1748, %v1643
  %vm1804 = vcmp.lt.f32.partialorder %v1750, %v1644
  %vm1805 = vcmp.lt.f32.partialorder %v1752, %v1645
  %vm1806 = vcmp.lt.f32.partialorder %v1754, %v1646
  %vm1807 = vcmp.lt.f32.partialorder %v1756, %v1647
  %vm1808 = vcmp.lt.f32.partialorder %v1758, %v1648
  %vm1809 = vcmp.lt.f32.partialorder %v1760, %v1649
  %vm1810 = vcmp.lt.f32.partialorder %v1762, %v1650
  %vm1811 = vcmp.lt.f32.partialorder %v1764, %v1651
  %vm1812 = vcmp.lt.f32.partialorder %v1766, %v1652
  %vm1813 = vcmp.lt.f32.partialorder %v1768, %v1653
  %vm1814 = vcmp.lt.f32.partialorder %v1770, %v1654
  %vm1815 = vcmp.lt.f32.partialorder %v1772, %v1655
  %vm1816 = vcmp.lt.f32.partialorder %v1774, %v1656
  %vm1817 = vcmp.lt.f32.partialorder %v1776, %v1657
  %vm1818 = vcmp.lt.f32.partialorder %v1778, %v1658
  %vm1819 = vcmp.lt.f32.partialorder %v1780, %v1659
  %vm1820 = vcmp.lt.f32.partialorder %v1782, %v1660
  %vm1821 = vcmp.lt.f32.partialorder %v1784, %v1661
  %vm1822 = vcmp.lt.f32.partialorder %v1786, %v1662
  %vm1823 = vcmp.lt.f32.partialorder %v1788, %v1663
  %vm1824 = vcmp.lt.f32.partialorder %v1790, %v1664
  %vm1825 = vcmp.lt.f32.partialorder %v1792, %v1665
  %vm1826 = vcmp.lt.f32.partialorder %v1794, %v1666
  %v1827 = vsel %vm1795, 3, %v1667
  %v1828 = vsel %vm1796, 3, %v1668
  %v1829 = vsel %vm1797, 3, %v1669
  %v1830 = vsel %vm1798, 3, %v1670
  %v1831 = vsel %vm1799, 3, %v1671
  %v1832 = vsel %vm1800, 3, %v1672
  %v1833 = vsel %vm1801, 3, %v1673
  %v1834 = vsel %vm1802, 3, %v1674
  %v1835 = vsel %vm1803, 3, %v1675
  %v1836 = vsel %vm1804, 3, %v1676
  %v1837 = vsel %vm1805, 3, %v1677
  %v1838 = vsel %vm1806, 3, %v1678
  %v1839 = vsel %vm1807, 3, %v1679
  %v1840 = vsel %vm1808, 3, %v1680
  %v1841 = vsel %vm1809, 3, %v1681
  %v1842 = vsel %vm1810, 3, %v1682
  %v1843 = vsel %vm1811, 3, %v1683
  %v1844 = vsel %vm1812, 3, %v1684
  %v1845 = vsel %vm1813, 3, %v1685
  %v1846 = vsel %vm1814, 3, %v1686
  %v1847 = vsel %vm1815, 3, %v1687
  %v1848 = vsel %vm1816, 3, %v1688
  %v1849 = vsel %vm1817, 3, %v1689
  %v1850 = vsel %vm1818, 3, %v1690
  %v1851 = vsel %vm1819, 3, %v1691
  %v1852 = vsel %vm1820, 3, %v1692
  %v1853 = vsel %vm1821, 3, %v1693
  %v1854 = vsel %vm1822, 3, %v1694
  %v1855 = vsel %vm1823, 3, %v1695
  %v1856 = vsel %vm1824, 3, %v1696
  %v1857 = vsel %vm1825, 3, %v1697
  %v1858 = vsel %vm1826, 3, %v1698
  %vm1859 = vcmp.eq.s32.totalorder %v1827, 1
  %vm1860 = vcmp.eq.s32.totalorder %v1828, 1
  %vm1861 = vcmp.eq.s32.totalorder %v1829, 1
  %vm1862 = vcmp.eq.s32.totalorder %v1830, 1
  %vm1863 = vcmp.eq.s32.totalorder %v1831, 1
  %vm1864 = vcmp.eq.s32.totalorder %v1832, 1
  %vm1865 = vcmp.eq.s32.totalorder %v1833, 1
  %vm1866 = vcmp.eq.s32.totalorder %v1834, 1
  %vm1867 = vcmp.eq.s32.totalorder %v1835, 1
  %vm1868 = vcmp.eq.s32.totalorder %v1836, 1
  %vm1869 = vcmp.eq.s32.totalorder %v1837, 1
  %vm1870 = vcmp.eq.s32.totalorder %v1838, 1
  %vm1871 = vcmp.eq.s32.totalorder %v1839, 1
  %vm1872 = vcmp.eq.s32.totalorder %v1840, 1
  %vm1873 = vcmp.eq.s32.totalorder %v1841, 1
  %vm1874 = vcmp.eq.s32.totalorder %v1842, 1
  %vm1875 = vcmp.eq.s32.totalorder %v1843, 1
  %vm1876 = vcmp.eq.s32.totalorder %v1844, 1
  %vm1877 = vcmp.eq.s32.totalorder %v1845, 1
  %vm1878 = vcmp.eq.s32.totalorder %v1846, 1
  %vm1879 = vcmp.eq.s32.totalorder %v1847, 1
  %vm1880 = vcmp.eq.s32.totalorder %v1848, 1
  %vm1881 = vcmp.eq.s32.totalorder %v1849, 1
  %vm1882 = vcmp.eq.s32.totalorder %v1850, 1
  %vm1883 = vcmp.eq.s32.totalorder %v1851, 1
  %vm1884 = vcmp.eq.s32.totalorder %v1852, 1
  %vm1885 = vcmp.eq.s32.totalorder %v1853, 1
  %vm1886 = vcmp.eq.s32.totalorder %v1854, 1
  %vm1887 = vcmp.eq.s32.totalorder %v1855, 1
  %vm1888 = vcmp.eq.s32.totalorder %v1856, 1
  %vm1889 = vcmp.eq.s32.totalorder %v1857, 1
  %vm1890 = vcmp.eq.s32.totalorder %v1858, 1
  %v1891 = vsel %vm1859, 1, 0
  %v1892 = vsel %vm1860, 1, 0
  %v1893 = vsel %vm1861, 1, 0
  %v1894 = vsel %vm1862, 1, 0
  %v1895 = vsel %vm1863, 1, 0
  %v1896 = vsel %vm1864, 1, 0
  %v1897 = vsel %vm1865, 1, 0
  %v1898 = vsel %vm1866, 1, 0
  %v1899 = vsel %vm1867, 1, 0
  %v1900 = vsel %vm1868, 1, 0
  %v1901 = vsel %vm1869, 1, 0
  %v1902 = vsel %vm1870, 1, 0
  %v1903 = vsel %vm1871, 1, 0
  %v1904 = vsel %vm1872, 1, 0
  %v1905 = vsel %vm1873, 1, 0
  %v1906 = vsel %vm1874, 1, 0
  %v1907 = vsel %vm1875, 1, 0
  %v1908 = vsel %vm1876, 1, 0
  %v1909 = vsel %vm1877, 1, 0
  %v1910 = vsel %vm1878, 1, 0
  %v1911 = vsel %vm1879, 1, 0
  %v1912 = vsel %vm1880, 1, 0
  %v1913 = vsel %vm1881, 1, 0
  %v1914 = vsel %vm1882, 1, 0
  %v1915 = vsel %vm1883, 1, 0
  %v1916 = vsel %vm1884, 1, 0
  %v1917 = vsel %vm1885, 1, 0
  %v1918 = vsel %vm1886, 1, 0
  %v1919 = vsel %vm1887, 1, 0
  %v1920 = vsel %vm1888, 1, 0
  %v1921 = vsel %vm1889, 1, 0
  %v1922 = vsel %vm1890, 1, 0
  %vm1923 = vcmp.eq.s32.totalorder %v1891, 1
  %vm1924 = vcmp.eq.s32.totalorder %v1892, 1
  %vm1925 = vcmp.eq.s32.totalorder %v1893, 1
  %vm1926 = vcmp.eq.s32.totalorder %v1894, 1
  %vm1927 = vcmp.eq.s32.totalorder %v1895, 1
  %vm1928 = vcmp.eq.s32.totalorder %v1896, 1
  %vm1929 = vcmp.eq.s32.totalorder %v1897, 1
  %vm1930 = vcmp.eq.s32.totalorder %v1898, 1
  %vm1931 = vcmp.eq.s32.totalorder %v1899, 1
  %vm1932 = vcmp.eq.s32.totalorder %v1900, 1
  %vm1933 = vcmp.eq.s32.totalorder %v1901, 1
  %vm1934 = vcmp.eq.s32.totalorder %v1902, 1
  %vm1935 = vcmp.eq.s32.totalorder %v1903, 1
  %vm1936 = vcmp.eq.s32.totalorder %v1904, 1
  %vm1937 = vcmp.eq.s32.totalorder %v1905, 1
  %vm1938 = vcmp.eq.s32.totalorder %v1906, 1
  %vm1939 = vcmp.eq.s32.totalorder %v1907, 1
  %vm1940 = vcmp.eq.s32.totalorder %v1908, 1
  %vm1941 = vcmp.eq.s32.totalorder %v1909, 1
  %vm1942 = vcmp.eq.s32.totalorder %v1910, 1
  %vm1943 = vcmp.eq.s32.totalorder %v1911, 1
  %vm1944 = vcmp.eq.s32.totalorder %v1912, 1
  %vm1945 = vcmp.eq.s32.totalorder %v1913, 1
  %vm1946 = vcmp.eq.s32.totalorder %v1914, 1
  %vm1947 = vcmp.eq.s32.totalorder %v1915, 1
  %vm1948 = vcmp.eq.s32.totalorder %v1916, 1
  %vm1949 = vcmp.eq.s32.totalorder %v1917, 1
  %vm1950 = vcmp.eq.s32.totalorder %v1918, 1
  %vm1951 = vcmp.eq.s32.totalorder %v1919, 1
  %vm1952 = vcmp.eq.s32.totalorder %v1920, 1
  %vm1953 = vcmp.eq.s32.totalorder %v1921, 1
  %vm1954 = vcmp.eq.s32.totalorder %v1922, 1
  %v1955 = vsel %vm1923, %v870, %v868
  %v1956 = vsel %vm1924, %v874, %v872
  %v1957 = vsel %vm1925, %v880, %v878
  %v1958 = vsel %vm1926, %v884, %v882
  %v1959 = vsel %vm1927, %v890, %v888
  %v1960 = vsel %vm1928, %v894, %v892
  %v1961 = vsel %vm1929, %v900, %v898
  %v1962 = vsel %vm1930, %v904, %v902
  %v1963 = vsel %vm1931, %v910, %v908
  %v1964 = vsel %vm1932, %v914, %v912
  %v1965 = vsel %vm1933, %v920, %v918
  %v1966 = vsel %vm1934, %v924, %v922
  %v1967 = vsel %vm1935, %v930, %v928
  %v1968 = vsel %vm1936, %v934, %v932
  %v1969 = vsel %vm1937, %v940, %v938
  %v1970 = vsel %vm1938, %v944, %v942
  %v1971 = vsel %vm1939, %v950, %v948
  %v1972 = vsel %vm1940, %v954, %v952
  %v1973 = vsel %vm1941, %v960, %v958
  %v1974 = vsel %vm1942, %v964, %v962
  %v1975 = vsel %vm1943, %v970, %v968
  %v1976 = vsel %vm1944, %v974, %v972
  %v1977 = vsel %vm1945, %v980, %v978
  %v1978 = vsel %vm1946, %v984, %v982
  %v1979 = vsel %vm1947, %v990, %v988
  %v1980 = vsel %vm1948, %v994, %v992
  %v1981 = vsel %vm1949, %v1000, %v998
  %v1982 = vsel %vm1950, %v1004, %v1002
  %v1983 = vsel %vm1951, %v1010, %v1008
  %v1984 = vsel %vm1952, %v1014, %v1012
  %v1985 = vsel %vm1953, %v1020, %v1018
  %v1986 = vsel %vm1954, %v1024, %v1022
  %vm1987 = vcmp.eq.s32.totalorder %v1827, 2
  %vm1988 = vcmp.eq.s32.totalorder %v1828, 2
  %vm1989 = vcmp.eq.s32.totalorder %v1829, 2
  %vm1990 = vcmp.eq.s32.totalorder %v1830, 2
  %vm1991 = vcmp.eq.s32.totalorder %v1831, 2
  %vm1992 = vcmp.eq.s32.totalorder %v1832, 2
  %vm1993 = vcmp.eq.s32.totalorder %v1833, 2
  %vm1994 = vcmp.eq.s32.totalorder %v1834, 2
  %vm1995 = vcmp.eq.s32.totalorder %v1835, 2
  %vm1996 = vcmp.eq.s32.totalorder %v1836, 2
  %vm1997 = vcmp.eq.s32.totalorder %v1837, 2
  %vm1998 = vcmp.eq.s32.totalorder %v1838, 2
  %vm1999 = vcmp.eq.s32.totalorder %v1839, 2
  %vm2000 = vcmp.eq.s32.totalorder %v1840, 2
  %vm2001 = vcmp.eq.s32.totalorder %v1841, 2
  %vm2002 = vcmp.eq.s32.totalorder %v1842, 2
  %vm2003 = vcmp.eq.s32.totalorder %v1843, 2
  %vm2004 = vcmp.eq.s32.totalorder %v1844, 2
  %vm2005 = vcmp.eq.s32.totalorder %v1845, 2
  %vm2006 = vcmp.eq.s32.totalorder %v1846, 2
  %vm2007 = vcmp.eq.s32.totalorder %v1847, 2
  %vm2008 = vcmp.eq.s32.totalorder %v1848, 2
  %vm2009 = vcmp.eq.s32.totalorder %v1849, 2
  %vm2010 = vcmp.eq.s32.totalorder %v1850, 2
  %vm2011 = vcmp.eq.s32.totalorder %v1851, 2
  %vm2012 = vcmp.eq.s32.totalorder %v1852, 2
  %vm2013 = vcmp.eq.s32.totalorder %v1853, 2
  %vm2014 = vcmp.eq.s32.totalorder %v1854, 2
  %vm2015 = vcmp.eq.s32.totalorder %v1855, 2
  %vm2016 = vcmp.eq.s32.totalorder %v1856, 2
  %vm2017 = vcmp.eq.s32.totalorder %v1857, 2
  %vm2018 = vcmp.eq.s32.totalorder %v1858, 2
  %v2019 = vsel %vm1987, 1, 0
  %v2020 = vsel %vm1988, 1, 0
  %v2021 = vsel %vm1989, 1, 0
  %v2022 = vsel %vm1990, 1, 0
  %v2023 = vsel %vm1991, 1, 0
  %v2024 = vsel %vm1992, 1, 0
  %v2025 = vsel %vm1993, 1, 0
  %v2026 = vsel %vm1994, 1, 0
  %v2027 = vsel %vm1995, 1, 0
  %v2028 = vsel %vm1996, 1, 0
  %v2029 = vsel %vm1997, 1, 0
  %v2030 = vsel %vm1998, 1, 0
  %v2031 = vsel %vm1999, 1, 0
  %v2032 = vsel %vm2000, 1, 0
  %v2033 = vsel %vm2001, 1, 0
  %v2034 = vsel %vm2002, 1, 0
  %v2035 = vsel %vm2003, 1, 0
  %v2036 = vsel %vm2004, 1, 0
  %v2037 = vsel %vm2005, 1, 0
  %v2038 = vsel %vm2006, 1, 0
  %v2039 = vsel %vm2007, 1, 0
  %v2040 = vsel %vm2008, 1, 0
  %v2041 = vsel %vm2009, 1, 0
  %v2042 = vsel %vm2010, 1, 0
  %v2043 = vsel %vm2011, 1, 0
  %v2044 = vsel %vm2012, 1, 0
  %v2045 = vsel %vm2013, 1, 0
  %v2046 = vsel %vm2014, 1, 0
  %v2047 = vsel %vm2015, 1, 0
  %v2048 = vsel %vm2016, 1, 0
  %v2049 = vsel %vm2017, 1, 0
  %v2050 = vsel %vm2018, 1, 0
  %vm2051 = vcmp.eq.s32.totalorder %v2019, 1
  %vm2052 = vcmp.eq.s32.totalorder %v2020, 1
  %vm2053 = vcmp.eq.s32.totalorder %v2021, 1
  %vm2054 = vcmp.eq.s32.totalorder %v2022, 1
  %vm2055 = vcmp.eq.s32.totalorder %v2023, 1
  %vm2056 = vcmp.eq.s32.totalorder %v2024, 1
  %vm2057 = vcmp.eq.s32.totalorder %v2025, 1
  %vm2058 = vcmp.eq.s32.totalorder %v2026, 1
  %vm2059 = vcmp.eq.s32.totalorder %v2027, 1
  %vm2060 = vcmp.eq.s32.totalorder %v2028, 1
  %vm2061 = vcmp.eq.s32.totalorder %v2029, 1
  %vm2062 = vcmp.eq.s32.totalorder %v2030, 1
  %vm2063 = vcmp.eq.s32.totalorder %v2031, 1
  %vm2064 = vcmp.eq.s32.totalorder %v2032, 1
  %vm2065 = vcmp.eq.s32.totalorder %v2033, 1
  %vm2066 = vcmp.eq.s32.totalorder %v2034, 1
  %vm2067 = vcmp.eq.s32.totalorder %v2035, 1
  %vm2068 = vcmp.eq.s32.totalorder %v2036, 1
  %vm2069 = vcmp.eq.s32.totalorder %v2037, 1
  %vm2070 = vcmp.eq.s32.totalorder %v2038, 1
  %vm2071 = vcmp.eq.s32.totalorder %v2039, 1
  %vm2072 = vcmp.eq.s32.totalorder %v2040, 1
  %vm2073 = vcmp.eq.s32.totalorder %v2041, 1
  %vm2074 = vcmp.eq.s32.totalorder %v2042, 1
  %vm2075 = vcmp.eq.s32.totalorder %v2043, 1
  %vm2076 = vcmp.eq.s32.totalorder %v2044, 1
  %vm2077 = vcmp.eq.s32.totalorder %v2045, 1
  %vm2078 = vcmp.eq.s32.totalorder %v2046, 1
  %vm2079 = vcmp.eq.s32.totalorder %v2047, 1
  %vm2080 = vcmp.eq.s32.totalorder %v2048, 1
  %vm2081 = vcmp.eq.s32.totalorder %v2049, 1
  %vm2082 = vcmp.eq.s32.totalorder %v2050, 1
  %v2083 = vsel %vm2051, %v1061, %v1955
  %v2084 = vsel %vm2052, %v1065, %v1956
  %v2085 = vsel %vm2053, %v1071, %v1957
  %v2086 = vsel %vm2054, %v1075, %v1958
  %v2087 = vsel %vm2055, %v1081, %v1959
  %v2088 = vsel %vm2056, %v1085, %v1960
  %v2089 = vsel %vm2057, %v1091, %v1961
  %v2090 = vsel %vm2058, %v1095, %v1962
  %v2091 = vsel %vm2059, %v1101, %v1963
  %v2092 = vsel %vm2060, %v1105, %v1964
  %v2093 = vsel %vm2061, %v1111, %v1965
  %v2094 = vsel %vm2062, %v1115, %v1966
  %v2095 = vsel %vm2063, %v1121, %v1967
  %v2096 = vsel %vm2064, %v1125, %v1968
  %v2097 = vsel %vm2065, %v1131, %v1969
  %v2098 = vsel %vm2066, %v1135, %v1970
  %v2099 = vsel %vm2067, %v1141, %v1971
  %v2100 = vsel %vm2068, %v1145, %v1972
  %v2101 = vsel %vm2069, %v1151, %v1973
  %v2102 = vsel %vm2070, %v1155, %v1974
  %v2103 = vsel %vm2071, %v1161, %v1975
  %v2104 = vsel %vm2072, %v1165, %v1976
  %v2105 = vsel %vm2073, %v1171, %v1977
  %v2106 = vsel %vm2074, %v1175, %v1978
  %v2107 = vsel %vm2075, %v1181, %v1979
  %v2108 = vsel %vm2076, %v1185, %v1980
  %v2109 = vsel %vm2077, %v1191, %v1981
  %v2110 = vsel %vm2078, %v1195, %v1982
  %v2111 = vsel %vm2079, %v1201, %v1983
  %v2112 = vsel %vm2080, %v1205, %v1984
  %v2113 = vsel %vm2081, %v1211, %v1985
  %v2114 = vsel %vm2082, %v1215, %v1986
  %vm2115 = vcmp.eq.s32.totalorder %v1827, 3
  %vm2116 = vcmp.eq.s32.totalorder %v1828, 3
  %vm2117 = vcmp.eq.s32.totalorder %v1829, 3
  %vm2118 = vcmp.eq.s32.totalorder %v1830, 3
  %vm2119 = vcmp.eq.s32.totalorder %v1831, 3
  %vm2120 = vcmp.eq.s32.totalorder %v1832, 3
  %vm2121 = vcmp.eq.s32.totalorder %v1833, 3
  %vm2122 = vcmp.eq.s32.totalorder %v1834, 3
  %vm2123 = vcmp.eq.s32.totalorder %v1835, 3
  %vm2124 = vcmp.eq.s32.totalorder %v1836, 3
  %vm2125 = vcmp.eq.s32.totalorder %v1837, 3
  %vm2126 = vcmp.eq.s32.totalorder %v1838, 3
  %vm2127 = vcmp.eq.s32.totalorder %v1839, 3
  %vm2128 = vcmp.eq.s32.totalorder %v1840, 3
  %vm2129 = vcmp.eq.s32.totalorder %v1841, 3
  %vm2130 = vcmp.eq.s32.totalorder %v1842, 3
  %vm2131 = vcmp.eq.s32.totalorder %v1843, 3
  %vm2132 = vcmp.eq.s32.totalorder %v1844, 3
  %vm2133 = vcmp.eq.s32.totalorder %v1845, 3
  %vm2134 = vcmp.eq.s32.totalorder %v1846, 3
  %vm2135 = vcmp.eq.s32.totalorder %v1847, 3
  %vm2136 = vcmp.eq.s32.totalorder %v1848, 3
  %vm2137 = vcmp.eq.s32.totalorder %v1849, 3
  %vm2138 = vcmp.eq.s32.totalorder %v1850, 3
  %vm2139 = vcmp.eq.s32.totalorder %v1851, 3
  %vm2140 = vcmp.eq.s32.totalorder %v1852, 3
  %vm2141 = vcmp.eq.s32.totalorder %v1853, 3
  %vm2142 = vcmp.eq.s32.totalorder %v1854, 3
  %vm2143 = vcmp.eq.s32.totalorder %v1855, 3
  %vm2144 = vcmp.eq.s32.totalorder %v1856, 3
  %vm2145 = vcmp.eq.s32.totalorder %v1857, 3
  %vm2146 = vcmp.eq.s32.totalorder %v1858, 3
  %v2147 = vsel %vm2115, 1, 0
  %v2148 = vsel %vm2116, 1, 0
  %v2149 = vsel %vm2117, 1, 0
  %v2150 = vsel %vm2118, 1, 0
  %v2151 = vsel %vm2119, 1, 0
  %v2152 = vsel %vm2120, 1, 0
  %v2153 = vsel %vm2121, 1, 0
  %v2154 = vsel %vm2122, 1, 0
  %v2155 = vsel %vm2123, 1, 0
  %v2156 = vsel %vm2124, 1, 0
  %v2157 = vsel %vm2125, 1, 0
  %v2158 = vsel %vm2126, 1, 0
  %v2159 = vsel %vm2127, 1, 0
  %v2160 = vsel %vm2128, 1, 0
  %v2161 = vsel %vm2129, 1, 0
  %v2162 = vsel %vm2130, 1, 0
  %v2163 = vsel %vm2131, 1, 0
  %v2164 = vsel %vm2132, 1, 0
  %v2165 = vsel %vm2133, 1, 0
  %v2166 = vsel %vm2134, 1, 0
  %v2167 = vsel %vm2135, 1, 0
  %v2168 = vsel %vm2136, 1, 0
  %v2169 = vsel %vm2137, 1, 0
  %v2170 = vsel %vm2138, 1, 0
  %v2171 = vsel %vm2139, 1, 0
  %v2172 = vsel %vm2140, 1, 0
  %v2173 = vsel %vm2141, 1, 0
  %v2174 = vsel %vm2142, 1, 0
  %v2175 = vsel %vm2143, 1, 0
  %v2176 = vsel %vm2144, 1, 0
  %v2177 = vsel %vm2145, 1, 0
  %v2178 = vsel %vm2146, 1, 0
  %vm2179 = vcmp.eq.s32.totalorder %v2147, 1
  %vm2180 = vcmp.eq.s32.totalorder %v2148, 1
  %vm2181 = vcmp.eq.s32.totalorder %v2149, 1
  %vm2182 = vcmp.eq.s32.totalorder %v2150, 1
  %vm2183 = vcmp.eq.s32.totalorder %v2151, 1
  %vm2184 = vcmp.eq.s32.totalorder %v2152, 1
  %vm2185 = vcmp.eq.s32.totalorder %v2153, 1
  %vm2186 = vcmp.eq.s32.totalorder %v2154, 1
  %vm2187 = vcmp.eq.s32.totalorder %v2155, 1
  %vm2188 = vcmp.eq.s32.totalorder %v2156, 1
  %vm2189 = vcmp.eq.s32.totalorder %v2157, 1
  %vm2190 = vcmp.eq.s32.totalorder %v2158, 1
  %vm2191 = vcmp.eq.s32.totalorder %v2159, 1
  %vm2192 = vcmp.eq.s32.totalorder %v2160, 1
  %vm2193 = vcmp.eq.s32.totalorder %v2161, 1
  %vm2194 = vcmp.eq.s32.totalorder %v2162, 1
  %vm2195 = vcmp.eq.s32.totalorder %v2163, 1
  %vm2196 = vcmp.eq.s32.totalorder %v2164, 1
  %vm2197 = vcmp.eq.s32.totalorder %v2165, 1
  %vm2198 = vcmp.eq.s32.totalorder %v2166, 1
  %vm2199 = vcmp.eq.s32.totalorder %v2167, 1
  %vm2200 = vcmp.eq.s32.totalorder %v2168, 1
  %vm2201 = vcmp.eq.s32.totalorder %v2169, 1
  %vm2202 = vcmp.eq.s32.totalorder %v2170, 1
  %vm2203 = vcmp.eq.s32.totalorder %v2171, 1
  %vm2204 = vcmp.eq.s32.totalorder %v2172, 1
  %vm2205 = vcmp.eq.s32.totalorder %v2173, 1
  %vm2206 = vcmp.eq.s32.totalorder %v2174, 1
  %vm2207 = vcmp.eq.s32.totalorder %v2175, 1
  %vm2208 = vcmp.eq.s32.totalorder %v2176, 1
  %vm2209 = vcmp.eq.s32.totalorder %v2177, 1
  %vm2210 = vcmp.eq.s32.totalorder %v2178, 1
  %v2211 = vsel %vm2179, %v1063, %v2083
  %v2212 = vsel %vm2180, %v1067, %v2084
  %v2213 = vsel %vm2181, %v1073, %v2085
  %v2214 = vsel %vm2182, %v1077, %v2086
  %v2215 = vsel %vm2183, %v1083, %v2087
  %v2216 = vsel %vm2184, %v1087, %v2088
  %v2217 = vsel %vm2185, %v1093, %v2089
  %v2218 = vsel %vm2186, %v1097, %v2090
  %v2219 = vsel %vm2187, %v1103, %v2091
  %v2220 = vsel %vm2188, %v1107, %v2092
  %v2221 = vsel %vm2189, %v1113, %v2093
  %v2222 = vsel %vm2190, %v1117, %v2094
  %v2223 = vsel %vm2191, %v1123, %v2095
  %v2224 = vsel %vm2192, %v1127, %v2096
  %v2225 = vsel %vm2193, %v1133, %v2097
  %v2226 = vsel %vm2194, %v1137, %v2098
  %v2227 = vsel %vm2195, %v1143, %v2099
  %v2228 = vsel %vm2196, %v1147, %v2100
  %v2229 = vsel %vm2197, %v1153, %v2101
  %v2230 = vsel %vm2198, %v1157, %v2102
  %v2231 = vsel %vm2199, %v1163, %v2103
  %v2232 = vsel %vm2200, %v1167, %v2104
  %v2233 = vsel %vm2201, %v1173, %v2105
  %v2234 = vsel %vm2202, %v1177, %v2106
  %v2235 = vsel %vm2203, %v1183, %v2107
  %v2236 = vsel %vm2204, %v1187, %v2108
  %v2237 = vsel %vm2205, %v1193, %v2109
  %v2238 = vsel %vm2206, %v1197, %v2110
  %v2239 = vsel %vm2207, %v1203, %v2111
  %v2240 = vsel %vm2208, %v1207, %v2112
  %v2241 = vsel %vm2209, %v1213, %v2113
  %v2242 = vsel %vm2210, %v1217, %v2114
  %2243 = vst [vmem:[%s3] sm:$0xff] %v2211
  %2244 = vst [vmem:[%s3 + $0x8] sm:$0xff] %v2212
  %2245 = vst [vmem:[%s3 + $0x10] sm:$0xff] %v2213
  %2246 = vst [vmem:[%s3 + $0x18] sm:$0xff] %v2214
  %2247 = vst [vmem:[%s3 + $0x20] sm:$0xff] %v2215
  %2248 = vst [vmem:[%s3 + $0x28] sm:$0xff] %v2216
  %2249 = vst [vmem:[%s3 + $0x30] sm:$0xff] %v2217
  %2250 = vst [vmem:[%s3 + $0x38] sm:$0xff] %v2218
  %2251 = vst [vmem:[%s3 + $0x40] sm:$0xff] %v2219
  %2252 = vst [vmem:[%s3 + $0x48] sm:$0xff] %v2220
  %2253 = vst [vmem:[%s3 + $0x50] sm:$0xff] %v2221
  %2254 = vst [vmem:[%s3 + $0x58] sm:$0xff] %v2222
  %2255 = vst [vmem:[%s3 + $0x60] sm:$0xff] %v2223
  %2256 = vst [vmem:[%s3 + $0x68] sm:$0xff] %v2224
  %2257 = vst [vmem:[%s3 + $0x70] sm:$0xff] %v2225
  %2258 = vst [vmem:[%s3 + $0x78] sm:$0xff] %v2226
  %2259 = vst [vmem:[%s3 + $0x80] sm:$0xff] %v2227
  %2260 = vst [vmem:[%s3 + $0x88] sm:$0xff] %v2228
  %2261 = vst [vmem:[%s3 + $0x90] sm:$0xff] %v2229
  %2262 = vst [vmem:[%s3 + $0x98] sm:$0xff] %v2230
  %2263 = vst [vmem:[%s3 + $0xa0] sm:$0xff] %v2231
  %2264 = vst [vmem:[%s3 + $0xa8] sm:$0xff] %v2232
  %2265 = vst [vmem:[%s3 + $0xb0] sm:$0xff] %v2233
  %2266 = vst [vmem:[%s3 + $0xb8] sm:$0xff] %v2234
  %2267 = vst [vmem:[%s3 + $0xc0] sm:$0xff] %v2235
  %2268 = vst [vmem:[%s3 + $0xc8] sm:$0xff] %v2236
  %2269 = vst [vmem:[%s3 + $0xd0] sm:$0xff] %v2237
  %2270 = vst [vmem:[%s3 + $0xd8] sm:$0xff] %v2238
  %2271 = vst [vmem:[%s3 + $0xe0] sm:$0xff] %v2239
  %2272 = vst [vmem:[%s3 + $0xe8] sm:$0xff] %v2240
  %2273 = vst [vmem:[%s3 + $0xf0] sm:$0xff] %v2241
  %2274 = vst [vmem:[%s3 + $0xf8] sm:$0xff] %v2242
  // Predicated region
  $region14: #{_reconstruction_step.1} parent=0 // pred_check
    _
  $region15: #{_reconstruction_step.1} parent=0 // pred_check_branch
    %2276 = sbr.rel (0) target = $region17
  $region16: #{_reconstruction_step.1} parent=0 // pred_region
    _
  $region17: #{_reconstruction_step.1} parent=0 // pred_fallthru
    _
  // Predicated region
  $region18: #{_reconstruction_step.1} parent=0 // pred_check
    _
  $region19: #{_reconstruction_step.1} parent=0 // pred_check_branch
    %2278 = sbr.rel (0) target = $region21
  $region20: #{_reconstruction_step.1} parent=0 // pred_region
    _
  $region21: #{_reconstruction_step.1} parent=0 // pred_fallthru
    _

</llo_original>
